<compile_context>
chip_gen: v7x
topology: tpu7x:2x2x1
jax: 0.10.0
libtpu: 0.0.40
codegen_flags: <defaults>
</compile_context>

<pallas_src>
import functools

import jax
import jax.numpy as jnp
from jax.experimental import pallas as pl
from jax.experimental.pallas import tpu as pltpu

LANES = 128          # lane-dense padding target for the final logits
VMEM_LIMIT = 32 * 1024 * 1024   # safe on v5e/v6e/v7x


# ---------------------------------------------------------------------------
# Pallas kernels
# ---------------------------------------------------------------------------
def _conv_relu_pool_kernel(x_ref, w_ref, b_ref, o_ref, col_scratch, *, kh, kw):
    """'valid' conv over a pre-padded image + bias + ReLU + fused 2x2 maxpool.

    x_ref:       (1, H+kh-1, W+kw-1, Cin)  whole (padded) image, resident across row tiles
    w_ref:       (kh, kw, Cin, Cout)       VMEM resident
    b_ref:       (1, Cout)                 VMEM resident
    o_ref:       (1, TILE_H//2, W//2, Cout) pooled output tile
    col_scratch: (TILE_H//2, W, Cout) f32  row-pooled rows before column pooling
    """
    _, tho, wo, cout = o_ref.shape
    tile_h, width = 2 * tho, 2 * wo
    cin = x_ref.shape[3]
    row0 = pl.multiple_of(pl.program_id(1) * tile_h, tile_h)

    # Per-tap MXU accumulation (conv1 is a single K=9*Cin tap via wrapper im2col).
    # TODO(synk): if profiling shows vld/vst saturating before MXU pushes, derive the
    # j-shifted taps with pltpu.roll from one (TILE_H, W+2, Cin) slab instead.
    acc = None
    for i in range(kh):
        for j in range(kw):
            tap = x_ref[0, pl.ds(row0 + i, tile_h), pl.ds(j, width), :]
            contrib = jnp.dot(tap.reshape(tile_h * width, cin), w_ref[i, j],
                              preferred_element_type=jnp.float32)
            acc = contrib if acc is None else acc + contrib

    y = jnp.maximum(acc + b_ref[...], 0.0)
    # --- fused 2x2 maxpool -------------------------------------------------
    # Row pairs: layout-preserving reshape (W is a multiple of 8) + major-axis max.
    y = jnp.max(y.reshape(tho, 2, width, cout), axis=1)          # (tho, W, Cout)
    col_scratch[...] = y
    # Column pairs: sublane-strided reads (documented replacement for strided_load).
    pooled = jnp.maximum(col_scratch[:, pl.ds(0, wo, stride=2), :],
                         col_scratch[:, pl.ds(1, wo, stride=2), :])
    o_ref[...] = pooled.reshape(1, tho, wo, cout).astype(o_ref.dtype)


def _fc_head_kernel(x_ref, w1_ref, b1_ref, w2_ref, b2_ref, o_ref):
    """Fused fc1 + ReLU + fc2 with everything VMEM-resident (grid=(1,)).

    x_ref: (N, K1)  w1_ref: (K1, H1)  b1_ref: (1, H1)
    w2_ref: (H1, CP)  b2_ref: (1, CP)  o_ref: (N, CP)
    x / w1 may be bf16; accumulation is f32 via preferred_element_type.
    """
    h = jnp.dot(x_ref[...], w1_ref[...], preferred_element_type=jnp.float32)
    h = jnp.maximum(h + b1_ref[...], 0.0)
    o_ref[...] = (jnp.dot(h, w2_ref[...], preferred_element_type=jnp.float32)
                  + b2_ref[...]).astype(o_ref.dtype)


# ---------------------------------------------------------------------------
# Wrappers
# ---------------------------------------------------------------------------
def conv_relu_pool_pallas(x_padded, w, b, *, tile_h=8):
    """Conv (valid over pre-padded input) + bias + ReLU + 2x2/2 maxpool.

    x_padded: (N, H+kh-1, W+kw-1, Cin),  w: (kh, kw, Cin, Cout),  b: (1, Cout)
    Returns (N, H//2, W//2, Cout) float32.
    """
    N, HP, WP, Cin = x_padded.shape
    KH, KW, Cw, Cout = w.shape
    assert Cw == Cin
    H, W = HP - KH + 1, WP - KW + 1
    assert H % 2 == 0 and W % 2 == 0 and W % 8 == 0
    # Guard the accumulator size explicitly (no silent TILE_H=H fallback).
    assert tile_h % 2 == 0 and H % tile_h == 0, "tile_h must be even and divide H"
    tho, wo = tile_h // 2, W // 2
    n_t = H // tile_h

    cost = pl.CostEstimate(
        flops=2 * N * H * W * KH * KW * Cin * Cout,
        transcendentals=0,
        bytes_accessed=4 * (x_padded.size + w.size + b.size
                            + N * (H // 2) * (W // 2) * Cout),
    )

    kernel = functools.partial(_conv_relu_pool_kernel, kh=KH, kw=KW)
    return pl.pallas_call(
        kernel,
        out_shape=jax.ShapeDtypeStruct((N, H // 2, W // 2, Cout), jnp.float32),
        grid=(N, n_t),
        in_specs=[
            # Whole padded image per batch index; constant across row tiles -> one
            # fetch per image, no halo re-DMA.
            pl.BlockSpec((1, HP, WP, Cin), lambda n, t: (n, 0, 0, 0)),
            pl.BlockSpec((KH, KW, Cin, Cout), lambda n, t: (0, 0, 0, 0)),
            pl.BlockSpec((1, Cout), lambda n, t: (0, 0)),
        ],
        out_specs=pl.BlockSpec((1, tho, wo, Cout), lambda n, t: (n, t, 0, 0)),
        scratch_shapes=[pltpu.VMEM((tho, W, Cout), jnp.float32)],
        compiler_params=pltpu.CompilerParams(
            dimension_semantics=("parallel", "parallel"),
            vmem_limit_bytes=VMEM_LIMIT,
        ),
        cost_estimate=cost,
    )(x_padded, w, b)


def fc_head_pallas(x_flat, w1, b1, w2, b2):
    """Fused Linear(K1->H1) + ReLU + Linear(H1->CP); all weights VMEM-resident."""
    N, K1 = x_flat.shape
    H1 = w1.shape[1]
    CP = w2.shape[1]

    cost = pl.CostEstimate(
        flops=2 * N * (K1 * H1 + H1 * CP),
        transcendentals=0,
        bytes_accessed=(x_flat.size * x_flat.dtype.itemsize
                        + w1.size * w1.dtype.itemsize
                        + 4 * (b1.size + w2.size + b2.size + N * CP)),
    )

    return pl.pallas_call(
        _fc_head_kernel,
        out_shape=jax.ShapeDtypeStruct((N, CP), jnp.float32),
        grid=(1,),
        in_specs=[
            pl.BlockSpec((N, K1), lambda i: (0, 0)),
            pl.BlockSpec((K1, H1), lambda i: (0, 0)),   # fully resident (no K tiling)
            pl.BlockSpec((1, H1), lambda i: (0, 0)),
            pl.BlockSpec((H1, CP), lambda i: (0, 0)),
            pl.BlockSpec((1, CP), lambda i: (0, 0)),
        ],
        out_specs=pl.BlockSpec((N, CP), lambda i: (0, 0)),
        compiler_params=pltpu.CompilerParams(
            dimension_semantics=("arbitrary",),
            vmem_limit_bytes=VMEM_LIMIT,
        ),
        cost_estimate=cost,
    )(x_flat, w1, b1, w2, b2)


# ---------------------------------------------------------------------------
# Model: parameter init (torch layout) + one-time kernel-layout preparation
# ---------------------------------------------------------------------------
def init_params(key, input_channels=3, num_classes=10):
    def dense(k, shape, fan_in):
        return jax.random.normal(k, shape, jnp.float32) / jnp.sqrt(fan_in)

    ks = jax.random.split(key, 8)
    w1c = dense(ks[0], (3, 3, input_channels, 32), 9 * input_channels)
    b1c = 0.01 * jax.random.normal(ks[1], (32,), jnp.float32)
    w2c = dense(ks[2], (3, 3, 32, 64), 9 * 32)
    b2c = 0.01 * jax.random.normal(ks[3], (64,), jnp.float32)
    w1f = dense(ks[4], (64 * 8 * 8, 256), 64 * 8 * 8)   # rows in torch C*H*W order
    b1f = 0.01 * jax.random.normal(ks[5], (256,), jnp.float32)
    w2f = dense(ks[6], (256, num_classes), 256)
    b2f = 0.01 * jax.random.normal(ks[7], (num_classes,), jnp.float32)
    return (w1c, b1c), (w2c, b2c), (w1f, b1f), (w2f, b2f)


def prepare_params(params, fc1_dtype=jnp.float32):
    """One-time weight prep: im2col-reshape conv1, permute fc1 rows to H*W*C order,
    lane-pad fc2, optionally cast fc1 to bf16 (f32 accumulation in-kernel)."""
    (w1c, b1c), (w2c, b2c), (w1f, b1f), (w2f, b2f) = params
    kh, kw, cin, c1 = w1c.shape
    c2 = w2c.shape[-1]
    h1 = w1f.shape[1]
    ncls = w2f.shape[1]
    s = int(round((w1f.shape[0] // c2) ** 0.5))          # pooled spatial size (=8)
    # torch feature order (c, h, w) -> NHWC flatten order (h, w, c)
    w1f_hwc = w1f.reshape(c2, s, s, h1).transpose(1, 2, 0, 3).reshape(c2 * s * s, h1)
    return {
        "conv1_w": w1c.reshape(1, 1, kh * kw * cin, c1),  # K = 9*Cin im2col weight
        "conv1_b": b1c.reshape(1, c1),
        "conv2_w": w2c,
        "conv2_b": b2c.reshape(1, c2),
        "fc1_w": w1f_hwc.astype(fc1_dtype),
        "fc1_b": b1f.reshape(1, h1),
        "fc2_w": jnp.pad(w2f, ((0, 0), (0, LANES - ncls))),
        "fc2_b": jnp.pad(b2f, (0, LANES - ncls)).reshape(1, LANES),
        "num_classes": ncls,
    }


def shallow_cnn_forward(x_nchw, kparams):
    p = kparams
    x = jnp.transpose(x_nchw, (0, 2, 3, 1))               # NCHW -> NHWC
    N, H, W, Cin = x.shape

    # Layer-1-only im2col: ~110 KiB/image, turns conv1 into one K=27 matmul per tile.
    xp = jnp.pad(x, ((0, 0), (1, 1), (1, 1), (0, 0)))
    patches = jnp.concatenate(
        [xp[:, i:i + H, j:j + W, :] for i in range(3) for j in range(3)], axis=-1)

    a1 = conv_relu_pool_pallas(patches, p["conv1_w"], p["conv1_b"])      # (N,16,16,32)
    # TODO(synk): fold this tiny zero-halo pad into the conv kernels (pl.when border
    # handling or a padded output buffer) to drop one small XLA op / HBM copy.
    a1p = jnp.pad(a1, ((0, 0), (1, 1), (1, 1), (0, 0)))                  # (N,18,18,32)
    a2 = conv_relu_pool_pallas(a1p, p["conv2_w"], p["conv2_b"])          # (N, 8, 8,64)

    # Contiguous NHWC flatten; fc1 rows were permuted to H*W*C order at prepare time,
    # so this matches torch's x.view(-1, 64*8*8) numerically without a transpose.
    x_flat = a2.reshape(a2.shape[0], -1).astype(p["fc1_w"].dtype)
    logits = fc_head_pallas(x_flat, p["fc1_w"], p["fc1_b"], p["fc2_w"], p["fc2_b"])
    return logits[:, : p["num_classes"]]
    # NOTE: torch's self.feature_maps host-side caching (visualization side effect)
    # is intentionally not reproduced.


# Pure-JAX reference (torch semantics, original torch-layout params)
def reference_forward(x_nchw, params):
    (w1c, b1c), (w2c, b2c), (w1f, b1f), (w2f, b2f) = params
    x = jnp.transpose(x_nchw, (0, 2, 3, 1))
    for (w, b) in ((w1c, b1c), (w2c, b2c)):
        y = jax.lax.conv_general_dilated(
            x, w, window_strides=(1, 1), padding=((1, 1), (1, 1)),
            dimension_numbers=("NHWC", "HWIO", "NHWC"))
        y = jnp.maximum(y + b, 0.0)
        N, H, W, C = y.shape
        x = jnp.max(y.reshape(N, H // 2, 2, W // 2, 2, C), axis=(2, 4))
    N = x.shape[0]
    x = jnp.transpose(x, (0, 3, 1, 2)).reshape(N, -1)      # torch C*H*W flatten order
    h = jnp.maximum(x @ w1f + b1f, 0.0)
    return h @ w2f + b2f


if __name__ == "__main__":
    in_channels, num_classes = 3, 10
    key = jax.random.PRNGKey(0)
    key, xk, pk = jax.random.split(key, 3)
    # fc1 expects 64*8*8 features -> 32x32 spatial input (CIFAR-like)
    x = jax.random.normal(xk, (2, in_channels, 32, 32), jnp.float32)   # NCHW

    params = init_params(pk, in_channels, num_classes)
    ref = reference_forward(x, params)

    # f32 path: tight agreement with the f32 reference.
    kp32 = prepare_params(params, fc1_dtype=jnp.float32)
    out32 = jax.jit(functools.partial(shallow_cnn_forward, kparams=kp32))(x)
    out32 = jax.block_until_ready(out32)
    assert out32.shape == (2, num_classes) and out32.dtype == jnp.float32
    assert jnp.allclose(out32, ref, rtol=2e-3, atol=2e-3), "f32 path mismatch vs reference"

    # bf16-fc1 path (halves the dominant w1 HBM transfer); looser tolerance.
    kp16 = prepare_params(params, fc1_dtype=jnp.bfloat16)
    out16 = jax.jit(functools.partial(shallow_cnn_forward, kparams=kp16))(x)
    out16 = jax.block_until_ready(out16)
    assert jnp.allclose(out16, ref, rtol=3e-2, atol=3e-2), "bf16 path mismatch vs reference"

    print("KERNEL_OK")
</pallas_src>

<mosaic_0001>
module attributes {stable_mosaic.version = 11 : i64} {
  func.func @_conv_relu_pool_kernel(%arg0: i32, %arg1: i32, %arg2: memref<1x32x32x27xf32, #tpu.memory_space<vmem>>, %arg3: memref<1x1x27x32xf32, #tpu.memory_space<vmem>>, %arg4: memref<1x32xf32, #tpu.memory_space<vmem>>, %arg5: memref<1x4x16x32xf32, #tpu.memory_space<vmem>>, %arg6: memref<4x32x32xf32, #tpu.memory_space<vmem>>) attributes {dimension_semantics = [#tpu.dimension_semantics<parallel>, #tpu.dimension_semantics<parallel>], iteration_bounds = array<i64: 2, 4>, scalar_prefetch = 0 : i64, scratch_operands = 1 : i64, tpu.core_type = #tpu.core_type<tc>, window_params = [{transform_indices = @transform_0, window_bounds = array<i64: 1, 32, 32, 27>}, {pipeline_mode = #tpu.pipeline_mode<synchronous>, transform_indices = @transform_1, window_bounds = array<i64: 1, 1, 27, 32>}, {pipeline_mode = #tpu.pipeline_mode<synchronous>, transform_indices = @transform_2, window_bounds = array<i64: 1, 32>}, {transform_indices = @transform_3, window_bounds = array<i64: 1, 4, 16, 32>}]} {
    %c8_i32 = arith.constant 8 : i32
    %0 = arith.muli %arg1, %c8_i32 : i32
    %1 = tpu.assume_multiple %0, 8 : i32
    %c0_i32 = arith.constant 0 : i32
    %2 = arith.addi %1, %c0_i32 : i32
    %c0 = arith.constant 0 : index
    %3 = arith.index_cast %2 : i32 to index
    %c0_0 = arith.constant 0 : index
    %c0_1 = arith.constant 0 : index
    %4 = vector.load %arg2[%c0, %3, %c0_0, %c0_1] : memref<1x32x32x27xf32, #tpu.memory_space<vmem>>, vector<1x8x32x27xf32>
    %5 = vector.shape_cast %4 : vector<1x8x32x27xf32> to vector<8x32x27xf32>
    %6 = vector.shape_cast %5 : vector<8x32x27xf32> to vector<256x27xf32>
    %c0_2 = arith.constant 0 : index
    %c0_3 = arith.constant 0 : index
    %c0_4 = arith.constant 0 : index
    %c0_5 = arith.constant 0 : index
    %7 = vector.load %arg3[%c0_2, %c0_3, %c0_4, %c0_5] : memref<1x1x27x32xf32, #tpu.memory_space<vmem>>, vector<1x1x27x32xf32>
    %8 = vector.shape_cast %7 : vector<1x1x27x32xf32> to vector<27x32xf32>
    %cst = arith.constant dense<0.000000e+00> : vector<256x32xf32>
    %9 = tpu.matmul %6, %8, %cst {dimension_numbers = #tpu.dot_dimension_numbers<[1], [0], [0], [1], [0, 0, 1, 1], [], []>} : vector<256x27xf32>, vector<27x32xf32>, vector<256x32xf32> -> vector<256x32xf32>
    %c0_6 = arith.constant 0 : index
    %c0_7 = arith.constant 0 : index
    %10 = vector.load %arg4[%c0_6, %c0_7] : memref<1x32xf32, #tpu.memory_space<vmem>>, vector<1x32xf32>
    %11 = vector.broadcast %10 : vector<1x32xf32> to vector<256x32xf32>
    %12 = arith.addf %9, %11 : vector<256x32xf32>
    %cst_8 = arith.constant 0.000000e+00 : f32
    %13 = vector.broadcast %cst_8 : f32 to vector<256x32xf32>
    %14 = arith.maximumf %12, %13 : vector<256x32xf32>
    %15 = vector.shape_cast %14 : vector<256x32xf32> to vector<4x2x32x32xf32>
    %cst_9 = arith.constant dense<0xFF800000> : vector<4x32x32xf32>
    %16 = vector.multi_reduction <maximumf>, %15, %cst_9 [1] : vector<4x2x32x32xf32> to vector<4x32x32xf32>
    %c0_10 = arith.constant 0 : index
    %c0_11 = arith.constant 0 : index
    %c0_12 = arith.constant 0 : index
    %17 = vector.load %arg6[%c0_10, %c0_11, %c0_12] : memref<4x32x32xf32, #tpu.memory_space<vmem>>, vector<4x32x32xf32>
    tpu.vector_store %arg6[%c0_10, %c0_11, %c0_12], %16 {strides = array<i32>} : memref<4x32x32xf32, #tpu.memory_space<vmem>>, vector<4x32x32xf32>,
    %c0_13 = arith.constant 0 : index
    %c0_14 = arith.constant 0 : index
    %c0_15 = arith.constant 0 : index
    %18 = tpu.strided_load %arg6[%c0_13, %c0_14, %c0_15] {strides = array<i32: 1, 2, 1>} : memref<4x32x32xf32, #tpu.memory_space<vmem>>, vector<4x16x32xf32>
    %c0_16 = arith.constant 0 : index
    %c1 = arith.constant 1 : index
    %c0_17 = arith.constant 0 : index
    %19 = tpu.strided_load %arg6[%c0_16, %c1, %c0_17] {strides = array<i32: 1, 2, 1>} : memref<4x32x32xf32, #tpu.memory_space<vmem>>, vector<4x16x32xf32>
    %20 = arith.maximumf %18, %19 : vector<4x16x32xf32>
    %21 = vector.shape_cast %20 : vector<4x16x32xf32> to vector<1x4x16x32xf32>
    %c0_18 = arith.constant 0 : index
    %c0_19 = arith.constant 0 : index
    %c0_20 = arith.constant 0 : index
    %c0_21 = arith.constant 0 : index
    %22 = vector.load %arg5[%c0_18, %c0_19, %c0_20, %c0_21] : memref<1x4x16x32xf32, #tpu.memory_space<vmem>>, vector<1x4x16x32xf32>
    tpu.vector_store %arg5[%c0_18, %c0_19, %c0_20, %c0_21], %21 {strides = array<i32>} : memref<1x4x16x32xf32, #tpu.memory_space<vmem>>, vector<1x4x16x32xf32>,
    return
  }
  func.func @transform_0(%arg0: i32, %arg1: i32) -> (i32, i32, i32, i32) {
    %c0_i32 = arith.constant 0 : i32
    %c0_i32_0 = arith.constant 0 : i32
    %c0_i32_1 = arith.constant 0 : i32
    %c0_i32_2 = arith.constant 0 : i32
    return %arg0, %c0_i32, %c0_i32_0, %c0_i32_1 : i32, i32, i32, i32
  }
  func.func @transform_1(%arg0: i32, %arg1: i32) -> (i32, i32, i32, i32) {
    %c0_i32 = arith.constant 0 : i32
    %c0_i32_0 = arith.constant 0 : i32
    %c0_i32_1 = arith.constant 0 : i32
    %c0_i32_2 = arith.constant 0 : i32
    %c0_i32_3 = arith.constant 0 : i32
    return %c0_i32, %c0_i32_0, %c0_i32_1, %c0_i32_2 : i32, i32, i32, i32
  }
  func.func @transform_2(%arg0: i32, %arg1: i32) -> (i32, i32) {
    %c0_i32 = arith.constant 0 : i32
    %c0_i32_0 = arith.constant 0 : i32
    %c0_i32_1 = arith.constant 0 : i32
    return %c0_i32, %c0_i32_0 : i32, i32
  }
  func.func @transform_3(%arg0: i32, %arg1: i32) -> (i32, i32, i32, i32) {
    %c0_i32 = arith.constant 0 : i32
    %c0_i32_0 = arith.constant 0 : i32
    %c0_i32_1 = arith.constant 0 : i32
    return %arg0, %arg1, %c0_i32, %c0_i32_0 : i32, i32, i32, i32
  }
}

module attributes {stable_mosaic.version = 11 : i64} {
  func.func @_conv_relu_pool_kernel(%arg0: i32, %arg1: i32, %arg2: memref<1x18x18x32xf32, #tpu.memory_space<vmem>>, %arg3: memref<3x3x32x64xf32, #tpu.memory_space<vmem>>, %arg4: memref<1x64xf32, #tpu.memory_space<vmem>>, %arg5: memref<1x4x8x64xf32, #tpu.memory_space<vmem>>, %arg6: memref<4x16x64xf32, #tpu.memory_space<vmem>>) attributes {dimension_semantics = [#tpu.dimension_semantics<parallel>, #tpu.dimension_semantics<parallel>], iteration_bounds = array<i64: 2, 2>, scalar_prefetch = 0 : i64, scratch_operands = 1 : i64, tpu.core_type = #tpu.core_type<tc>, window_params = [{transform_indices = @transform_0, window_bounds = array<i64: 1, 18, 18, 32>}, {pipeline_mode = #tpu.pipeline_mode<synchronous>, transform_indices = @transform_1, window_bounds = array<i64: 3, 3, 32, 64>}, {pipeline_mode = #tpu.pipeline_mode<synchronous>, transform_indices = @transform_2, window_bounds = array<i64: 1, 64>}, {transform_indices = @transform_3, window_bounds = array<i64: 1, 4, 8, 64>}]} {
    %c8_i32 = arith.constant 8 : i32
    %0 = arith.muli %arg1, %c8_i32 : i32
    %1 = tpu.assume_multiple %0, 8 : i32
    %c0_i32 = arith.constant 0 : i32
    %2 = arith.addi %1, %c0_i32 : i32
    %c0 = arith.constant 0 : index
    %3 = arith.index_cast %2 : i32 to index
    %c0_0 = arith.constant 0 : index
    %c0_1 = arith.constant 0 : index
    %4 = vector.load %arg2[%c0, %3, %c0_0, %c0_1] : memref<1x18x18x32xf32, #tpu.memory_space<vmem>>, vector<1x8x16x32xf32>
    %5 = vector.shape_cast %4 : vector<1x8x16x32xf32> to vector<8x16x32xf32>
    %6 = vector.shape_cast %5 : vector<8x16x32xf32> to vector<128x32xf32>
    %c0_2 = arith.constant 0 : index
    %c0_3 = arith.constant 0 : index
    %c0_4 = arith.constant 0 : index
    %c0_5 = arith.constant 0 : index
    %7 = vector.load %arg3[%c0_2, %c0_3, %c0_4, %c0_5] : memref<3x3x32x64xf32, #tpu.memory_space<vmem>>, vector<1x1x32x64xf32>
    %8 = vector.shape_cast %7 : vector<1x1x32x64xf32> to vector<32x64xf32>
    %cst = arith.constant dense<0.000000e+00> : vector<128x64xf32>
    %9 = tpu.matmul %6, %8, %cst {dimension_numbers = #tpu.dot_dimension_numbers<[1], [0], [0], [1], [0, 0, 1, 1], [], []>} : vector<128x32xf32>, vector<32x64xf32>, vector<128x64xf32> -> vector<128x64xf32>
    %c0_i32_6 = arith.constant 0 : i32
    %10 = arith.addi %1, %c0_i32_6 : i32
    %c0_7 = arith.constant 0 : index
    %11 = arith.index_cast %10 : i32 to index
    %c1 = arith.constant 1 : index
    %c0_8 = arith.constant 0 : index
    %12 = vector.load %arg2[%c0_7, %11, %c1, %c0_8] : memref<1x18x18x32xf32, #tpu.memory_space<vmem>>, vector<1x8x16x32xf32>
    %13 = vector.shape_cast %12 : vector<1x8x16x32xf32> to vector<8x16x32xf32>
    %14 = vector.shape_cast %13 : vector<8x16x32xf32> to vector<128x32xf32>
    %c0_9 = arith.constant 0 : index
    %c1_10 = arith.constant 1 : index
    %c0_11 = arith.constant 0 : index
    %c0_12 = arith.constant 0 : index
    %15 = vector.load %arg3[%c0_9, %c1_10, %c0_11, %c0_12] : memref<3x3x32x64xf32, #tpu.memory_space<vmem>>, vector<1x1x32x64xf32>
    %16 = vector.shape_cast %15 : vector<1x1x32x64xf32> to vector<32x64xf32>
    %cst_13 = arith.constant dense<0.000000e+00> : vector<128x64xf32>
    %17 = tpu.matmul %14, %16, %cst_13 {dimension_numbers = #tpu.dot_dimension_numbers<[1], [0], [0], [1], [0, 0, 1, 1], [], []>} : vector<128x32xf32>, vector<32x64xf32>, vector<128x64xf32> -> vector<128x64xf32>
    %18 = arith.addf %9, %17 : vector<128x64xf32>
    %c0_i32_14 = arith.constant 0 : i32
    %19 = arith.addi %1, %c0_i32_14 : i32
    %c0_15 = arith.constant 0 : index
    %20 = arith.index_cast %19 : i32 to index
    %c2 = arith.constant 2 : index
    %c0_16 = arith.constant 0 : index
    %21 = vector.load %arg2[%c0_15, %20, %c2, %c0_16] : memref<1x18x18x32xf32, #tpu.memory_space<vmem>>, vector<1x8x16x32xf32>
    %22 = vector.shape_cast %21 : vector<1x8x16x32xf32> to vector<8x16x32xf32>
    %23 = vector.shape_cast %22 : vector<8x16x32xf32> to vector<128x32xf32>
    %c0_17 = arith.constant 0 : index
    %c2_18 = arith.constant 2 : index
    %c0_19 = arith.constant 0 : index
    %c0_20 = arith.constant 0 : index
    %24 = vector.load %arg3[%c0_17, %c2_18, %c0_19, %c0_20] : memref<3x3x32x64xf32, #tpu.memory_space<vmem>>, vector<1x1x32x64xf32>
    %25 = vector.shape_cast %24 : vector<1x1x32x64xf32> to vector<32x64xf32>
    %cst_21 = arith.constant dense<0.000000e+00> : vector<128x64xf32>
    %26 = tpu.matmul %23, %25, %cst_21 {dimension_numbers = #tpu.dot_dimension_numbers<[1], [0], [0], [1], [0, 0, 1, 1], [], []>} : vector<128x32xf32>, vector<32x64xf32>, vector<128x64xf32> -> vector<128x64xf32>
    %27 = arith.addf %18, %26 : vector<128x64xf32>
    %c1_i32 = arith.constant 1 : i32
    %28 = arith.addi %1, %c1_i32 : i32
    %c0_22 = arith.constant 0 : index
    %29 = arith.index_cast %28 : i32 to index
    %c0_23 = arith.constant 0 : index
    %c0_24 = arith.constant 0 : index
    %30 = vector.load %arg2[%c0_22, %29, %c0_23, %c0_24] : memref<1x18x18x32xf32, #tpu.memory_space<vmem>>, vector<1x8x16x32xf32>
    %31 = vector.shape_cast %30 : vector<1x8x16x32xf32> to vector<8x16x32xf32>
    %32 = vector.shape_cast %31 : vector<8x16x32xf32> to vector<128x32xf32>
    %c1_25 = arith.constant 1 : index
    %c0_26 = arith.constant 0 : index
    %c0_27 = arith.constant 0 : index
    %c0_28 = arith.constant 0 : index
    %33 = vector.load %arg3[%c1_25, %c0_26, %c0_27, %c0_28] : memref<3x3x32x64xf32, #tpu.memory_space<vmem>>, vector<1x1x32x64xf32>
    %34 = vector.shape_cast %33 : vector<1x1x32x64xf32> to vector<32x64xf32>
    %cst_29 = arith.constant dense<0.000000e+00> : vector<128x64xf32>
    %35 = tpu.matmul %32, %34, %cst_29 {dimension_numbers = #tpu.dot_dimension_numbers<[1], [0], [0], [1], [0, 0, 1, 1], [], []>} : vector<128x32xf32>, vector<32x64xf32>, vector<128x64xf32> -> vector<128x64xf32>
    %36 = arith.addf %27, %35 : vector<128x64xf32>
    %c1_i32_30 = arith.constant 1 : i32
    %37 = arith.addi %1, %c1_i32_30 : i32
    %c0_31 = arith.constant 0 : index
    %38 = arith.index_cast %37 : i32 to index
    %c1_32 = arith.constant 1 : index
    %c0_33 = arith.constant 0 : index
    %39 = vector.load %arg2[%c0_31, %38, %c1_32, %c0_33] : memref<1x18x18x32xf32, #tpu.memory_space<vmem>>, vector<1x8x16x32xf32>
    %40 = vector.shape_cast %39 : vector<1x8x16x32xf32> to vector<8x16x32xf32>
    %41 = vector.shape_cast %40 : vector<8x16x32xf32> to vector<128x32xf32>
    %c1_34 = arith.constant 1 : index
    %c1_35 = arith.constant 1 : index
    %c0_36 = arith.constant 0 : index
    %c0_37 = arith.constant 0 : index
    %42 = vector.load %arg3[%c1_34, %c1_35, %c0_36, %c0_37] : memref<3x3x32x64xf32, #tpu.memory_space<vmem>>, vector<1x1x32x64xf32>
    %43 = vector.shape_cast %42 : vector<1x1x32x64xf32> to vector<32x64xf32>
    %cst_38 = arith.constant dense<0.000000e+00> : vector<128x64xf32>
    %44 = tpu.matmul %41, %43, %cst_38 {dimension_numbers = #tpu.dot_dimension_numbers<[1], [0], [0], [1], [0, 0, 1, 1], [], []>} : vector<128x32xf32>, vector<32x64xf32>, vector<128x64xf32> -> vector<128x64xf32>
    %45 = arith.addf %36, %44 : vector<128x64xf32>
    %c1_i32_39 = arith.constant 1 : i32
    %46 = arith.addi %1, %c1_i32_39 : i32
    %c0_40 = arith.constant 0 : index
    %47 = arith.index_cast %46 : i32 to index
    %c2_41 = arith.constant 2 : index
    %c0_42 = arith.constant 0 : index
    %48 = vector.load %arg2[%c0_40, %47, %c2_41, %c0_42] : memref<1x18x18x32xf32, #tpu.memory_space<vmem>>, vector<1x8x16x32xf32>
    %49 = vector.shape_cast %48 : vector<1x8x16x32xf32> to vector<8x16x32xf32>
    %50 = vector.shape_cast %49 : vector<8x16x32xf32> to vector<128x32xf32>
    %c1_43 = arith.constant 1 : index
    %c2_44 = arith.constant 2 : index
    %c0_45 = arith.constant 0 : index
    %c0_46 = arith.constant 0 : index
    %51 = vector.load %arg3[%c1_43, %c2_44, %c0_45, %c0_46] : memref<3x3x32x64xf32, #tpu.memory_space<vmem>>, vector<1x1x32x64xf32>
    %52 = vector.shape_cast %51 : vector<1x1x32x64xf32> to vector<32x64xf32>
    %cst_47 = arith.constant dense<0.000000e+00> : vector<128x64xf32>
    %53 = tpu.matmul %50, %52, %cst_47 {dimension_numbers = #tpu.dot_dimension_numbers<[1], [0], [0], [1], [0, 0, 1, 1], [], []>} : vector<128x32xf32>, vector<32x64xf32>, vector<128x64xf32> -> vector<128x64xf32>
    %54 = arith.addf %45, %53 : vector<128x64xf32>
    %c2_i32 = arith.constant 2 : i32
    %55 = arith.addi %1, %c2_i32 : i32
    %c0_48 = arith.constant 0 : index
    %56 = arith.index_cast %55 : i32 to index
    %c0_49 = arith.constant 0 : index
    %c0_50 = arith.constant 0 : index
    %57 = vector.load %arg2[%c0_48, %56, %c0_49, %c0_50] : memref<1x18x18x32xf32, #tpu.memory_space<vmem>>, vector<1x8x16x32xf32>
    %58 = vector.shape_cast %57 : vector<1x8x16x32xf32> to vector<8x16x32xf32>
    %59 = vector.shape_cast %58 : vector<8x16x32xf32> to vector<128x32xf32>
    %c2_51 = arith.constant 2 : index
    %c0_52 = arith.constant 0 : index
    %c0_53 = arith.constant 0 : index
    %c0_54 = arith.constant 0 : index
    %60 = vector.load %arg3[%c2_51, %c0_52, %c0_53, %c0_54] : memref<3x3x32x64xf32, #tpu.memory_space<vmem>>, vector<1x1x32x64xf32>
    %61 = vector.shape_cast %60 : vector<1x1x32x64xf32> to vector<32x64xf32>
    %cst_55 = arith.constant dense<0.000000e+00> : vector<128x64xf32>
    %62 = tpu.matmul %59, %61, %cst_55 {dimension_numbers = #tpu.dot_dimension_numbers<[1], [0], [0], [1], [0, 0, 1, 1], [], []>} : vector<128x32xf32>, vector<32x64xf32>, vector<128x64xf32> -> vector<128x64xf32>
    %63 = arith.addf %54, %62 : vector<128x64xf32>
    %c2_i32_56 = arith.constant 2 : i32
    %64 = arith.addi %1, %c2_i32_56 : i32
    %c0_57 = arith.constant 0 : index
    %65 = arith.index_cast %64 : i32 to index
    %c1_58 = arith.constant 1 : index
    %c0_59 = arith.constant 0 : index
    %66 = vector.load %arg2[%c0_57, %65, %c1_58, %c0_59] : memref<1x18x18x32xf32, #tpu.memory_space<vmem>>, vector<1x8x16x32xf32>
    %67 = vector.shape_cast %66 : vector<1x8x16x32xf32> to vector<8x16x32xf32>
    %68 = vector.shape_cast %67 : vector<8x16x32xf32> to vector<128x32xf32>
    %c2_60 = arith.constant 2 : index
    %c1_61 = arith.constant 1 : index
    %c0_62 = arith.constant 0 : index
    %c0_63 = arith.constant 0 : index
    %69 = vector.load %arg3[%c2_60, %c1_61, %c0_62, %c0_63] : memref<3x3x32x64xf32, #tpu.memory_space<vmem>>, vector<1x1x32x64xf32>
    %70 = vector.shape_cast %69 : vector<1x1x32x64xf32> to vector<32x64xf32>
    %cst_64 = arith.constant dense<0.000000e+00> : vector<128x64xf32>
    %71 = tpu.matmul %68, %70, %cst_64 {dimension_numbers = #tpu.dot_dimension_numbers<[1], [0], [0], [1], [0, 0, 1, 1], [], []>} : vector<128x32xf32>, vector<32x64xf32>, vector<128x64xf32> -> vector<128x64xf32>
    %72 = arith.addf %63, %71 : vector<128x64xf32>
    %c2_i32_65 = arith.constant 2 : i32
    %73 = arith.addi %1, %c2_i32_65 : i32
    %c0_66 = arith.constant 0 : index
    %74 = arith.index_cast %73 : i32 to index
    %c2_67 = arith.constant 2 : index
    %c0_68 = arith.constant 0 : index
    %75 = vector.load %arg2[%c0_66, %74, %c2_67, %c0_68] : memref<1x18x18x32xf32, #tpu.memory_space<vmem>>, vector<1x8x16x32xf32>
    %76 = vector.shape_cast %75 : vector<1x8x16x32xf32> to vector<8x16x32xf32>
    %77 = vector.shape_cast %76 : vector<8x16x32xf32> to vector<128x32xf32>
    %c2_69 = arith.constant 2 : index
    %c2_70 = arith.constant 2 : index
    %c0_71 = arith.constant 0 : index
    %c0_72 = arith.constant 0 : index
    %78 = vector.load %arg3[%c2_69, %c2_70, %c0_71, %c0_72] : memref<3x3x32x64xf32, #tpu.memory_space<vmem>>, vector<1x1x32x64xf32>
    %79 = vector.shape_cast %78 : vector<1x1x32x64xf32> to vector<32x64xf32>
    %cst_73 = arith.constant dense<0.000000e+00> : vector<128x64xf32>
    %80 = tpu.matmul %77, %79, %cst_73 {dimension_numbers = #tpu.dot_dimension_numbers<[1], [0], [0], [1], [0, 0, 1, 1], [], []>} : vector<128x32xf32>, vector<32x64xf32>, vector<128x64xf32> -> vector<128x64xf32>
    %81 = arith.addf %72, %80 : vector<128x64xf32>
    %c0_74 = arith.constant 0 : index
    %c0_75 = arith.constant 0 : index
    %82 = vector.load %arg4[%c0_74, %c0_75] : memref<1x64xf32, #tpu.memory_space<vmem>>, vector<1x64xf32>
    %83 = vector.broadcast %82 : vector<1x64xf32> to vector<128x64xf32>
    %84 = arith.addf %81, %83 : vector<128x64xf32>
    %cst_76 = arith.constant 0.000000e+00 : f32
    %85 = vector.broadcast %cst_76 : f32 to vector<128x64xf32>
    %86 = arith.maximumf %84, %85 : vector<128x64xf32>
    %87 = vector.shape_cast %86 : vector<128x64xf32> to vector<4x2x16x64xf32>
    %cst_77 = arith.constant dense<0xFF800000> : vector<4x16x64xf32>
    %88 = vector.multi_reduction <maximumf>, %87, %cst_77 [1] : vector<4x2x16x64xf32> to vector<4x16x64xf32>
    %c0_78 = arith.constant 0 : index
    %c0_79 = arith.constant 0 : index
    %c0_80 = arith.constant 0 : index
    %89 = vector.load %arg6[%c0_78, %c0_79, %c0_80] : memref<4x16x64xf32, #tpu.memory_space<vmem>>, vector<4x16x64xf32>
    tpu.vector_store %arg6[%c0_78, %c0_79, %c0_80], %88 {strides = array<i32>} : memref<4x16x64xf32, #tpu.memory_space<vmem>>, vector<4x16x64xf32>,
    %c0_81 = arith.constant 0 : index
    %c0_82 = arith.constant 0 : index
    %c0_83 = arith.constant 0 : index
    %90 = tpu.strided_load %arg6[%c0_81, %c0_82, %c0_83] {strides = array<i32: 1, 2, 1>} : memref<4x16x64xf32, #tpu.memory_space<vmem>>, vector<4x8x64xf32>
    %c0_84 = arith.constant 0 : index
    %c1_85 = arith.constant 1 : index
    %c0_86 = arith.constant 0 : index
    %91 = tpu.strided_load %arg6[%c0_84, %c1_85, %c0_86] {strides = array<i32: 1, 2, 1>} : memref<4x16x64xf32, #tpu.memory_space<vmem>>, vector<4x8x64xf32>
    %92 = arith.maximumf %90, %91 : vector<4x8x64xf32>
    %93 = vector.shape_cast %92 : vector<4x8x64xf32> to vector<1x4x8x64xf32>
    %c0_87 = arith.constant 0 : index
    %c0_88 = arith.constant 0 : index
    %c0_89 = arith.constant 0 : index
    %c0_90 = arith.constant 0 : index
    %94 = vector.load %arg5[%c0_87, %c0_88, %c0_89, %c0_90] : memref<1x4x8x64xf32, #tpu.memory_space<vmem>>, vector<1x4x8x64xf32>
    tpu.vector_store %arg5[%c0_87, %c0_88, %c0_89, %c0_90], %93 {strides = array<i32>} : memref<1x4x8x64xf32, #tpu.memory_space<vmem>>, vector<1x4x8x64xf32>,
    return
  }
  func.func @transform_0(%arg0: i32, %arg1: i32) -> (i32, i32, i32, i32) {
    %c0_i32 = arith.constant 0 : i32
    %c0_i32_0 = arith.constant 0 : i32
    %c0_i32_1 = arith.constant 0 : i32
    %c0_i32_2 = arith.constant 0 : i32
    return %arg0, %c0_i32, %c0_i32_0, %c0_i32_1 : i32, i32, i32, i32
  }
  func.func @transform_1(%arg0: i32, %arg1: i32) -> (i32, i32, i32, i32) {
    %c0_i32 = arith.constant 0 : i32
    %c0_i32_0 = arith.constant 0 : i32
    %c0_i32_1 = arith.constant 0 : i32
    %c0_i32_2 = arith.constant 0 : i32
    %c0_i32_3 = arith.constant 0 : i32
    return %c0_i32, %c0_i32_0, %c0_i32_1, %c0_i32_2 : i32, i32, i32, i32
  }
  func.func @transform_2(%arg0: i32, %arg1: i32) -> (i32, i32) {
    %c0_i32 = arith.constant 0 : i32
    %c0_i32_0 = arith.constant 0 : i32
    %c0_i32_1 = arith.constant 0 : i32
    return %c0_i32, %c0_i32_0 : i32, i32
  }
  func.func @transform_3(%arg0: i32, %arg1: i32) -> (i32, i32, i32, i32) {
    %c0_i32 = arith.constant 0 : i32
    %c0_i32_0 = arith.constant 0 : i32
    %c0_i32_1 = arith.constant 0 : i32
    return %arg0, %arg1, %c0_i32, %c0_i32_0 : i32, i32, i32, i32
  }
}

module attributes {stable_mosaic.version = 11 : i64} {
  func.func @_fc_head_kernel(%arg0: i32, %arg1: memref<2x4096xf32, #tpu.memory_space<vmem>>, %arg2: memref<4096x256xf32, #tpu.memory_space<vmem>>, %arg3: memref<1x256xf32, #tpu.memory_space<vmem>>, %arg4: memref<256x128xf32, #tpu.memory_space<vmem>>, %arg5: memref<1x128xf32, #tpu.memory_space<vmem>>, %arg6: memref<2x128xf32, #tpu.memory_space<vmem>>) attributes {dimension_semantics = [#tpu.dimension_semantics<arbitrary>], iteration_bounds = array<i64: 1>, scalar_prefetch = 0 : i64, scratch_operands = 0 : i64, tpu.core_type = #tpu.core_type<tc>, window_params = [{pipeline_mode = #tpu.pipeline_mode<synchronous>, transform_indices = @transform_0, window_bounds = array<i64: 2, 4096>}, {pipeline_mode = #tpu.pipeline_mode<synchronous>, transform_indices = @transform_1, window_bounds = array<i64: 4096, 256>}, {pipeline_mode = #tpu.pipeline_mode<synchronous>, transform_indices = @transform_2, window_bounds = array<i64: 1, 256>}, {pipeline_mode = #tpu.pipeline_mode<synchronous>, transform_indices = @transform_3, window_bounds = array<i64: 256, 128>}, {pipeline_mode = #tpu.pipeline_mode<synchronous>, transform_indices = @transform_4, window_bounds = array<i64: 1, 128>}, {pipeline_mode = #tpu.pipeline_mode<synchronous>, transform_indices = @transform_5, window_bounds = array<i64: 2, 128>}]} {
    %c0 = arith.constant 0 : index
    %c0_0 = arith.constant 0 : index
    %0 = vector.load %arg1[%c0, %c0_0] : memref<2x4096xf32, #tpu.memory_space<vmem>>, vector<2x4096xf32>
    %c0_1 = arith.constant 0 : index
    %c0_2 = arith.constant 0 : index
    %1 = vector.load %arg2[%c0_1, %c0_2] : memref<4096x256xf32, #tpu.memory_space<vmem>>, vector<4096x256xf32>
    %cst = arith.constant dense<0.000000e+00> : vector<2x256xf32>
    %2 = tpu.matmul %0, %1, %cst {dimension_numbers = #tpu.dot_dimension_numbers<[1], [0], [0], [1], [0, 0, 1, 1], [], []>} : vector<2x4096xf32>, vector<4096x256xf32>, vector<2x256xf32> -> vector<2x256xf32>
    %c0_3 = arith.constant 0 : index
    %c0_4 = arith.constant 0 : index
    %3 = vector.load %arg3[%c0_3, %c0_4] : memref<1x256xf32, #tpu.memory_space<vmem>>, vector<1x256xf32>
    %4 = vector.broadcast %3 : vector<1x256xf32> to vector<2x256xf32>
    %5 = arith.addf %2, %4 : vector<2x256xf32>
    %cst_5 = arith.constant 0.000000e+00 : f32
    %6 = vector.broadcast %cst_5 : f32 to vector<2x256xf32>
    %7 = arith.maximumf %5, %6 : vector<2x256xf32>
    %c0_6 = arith.constant 0 : index
    %c0_7 = arith.constant 0 : index
    %8 = vector.load %arg4[%c0_6, %c0_7] : memref<256x128xf32, #tpu.memory_space<vmem>>, vector<256x128xf32>
    %cst_8 = arith.constant dense<0.000000e+00> : vector<2x128xf32>
    %9 = tpu.matmul %7, %8, %cst_8 {dimension_numbers = #tpu.dot_dimension_numbers<[1], [0], [0], [1], [0, 0, 1, 1], [], []>} : vector<2x256xf32>, vector<256x128xf32>, vector<2x128xf32> -> vector<2x128xf32>
    %c0_9 = arith.constant 0 : index
    %c0_10 = arith.constant 0 : index
    %10 = vector.load %arg5[%c0_9, %c0_10] : memref<1x128xf32, #tpu.memory_space<vmem>>, vector<1x128xf32>
    %11 = vector.broadcast %10 : vector<1x128xf32> to vector<2x128xf32>
    %12 = arith.addf %9, %11 : vector<2x128xf32>
    %c0_11 = arith.constant 0 : index
    %c0_12 = arith.constant 0 : index
    %13 = vector.load %arg6[%c0_11, %c0_12] : memref<2x128xf32, #tpu.memory_space<vmem>>, vector<2x128xf32>
    tpu.vector_store %arg6[%c0_11, %c0_12], %12 {strides = array<i32>} : memref<2x128xf32, #tpu.memory_space<vmem>>, vector<2x128xf32>,
    return
  }
  func.func @transform_0(%arg0: i32) -> (i32, i32) {
    %c0_i32 = arith.constant 0 : i32
    %c0_i32_0 = arith.constant 0 : i32
    %c0_i32_1 = arith.constant 0 : i32
    return %c0_i32, %c0_i32_0 : i32, i32
  }
  func.func @transform_1(%arg0: i32) -> (i32, i32) {
    %c0_i32 = arith.constant 0 : i32
    %c0_i32_0 = arith.constant 0 : i32
    %c0_i32_1 = arith.constant 0 : i32
    return %c0_i32, %c0_i32_0 : i32, i32
  }
  func.func @transform_2(%arg0: i32) -> (i32, i32) {
    %c0_i32 = arith.constant 0 : i32
    %c0_i32_0 = arith.constant 0 : i32
    %c0_i32_1 = arith.constant 0 : i32
    return %c0_i32, %c0_i32_0 : i32, i32
  }
  func.func @transform_3(%arg0: i32) -> (i32, i32) {
    %c0_i32 = arith.constant 0 : i32
    %c0_i32_0 = arith.constant 0 : i32
    %c0_i32_1 = arith.constant 0 : i32
    return %c0_i32, %c0_i32_0 : i32, i32
  }
  func.func @transform_4(%arg0: i32) -> (i32, i32) {
    %c0_i32 = arith.constant 0 : i32
    %c0_i32_0 = arith.constant 0 : i32
    %c0_i32_1 = arith.constant 0 : i32
    return %c0_i32, %c0_i32_0 : i32, i32
  }
  func.func @transform_5(%arg0: i32) -> (i32, i32) {
    %c0_i32 = arith.constant 0 : i32
    %c0_i32_0 = arith.constant 0 : i32
    %c0_i32_1 = arith.constant 0 : i32
    return %c0_i32, %c0_i32_0 : i32, i32
  }
}

</mosaic_0001>

<llo_original>
// kernel: shallow_cnn_forward.3
$region0: #{shallow_cnn_forward.3}
  #allocation0 [shape = 'u32[]', space=smem, size = 0x4, offset = 0x4, fixed_abs, tag = 'smem constant byte address 0x4 - core index']
  #allocation1 [shape = 'u32[144,128]{1,0:T(1,128)}', space=vmem, size = 0x12000, scoped, tag = 'internal scratch']
  #allocation2 [shape = 'f32[4,32,32]{2,1,0:T(8,128)}', space=vmem, size = 0x10000, scoped, tag = 'scratch operand']
  %s0 = inlined_call_operand.vmem [shape: f32[2,32,32,27], index: 0, kind: input, shape index: {}]
  %s1 = inlined_call_operand.vmem [shape: f32[1,1,27,32], index: 1, kind: input, shape index: {}]
  %s2 = inlined_call_operand.vmem [shape: f32[1,32], index: 2, kind: input, shape index: {}]
  %s3 = inlined_call_operand.vmem [shape: f32[2,16,16,32], index: 3, kind: output, shape index: {}]
  %s4 = sld [smem:[#allocation0]]
  $region45: #{shallow_cnn_forward.3} parent=0
    _
  %s6 = ssub.s32 1, %s4
  %s7 = scalar_select 0, %s6, %s4
  loop: start=0, step=1, limit=10
  $region2: #{shallow_cnn_forward.3} parent=0 // loop_pre_header
    _
  $region3: #{shallow_cnn_forward.3} parent=0 // loop_header
    %s9 = sphi 0, %s13
    %p10 = scmp.ge.s32.totalorder %s9, 10
    %s16 = sphi 0, %s28
    %s17 = sphi 0, %s24
    %s18 = sphi 0, %s16
    %s19 = sphi 0, %s17
    %s20 = sphi 0, %s18
    %s21 = sphi 0, %s19
    %s31 = sphi 0, %s33
    %s34 = sphi 0, %s31
    %s35 = sphi 0, %s34
    %s51 = sphi 0, %s35
    %s55 = sphi 0, %s55
    %s57 = sphi 0, %s55
    %s58 = sphi 0, %s57
    %s72 = sphi 0, %s58
    %s76 = sphi 0, %s76
    %s78 = sphi 0, %s76
    %s79 = sphi 0, %s78
    %s93 = sphi 0, %s79
    %s101 = sphi 0, %s103
    %s104 = sphi 0, %s101
    %s105 = sphi 0, %s104
    %s121 = sphi 0, %s105
  $region4: #{shallow_cnn_forward.3} parent=0 // loop_header_branch
    %12 = sbr.rel (%p10) target = $region8
  $region5: #{shallow_cnn_forward.3} parent=0 // loop_body
    %s14 = ssub.s32 %s9, 1
    %s15 = ssub.s32 %s9, 2
    %s22 = sadd.s32 1, %s17
    %p23 = scmp.ge.s32.totalorder %s22, 4
    %s24 = scalar_select %p23, 0, %s22
    %s25 = sadd.s32 1, %s16
    %s26 = scalar_select %p23, %s25, %s16
    %p27 = scmp.ge.s32.totalorder %s26, 2
    %s28 = scalar_select %p27, 0, %s26
    %s29 = ssub.s32 %s16, %s28
    %p30 = scmp.eq.s32.totalorder %s29, 0
    %s32 = sadd.s32 %s31, 1
    %s33 = scalar_select %p30, %s31, %s32
    %p36 = pneg %p30
    %p37 = scmp.eq.s32.totalorder %s9, 7
    %p38 = por %p36, %p37
    %p39 = scmp.ne.s32.totalorder %s31, %s34
    %p40 = scmp.eq.s32.totalorder %s9, 0
    %p41 = por %p39, %p40
    %p42 = scmp.ne.s32.totalorder %s31, %s34
    %p43 = scmp.eq.s32.totalorder %s14, 7
    %p44 = por %p42, %p43
    %p45 = scmp.ne.s32.totalorder %s34, %s35
    %p46 = scmp.eq.s32.totalorder %s14, 0
    %p47 = por %p45, %p46
    %p48 = scmp.ne.s32.totalorder %s34, %s35
    %p49 = scmp.eq.s32.totalorder %s15, 7
    %p50 = por %p48, %p49
    %p52 = scmp.ne.s32.totalorder %s35, %s51
    %p53 = scmp.eq.s32.totalorder %s15, 0
    %p54 = por %p52, %p53
    %s56 = sadd.s32 %s55, 1
    %p59 = scmp.eq.s32.totalorder %s9, 7
    %p60 = scmp.ne.s32.totalorder %s55, %s57
    %p61 = scmp.eq.s32.totalorder %s9, 0
    %p62 = por %p60, %p61
    %p63 = scmp.ne.s32.totalorder %s55, %s57
    %p64 = scmp.eq.s32.totalorder %s14, 7
    %p65 = por %p63, %p64
    %p66 = scmp.ne.s32.totalorder %s57, %s58
    %p67 = scmp.eq.s32.totalorder %s14, 0
    %p68 = por %p66, %p67
    %p69 = scmp.ne.s32.totalorder %s57, %s58
    %p70 = scmp.eq.s32.totalorder %s15, 7
    %p71 = por %p69, %p70
    %p73 = scmp.ne.s32.totalorder %s58, %s72
    %p74 = scmp.eq.s32.totalorder %s15, 0
    %p75 = por %p73, %p74
    %s77 = sadd.s32 %s76, 1
    %p80 = scmp.eq.s32.totalorder %s9, 7
    %p81 = scmp.ne.s32.totalorder %s76, %s78
    %p82 = scmp.eq.s32.totalorder %s9, 0
    %p83 = por %p81, %p82
    %p84 = scmp.ne.s32.totalorder %s76, %s78
    %p85 = scmp.eq.s32.totalorder %s14, 7
    %p86 = por %p84, %p85
    %p87 = scmp.ne.s32.totalorder %s78, %s79
    %p88 = scmp.eq.s32.totalorder %s14, 0
    %p89 = por %p87, %p88
    %p90 = scmp.ne.s32.totalorder %s78, %s79
    %p91 = scmp.eq.s32.totalorder %s15, 7
    %p92 = por %p90, %p91
    %p94 = scmp.ne.s32.totalorder %s79, %s93
    %p95 = scmp.eq.s32.totalorder %s15, 0
    %p96 = por %p94, %p95
    %s97 = ssub.s32 %s16, %s28
    %s98 = ssub.s32 %s17, %s24
    %s99 = sor.u32 %s97, %s98
    %p100 = scmp.eq.s32.totalorder %s99, 0
    %s102 = sadd.s32 %s101, 1
    %s103 = scalar_select %p100, %s101, %s102
    %p106 = pneg %p100
    %p107 = scmp.eq.s32.totalorder %s9, 7
    %p108 = por %p106, %p107
    %p109 = scmp.ne.s32.totalorder %s101, %s104
    %p110 = scmp.eq.s32.totalorder %s9, 0
    %p111 = por %p109, %p110
    %p112 = scmp.ne.s32.totalorder %s101, %s104
    %p113 = scmp.eq.s32.totalorder %s14, 7
    %p114 = por %p112, %p113
    %p115 = scmp.ne.s32.totalorder %s104, %s105
    %p116 = scmp.eq.s32.totalorder %s14, 0
    %p117 = por %p115, %p116
    %p118 = scmp.ne.s32.totalorder %s104, %s105
    %p119 = scmp.eq.s32.totalorder %s15, 7
    %p120 = por %p118, %p119
    %p122 = scmp.ne.s32.totalorder %s105, %s121
    %p123 = scmp.eq.s32.totalorder %s15, 0
    %p124 = por %p122, %p123
    %p125 = scmp.le.s32.totalorder 1, %s9
    %p126 = scmp.lt.s32.totalorder %s9, 9
    %p127 = pnand %p125, %p126
    %p128 = pneg %p127
    // Predicated region
    $region9: #{shallow_cnn_forward.3} parent=5 // pred_check
      _
    $region10: #{shallow_cnn_forward.3} parent=5 // pred_check_branch
      %130 = sbr.rel (%p127) target = $region12
    $region11: #{shallow_cnn_forward.3} parent=5 // pred_region
      %s131 = ssub.s32 %s9, 1
      // Predicated region
      $region13: #{shallow_cnn_forward.3} parent=11 // pred_check
        %p132 = pneg %p68
      $region14: #{shallow_cnn_forward.3} parent=11 // pred_check_branch
        %134 = sbr.rel (%p132) target = $region16
      $region15: #{shallow_cnn_forward.3} parent=11 // pred_region
        _
      $region16: #{shallow_cnn_forward.3} parent=11 // pred_fallthru
        _
      // Predicated region
      $region17: #{shallow_cnn_forward.3} parent=11 // pred_check
        %p135 = pneg %p89
      $region18: #{shallow_cnn_forward.3} parent=11 // pred_check_branch
        %137 = sbr.rel (%p135) target = $region20
      $region19: #{shallow_cnn_forward.3} parent=11 // pred_region
        _
      $region20: #{shallow_cnn_forward.3} parent=11 // pred_fallthru
        _
    $region12: #{shallow_cnn_forward.3} parent=5 // pred_fallthru
      _
    %p138 = scmp.lt.s32.totalorder %s9, 8
    // Predicated region
    $region21: #{shallow_cnn_forward.3} parent=5 // pred_check
      %p139 = pneg %p138
    $region22: #{shallow_cnn_forward.3} parent=5 // pred_check_branch
      %141 = sbr.rel (%p139) target = $region24
    $region23: #{shallow_cnn_forward.3} parent=5 // pred_region
      // Predicated region
      $region25: #{shallow_cnn_forward.3} parent=23 // pred_check
        %p142 = pneg %p41
      $region26: #{shallow_cnn_forward.3} parent=23 // pred_check_branch
        %144 = sbr.rel (%p142) target = $region28
      $region27: #{shallow_cnn_forward.3} parent=23 // pred_region
        %p145 = scmp.lt.s32.totalorder %s16, 1
        %s146 = scalar_select %p145, %s16, 1
        %s147 = smul.addr %s146, 128
        %s148 = smul.addr %s147, 8
        %s149 = scalar_lea.vmem %s0, %s148
      $region28: #{shallow_cnn_forward.3} parent=23 // pred_fallthru
        _
    $region24: #{shallow_cnn_forward.3} parent=5 // pred_fallthru
      _
    %p150 = scmp.le.s32.totalorder 1, %s9
    %p151 = scmp.lt.s32.totalorder %s9, 9
    %p152 = pnand %p150, %p151
    %p153 = pneg %p152
    // Predicated region
    $region29: #{shallow_cnn_forward.3} parent=5 // pred_check
      _
    $region30: #{shallow_cnn_forward.3} parent=5 // pred_check_branch
      %155 = sbr.rel (%p152) target = $region32
    $region31: #{shallow_cnn_forward.3} parent=5 // pred_region
      %s156 = ssub.s32 %s9, 1
      %p157 = scmp.lt.s32.totalorder %s18, 1
      %s158 = scalar_select %p157, %s18, 1
      %s159 = smul.addr %s158, 128
      %s160 = smul.addr %s159, 8
      %s161 = scalar_lea.vmem %s0, %s160
      %p162 = pneg %p47
      %p163 = pneg %p44
      %p164 = pneg %p68
      %p165 = pneg %p65
      %p166 = pneg %p89
      %p167 = pneg %p86
      %p168 = pneg %p117
      %p169 = pneg %p114
      %s170 = smul.u32 4, %s19
      %p171 = scmp.lt.s32.totalorder %s18, 1
      %s172 = scalar_select %p171, %s18, 1
      %p173 = scmp.lt.s32.totalorder %s170, 15
      %s174 = scalar_select %p173, %s170, 15
      %s175 = smul.addr %s174, 2
      %s176 = smul.addr %s172, 32
      %s177 = sadd.s32 %s175, %s176
      %s178 = smul.addr %s177, 8
      %s179 = scalar_lea.vmem %s3, %s178
      %p180 = scmp.lt.s32.totalorder %s18, 1
      %s181 = scalar_select %p180, %s18, 1
      %s182 = smul.addr %s181, 128
      %s183 = smul.addr %s182, 8
      %s184 = scalar_lea.vmem %s0, %s183
      %s185 = smul.u32 4, %s19
      %p186 = scmp.lt.s32.totalorder %s18, 1
      %s187 = scalar_select %p186, %s18, 1
      %p188 = scmp.lt.s32.totalorder %s185, 15
      %s189 = scalar_select %p188, %s185, 15
      %s190 = smul.addr %s189, 2
      %s191 = smul.addr %s187, 32
      %s192 = sadd.s32 %s190, %s191
      %s193 = smul.addr %s192, 8
      %s194 = scalar_lea.vmem %s3, %s193
      %s195 = smul.u32 4, %s19
      %s196 = smul.u32 %s19, 8
      %s197 = smul.u32 %s196, 32
      %s198 = scalar_lea.vmem %s184, %s197
      %v199 = vld [vmem:[%s198] sm:$0xff]
      %v200 = vld [vmem:[%s198 + $0x8] sm:$0xff]
      %v201 = vld [vmem:[%s198 + $0x10] sm:$0xff]
      %v202 = vld [vmem:[%s198 + $0x18] sm:$0xff]
      %v203 = vld [vmem:[%s198 + $0x20] sm:$0xff]
      %v204 = vld [vmem:[%s198 + $0x28] sm:$0xff]
      %v205 = vld [vmem:[%s198 + $0x30] sm:$0xff]
      %v206 = vld [vmem:[%s198 + $0x38] sm:$0xff]
      %v207 = vld [vmem:[%s198 + $0x40] sm:$0xff]
      %v208 = vld [vmem:[%s198 + $0x48] sm:$0xff]
      %v209 = vld [vmem:[%s198 + $0x50] sm:$0xff]
      %v210 = vld [vmem:[%s198 + $0x58] sm:$0xff]
      %v211 = vld [vmem:[%s198 + $0x60] sm:$0xff]
      %v212 = vld [vmem:[%s198 + $0x68] sm:$0xff]
      %v213 = vld [vmem:[%s198 + $0x70] sm:$0xff]
      %v214 = vld [vmem:[%s198 + $0x78] sm:$0xff]
      %v215 = vld [vmem:[%s198 + $0x80] sm:$0xff]
      %v216 = vld [vmem:[%s198 + $0x88] sm:$0xff]
      %v217 = vld [vmem:[%s198 + $0x90] sm:$0xff]
      %v218 = vld [vmem:[%s198 + $0x98] sm:$0xff]
      %v219 = vld [vmem:[%s198 + $0xa0] sm:$0xff]
      %v220 = vld [vmem:[%s198 + $0xa8] sm:$0xff]
      %v221 = vld [vmem:[%s198 + $0xb0] sm:$0xff]
      %v222 = vld [vmem:[%s198 + $0xb8] sm:$0xff]
      %v223 = vld [vmem:[%s198 + $0xc0] sm:$0xff]
      %v224 = vld [vmem:[%s198 + $0xc8] sm:$0xff]
      %v225 = vld [vmem:[%s198 + $0xd0] sm:$0xff]
      %v226 = vld [vmem:[%s198 + $0xd8] sm:$0xff]
      %v227 = vld [vmem:[%s198 + $0xe0] sm:$0xff]
      %v228 = vld [vmem:[%s198 + $0xe8] sm:$0xff]
      %v229 = vld [vmem:[%s198 + $0xf0] sm:$0xff]
      %v230 = vld [vmem:[%s198 + $0xf8] sm:$0xff]
      %v231 = vld [vmem:[%s1] sm:$0xff]
      %v232 = vld [vmem:[%s1 + $0x8] sm:$0xff]
      %v233 = vld [vmem:[%s1 + $0x10] sm:$0xff]
      %v234 = vld [vmem:[%s1 + $0x18] sm:$0x7]
      %v235 = vld [vmem:[%s2] sm:$0x1]
      %v237 = vlaneseq
      %v238 = vshrl.u32 %v237, 7
      %v239 = vsub.s32 0, %v238
      %v240 = vrot.slane %v235, %v239
      %vm242 = vcmask 220160
      %v244 = vsel %vm242, %v199, 0
      %v247 = vsel %vm242, %v200, 0
      %v250 = vsel %vm242, %v201, 0
      %v253 = vsel %vm242, %v202, 0
      %v256 = vsel %vm242, %v203, 0
      %v259 = vsel %vm242, %v204, 0
      %v262 = vsel %vm242, %v205, 0
      %v265 = vsel %vm242, %v206, 0
      %v268 = vsel %vm242, %v207, 0
      %v271 = vsel %vm242, %v208, 0
      %v274 = vsel %vm242, %v209, 0
      %v277 = vsel %vm242, %v210, 0
      %v280 = vsel %vm242, %v211, 0
      %v283 = vsel %vm242, %v212, 0
      %v286 = vsel %vm242, %v213, 0
      %v289 = vsel %vm242, %v214, 0
      %v292 = vsel %vm242, %v215, 0
      %v295 = vsel %vm242, %v216, 0
      %v298 = vsel %vm242, %v217, 0
      %v301 = vsel %vm242, %v218, 0
      %v304 = vsel %vm242, %v219, 0
      %v307 = vsel %vm242, %v220, 0
      %v310 = vsel %vm242, %v221, 0
      %v313 = vsel %vm242, %v222, 0
      %v316 = vsel %vm242, %v223, 0
      %v319 = vsel %vm242, %v224, 0
      %v322 = vsel %vm242, %v225, 0
      %v325 = vsel %vm242, %v226, 0
      %v328 = vsel %vm242, %v227, 0
      %v331 = vsel %vm242, %v228, 0
      %v334 = vsel %vm242, %v229, 0
      %v337 = vsel %vm242, %v230, 0
      %vm339 = vcmask 1042432
      %v341 = vsel %vm339, %v234, 0
      %343 = vmatprep.subr.mxu0 0.0
      %344 = vmatpush1.msra.mxu0 %v231
      %345 = vmatprep.subr.mxu0 0.0
      %346 = vmatpush1.msra.mxu0 %v232
      %347 = vmatprep.subr.mxu0 0.0
      %348 = vmatpush1.msra.mxu0 %v233
      %349 = vmatprep.subr.mxu0 0.0
      %350 = vmatpush1.msra.mxu0 %v341
      %351 = vmatprep.subr.mxu0 0.0
      %352 = vmatpush1.msra.mxu0 0.0
      %353 = vmatprep.subr.mxu0 0.0
      %354 = vmatpush1.msra.mxu0 0.0
      %355 = vmatprep.subr.mxu0 0.0
      %356 = vmatpush1.msra.mxu0 0.0
      %357 = vmatprep.subr.mxu0 0.0
      %358 = vmatpush1.msra.mxu0 0.0
      %359 = vmatprep.subr.mxu0 0.0
      %360 = vmatpush1.msra.mxu0 0.0
      %361 = vmatprep.subr.mxu0 0.0
      %362 = vmatpush1.msra.mxu0 0.0
      %363 = vmatprep.subr.mxu0 0.0
      %364 = vmatpush1.msra.mxu0 0.0
      %365 = vmatprep.subr.mxu0 0.0
      %366 = vmatpush1.msra.mxu0 0.0
      %367 = vmatprep.subr.mxu0 0.0
      %368 = vmatpush1.msra.mxu0 0.0
      %369 = vmatprep.subr.mxu0 0.0
      %370 = vmatpush1.msra.mxu0 0.0
      %371 = vmatprep.subr.mxu0 0.0
      %372 = vmatpush1.msra.mxu0 0.0
      %373 = vmatprep.subr.mxu0 0.0
      %374 = vmatpush1.msra.mxu0 0.0
      %375 = vmatprep.subr.mxu0 0.0
      %376 = vmatpush1.msra.mxu0 0.0
      %377 = vmatprep.subr.mxu0 0.0
      %378 = vmatpush1.msra.mxu0 0.0
      %379 = vmatprep.subr.mxu0 0.0
      %380 = vmatpush1.msra.mxu0 0.0
      %381 = vmatprep.subr.mxu0 0.0
      %382 = vmatpush1.msra.mxu0 0.0
      %383 = vmatprep.subr.mxu0 0.0
      %384 = vmatpush1.msra.mxu0 0.0
      %385 = vmatprep.subr.mxu0 0.0
      %386 = vmatpush1.msra.mxu0 0.0
      %387 = vmatprep.subr.mxu0 0.0
      %388 = vmatpush1.msra.mxu0 0.0
      %389 = vmatprep.subr.mxu0 0.0
      %390 = vmatpush1.msra.mxu0 0.0
      %391 = vmatprep.subr.mxu0 0.0
      %392 = vmatpush1.msra.mxu0 0.0
      %393 = vmatprep.subr.mxu0 0.0
      %394 = vmatpush1.msra.mxu0 0.0
      %395 = vmatprep.subr.mxu0 0.0
      %396 = vmatpush1.msra.mxu0 0.0
      %397 = vmatprep.subr.mxu0 0.0
      %398 = vmatpush1.msra.mxu0 0.0
      %399 = vmatprep.subr.mxu0 0.0
      %400 = vmatpush1.msra.mxu0 0.0
      %401 = vmatprep.subr.mxu0 0.0
      %402 = vmatpush1.msra.mxu0 0.0
      %403 = vmatprep.subr.mxu0 0.0
      %404 = vmatpush1.msra.mxu0 0.0
      %405 = vmatprep.subr.mxu0 0.0
      %406 = vmatpush1.msra.mxu0 0.0
      %407 = vmatprep.mubr.f32.mxu0 0.0
      %408 = vmatmul.mubr.f32.gmra.mrb[0].mxu0 %v244
      %v409 = vpop.f32.mrb[0].mxu0
      %v410 = vadd.f32 %v240, %v409
      %v411 = vpop.f32.mrb[0].mxu0
      %412 = vmatprep.mubr.f32.mxu0 0.0
      %413 = vmatmul.mubr.f32.gmra.mrb[0].mxu0 %v247
      %v414 = vpop.f32.mrb[0].mxu0
      %v415 = vadd.f32 %v240, %v414
      %v416 = vpop.f32.mrb[0].mxu0
      %417 = vmatprep.mubr.f32.mxu0 0.0
      %418 = vmatmul.mubr.f32.gmra.mrb[0].mxu0 %v250
      %v419 = vpop.f32.mrb[0].mxu0
      %v420 = vadd.f32 %v240, %v419
      %v421 = vpop.f32.mrb[0].mxu0
      %422 = vmatprep.mubr.f32.mxu0 0.0
      %423 = vmatmul.mubr.f32.gmra.mrb[0].mxu0 %v253
      %v424 = vpop.f32.mrb[0].mxu0
      %v425 = vadd.f32 %v240, %v424
      %v426 = vpop.f32.mrb[0].mxu0
      %427 = vmatprep.mubr.f32.mxu0 0.0
      %428 = vmatmul.mubr.f32.gmra.mrb[0].mxu0 %v256
      %v429 = vpop.f32.mrb[0].mxu0
      %v430 = vadd.f32 %v240, %v429
      %v431 = vpop.f32.mrb[0].mxu0
      %432 = vmatprep.mubr.f32.mxu0 0.0
      %433 = vmatmul.mubr.f32.gmra.mrb[0].mxu0 %v259
      %v434 = vpop.f32.mrb[0].mxu0
      %v435 = vadd.f32 %v240, %v434
      %v436 = vpop.f32.mrb[0].mxu0
      %437 = vmatprep.mubr.f32.mxu0 0.0
      %438 = vmatmul.mubr.f32.gmra.mrb[0].mxu0 %v262
      %v439 = vpop.f32.mrb[0].mxu0
      %v440 = vadd.f32 %v240, %v439
      %v441 = vpop.f32.mrb[0].mxu0
      %442 = vmatprep.mubr.f32.mxu0 0.0
      %443 = vmatmul.mubr.f32.gmra.mrb[0].mxu0 %v265
      %v444 = vpop.f32.mrb[0].mxu0
      %v445 = vadd.f32 %v240, %v444
      %v446 = vpop.f32.mrb[0].mxu0
      %447 = vmatprep.mubr.f32.mxu0 0.0
      %448 = vmatmul.mubr.f32.gmra.mrb[0].mxu0 %v268
      %v449 = vpop.f32.mrb[0].mxu0
      %v450 = vadd.f32 %v240, %v449
      %v451 = vpop.f32.mrb[0].mxu0
      %452 = vmatprep.mubr.f32.mxu0 0.0
      %453 = vmatmul.mubr.f32.gmra.mrb[0].mxu0 %v271
      %v454 = vpop.f32.mrb[0].mxu0
      %v455 = vadd.f32 %v240, %v454
      %v456 = vpop.f32.mrb[0].mxu0
      %457 = vmatprep.mubr.f32.mxu0 0.0
      %458 = vmatmul.mubr.f32.gmra.mrb[0].mxu0 %v274
      %v459 = vpop.f32.mrb[0].mxu0
      %v460 = vadd.f32 %v240, %v459
      %v461 = vpop.f32.mrb[0].mxu0
      %462 = vmatprep.mubr.f32.mxu0 0.0
      %463 = vmatmul.mubr.f32.gmra.mrb[0].mxu0 %v277
      %v464 = vpop.f32.mrb[0].mxu0
      %v465 = vadd.f32 %v240, %v464
      %v466 = vpop.f32.mrb[0].mxu0
      %467 = vmatprep.mubr.f32.mxu0 0.0
      %468 = vmatmul.mubr.f32.gmra.mrb[0].mxu0 %v280
      %v469 = vpop.f32.mrb[0].mxu0
      %v470 = vadd.f32 %v240, %v469
      %v471 = vpop.f32.mrb[0].mxu0
      %472 = vmatprep.mubr.f32.mxu0 0.0
      %473 = vmatmul.mubr.f32.gmra.mrb[0].mxu0 %v283
      %v474 = vpop.f32.mrb[0].mxu0
      %v475 = vadd.f32 %v240, %v474
      %v476 = vpop.f32.mrb[0].mxu0
      %477 = vmatprep.mubr.f32.mxu0 0.0
      %478 = vmatmul.mubr.f32.gmra.mrb[0].mxu0 %v286
      %v479 = vpop.f32.mrb[0].mxu0
      %v480 = vadd.f32 %v240, %v479
      %v481 = vpop.f32.mrb[0].mxu0
      %482 = vmatprep.mubr.f32.mxu0 0.0
      %483 = vmatmul.mubr.f32.gmra.mrb[0].mxu0 %v289
      %v484 = vpop.f32.mrb[0].mxu0
      %v485 = vadd.f32 %v240, %v484
      %v486 = vpop.f32.mrb[0].mxu0
      %487 = vmatprep.mubr.f32.mxu0 0.0
      %488 = vmatmul.mubr.f32.gmra.mrb[0].mxu0 %v292
      %v489 = vpop.f32.mrb[0].mxu0
      %v490 = vadd.f32 %v240, %v489
      %v491 = vpop.f32.mrb[0].mxu0
      %492 = vmatprep.mubr.f32.mxu0 0.0
      %493 = vmatmul.mubr.f32.gmra.mrb[0].mxu0 %v295
      %v494 = vpop.f32.mrb[0].mxu0
      %v495 = vadd.f32 %v240, %v494
      %v496 = vpop.f32.mrb[0].mxu0
      %497 = vmatprep.mubr.f32.mxu0 0.0
      %498 = vmatmul.mubr.f32.gmra.mrb[0].mxu0 %v298
      %v499 = vpop.f32.mrb[0].mxu0
      %v500 = vadd.f32 %v240, %v499
      %v501 = vpop.f32.mrb[0].mxu0
      %502 = vmatprep.mubr.f32.mxu0 0.0
      %503 = vmatmul.mubr.f32.gmra.mrb[0].mxu0 %v301
      %v504 = vpop.f32.mrb[0].mxu0
      %v505 = vadd.f32 %v240, %v504
      %v506 = vpop.f32.mrb[0].mxu0
      %507 = vmatprep.mubr.f32.mxu0 0.0
      %508 = vmatmul.mubr.f32.gmra.mrb[0].mxu0 %v304
      %v509 = vpop.f32.mrb[0].mxu0
      %v510 = vadd.f32 %v240, %v509
      %v511 = vpop.f32.mrb[0].mxu0
      %512 = vmatprep.mubr.f32.mxu0 0.0
      %513 = vmatmul.mubr.f32.gmra.mrb[0].mxu0 %v307
      %v514 = vpop.f32.mrb[0].mxu0
      %v515 = vadd.f32 %v240, %v514
      %v516 = vpop.f32.mrb[0].mxu0
      %517 = vmatprep.mubr.f32.mxu0 0.0
      %518 = vmatmul.mubr.f32.gmra.mrb[0].mxu0 %v310
      %v519 = vpop.f32.mrb[0].mxu0
      %v520 = vadd.f32 %v240, %v519
      %v521 = vpop.f32.mrb[0].mxu0
      %522 = vmatprep.mubr.f32.mxu0 0.0
      %523 = vmatmul.mubr.f32.gmra.mrb[0].mxu0 %v313
      %v524 = vpop.f32.mrb[0].mxu0
      %v525 = vadd.f32 %v240, %v524
      %v526 = vpop.f32.mrb[0].mxu0
      %527 = vmatprep.mubr.f32.mxu0 0.0
      %528 = vmatmul.mubr.f32.gmra.mrb[0].mxu0 %v316
      %v529 = vpop.f32.mrb[0].mxu0
      %v530 = vadd.f32 %v240, %v529
      %v531 = vpop.f32.mrb[0].mxu0
      %532 = vmatprep.mubr.f32.mxu0 0.0
      %533 = vmatmul.mubr.f32.gmra.mrb[0].mxu0 %v319
      %v534 = vpop.f32.mrb[0].mxu0
      %v535 = vadd.f32 %v240, %v534
      %v536 = vpop.f32.mrb[0].mxu0
      %537 = vmatprep.mubr.f32.mxu0 0.0
      %538 = vmatmul.mubr.f32.gmra.mrb[0].mxu0 %v322
      %v539 = vpop.f32.mrb[0].mxu0
      %v540 = vadd.f32 %v240, %v539
      %v541 = vpop.f32.mrb[0].mxu0
      %542 = vmatprep.mubr.f32.mxu0 0.0
      %543 = vmatmul.mubr.f32.gmra.mrb[0].mxu0 %v325
      %v544 = vpop.f32.mrb[0].mxu0
      %v545 = vadd.f32 %v240, %v544
      %v546 = vpop.f32.mrb[0].mxu0
      %547 = vmatprep.mubr.f32.mxu0 0.0
      %548 = vmatmul.mubr.f32.gmra.mrb[0].mxu0 %v328
      %v549 = vpop.f32.mrb[0].mxu0
      %v550 = vadd.f32 %v240, %v549
      %v551 = vpop.f32.mrb[0].mxu0
      %552 = vmatprep.mubr.f32.mxu0 0.0
      %553 = vmatmul.mubr.f32.gmra.mrb[0].mxu0 %v331
      %v554 = vpop.f32.mrb[0].mxu0
      %v555 = vadd.f32 %v240, %v554
      %v556 = vpop.f32.mrb[0].mxu0
      %557 = vmatprep.mubr.f32.mxu0 0.0
      %558 = vmatmul.mubr.f32.gmra.mrb[0].mxu0 %v334
      %v559 = vpop.f32.mrb[0].mxu0
      %v560 = vadd.f32 %v240, %v559
      %v561 = vpop.f32.mrb[0].mxu0
      %562 = vmatprep.mubr.f32.mxu0 0.0
      %563 = vmatmul.mubr.f32.gmra.mrb[0].mxu0 %v337
      %v564 = vpop.f32.mrb[0].mxu0
      %v565 = vadd.f32 %v240, %v564
      %v566 = vpop.f32.mrb[0].mxu0
      %567 = vdwg.mxu0
      %v568 = vmax.f32 %v410, 0.0
      %v569 = vmax.f32 %v415, 0.0
      %v570 = vmax.f32 %v420, 0.0
      %v571 = vmax.f32 %v425, 0.0
      %v572 = vmax.f32 %v430, 0.0
      %v573 = vmax.f32 %v435, 0.0
      %v574 = vmax.f32 %v440, 0.0
      %v575 = vmax.f32 %v445, 0.0
      %v576 = vmax.f32 %v450, 0.0
      %v577 = vmax.f32 %v455, 0.0
      %v578 = vmax.f32 %v460, 0.0
      %v579 = vmax.f32 %v465, 0.0
      %v580 = vmax.f32 %v470, 0.0
      %v581 = vmax.f32 %v475, 0.0
      %v582 = vmax.f32 %v480, 0.0
      %v583 = vmax.f32 %v485, 0.0
      %v584 = vmax.f32 %v490, 0.0
      %v585 = vmax.f32 %v495, 0.0
      %v586 = vmax.f32 %v500, 0.0
      %v587 = vmax.f32 %v505, 0.0
      %v588 = vmax.f32 %v510, 0.0
      %v589 = vmax.f32 %v515, 0.0
      %v590 = vmax.f32 %v520, 0.0
      %v591 = vmax.f32 %v525, 0.0
      %v592 = vmax.f32 %v530, 0.0
      %v593 = vmax.f32 %v535, 0.0
      %v594 = vmax.f32 %v540, 0.0
      %v595 = vmax.f32 %v545, 0.0
      %v596 = vmax.f32 %v550, 0.0
      %v597 = vmax.f32 %v555, 0.0
      %v598 = vmax.f32 %v560, 0.0
      %v599 = vmax.f32 %v565, 0.0
      %vm600 = vcmask 261120
      %v601 = vsel %vm600, %v568, -inf
      %v602 = vsel %vm600, %v572, -inf
      %v603 = vmax.f32 %v601, %v602
      %v604 = vsel %vm600, %v569, -inf
      %v605 = vsel %vm600, %v573, -inf
      %v606 = vmax.f32 %v604, %v605
      %v607 = vsel %vm600, %v570, -inf
      %v608 = vsel %vm600, %v574, -inf
      %v609 = vmax.f32 %v607, %v608
      %v610 = vsel %vm600, %v571, -inf
      %v611 = vsel %vm600, %v575, -inf
      %v612 = vmax.f32 %v610, %v611
      %v613 = vsel %vm600, %v576, -inf
      %v614 = vsel %vm600, %v580, -inf
      %v615 = vmax.f32 %v613, %v614
      %v616 = vsel %vm600, %v577, -inf
      %v617 = vsel %vm600, %v581, -inf
      %v618 = vmax.f32 %v616, %v617
      %v619 = vsel %vm600, %v578, -inf
      %v620 = vsel %vm600, %v582, -inf
      %v621 = vmax.f32 %v619, %v620
      %v622 = vsel %vm600, %v579, -inf
      %v623 = vsel %vm600, %v583, -inf
      %v624 = vmax.f32 %v622, %v623
      %v625 = vsel %vm600, %v584, -inf
      %v626 = vsel %vm600, %v588, -inf
      %v627 = vmax.f32 %v625, %v626
      %v628 = vsel %vm600, %v585, -inf
      %v629 = vsel %vm600, %v589, -inf
      %v630 = vmax.f32 %v628, %v629
      %v631 = vsel %vm600, %v586, -inf
      %v632 = vsel %vm600, %v590, -inf
      %v633 = vmax.f32 %v631, %v632
      %v634 = vsel %vm600, %v587, -inf
      %v635 = vsel %vm600, %v591, -inf
      %v636 = vmax.f32 %v634, %v635
      %v637 = vsel %vm600, %v592, -inf
      %v638 = vsel %vm600, %v596, -inf
      %v639 = vmax.f32 %v637, %v638
      %v640 = vsel %vm600, %v593, -inf
      %v641 = vsel %vm600, %v597, -inf
      %v642 = vmax.f32 %v640, %v641
      %v643 = vsel %vm600, %v594, -inf
      %v644 = vsel %vm600, %v598, -inf
      %v645 = vmax.f32 %v643, %v644
      %v646 = vsel %vm600, %v595, -inf
      %v647 = vsel %vm600, %v599, -inf
      %v648 = vmax.f32 %v646, %v647
      %649 = vst.msk [vmem:[#allocation2] sm:$0xff] %vm600, %v603
      %650 = vst.msk [vmem:[#allocation2 + $0x8] sm:$0xff] %vm600, %v606
      %651 = vst.msk [vmem:[#allocation2 + $0x10] sm:$0xff] %vm600, %v609
      %652 = vst.msk [vmem:[#allocation2 + $0x18] sm:$0xff] %vm600, %v612
      %653 = vst.msk [vmem:[#allocation2 + $0x20] sm:$0xff] %vm600, %v615
      %654 = vst.msk [vmem:[#allocation2 + $0x28] sm:$0xff] %vm600, %v618
      %655 = vst.msk [vmem:[#allocation2 + $0x30] sm:$0xff] %vm600, %v621
      %656 = vst.msk [vmem:[#allocation2 + $0x38] sm:$0xff] %vm600, %v624
      %657 = vst.msk [vmem:[#allocation2 + $0x40] sm:$0xff] %vm600, %v627
      %658 = vst.msk [vmem:[#allocation2 + $0x48] sm:$0xff] %vm600, %v630
      %659 = vst.msk [vmem:[#allocation2 + $0x50] sm:$0xff] %vm600, %v633
      %660 = vst.msk [vmem:[#allocation2 + $0x58] sm:$0xff] %vm600, %v636
      %661 = vst.msk [vmem:[#allocation2 + $0x60] sm:$0xff] %vm600, %v639
      %662 = vst.msk [vmem:[#allocation2 + $0x68] sm:$0xff] %vm600, %v642
      %663 = vst.msk [vmem:[#allocation2 + $0x70] sm:$0xff] %vm600, %v645
      %664 = vst.msk [vmem:[#allocation2 + $0x78] sm:$0xff] %vm600, %v648
      %v665 = vld [vmem:[#allocation2] ss:$2 sm:$0xff]
      %s666 = scalar_lea.vmem [#allocation2], 16
      %v667 = vld [vmem:[%s666] ss:$2 sm:$0xff]
      %s668 = scalar_lea.vmem [#allocation2], 32
      %v669 = vld [vmem:[%s668] ss:$2 sm:$0xff]
      %s670 = scalar_lea.vmem [#allocation2], 48
      %v671 = vld [vmem:[%s670] ss:$2 sm:$0xff]
      %s672 = scalar_lea.vmem [#allocation2], 64
      %v673 = vld [vmem:[%s672] ss:$2 sm:$0xff]
      %s674 = scalar_lea.vmem [#allocation2], 80
      %v675 = vld [vmem:[%s674] ss:$2 sm:$0xff]
      %s676 = scalar_lea.vmem [#allocation2], 96
      %v677 = vld [vmem:[%s676] ss:$2 sm:$0xff]
      %s678 = scalar_lea.vmem [#allocation2], 112
      %v679 = vld [vmem:[%s678] ss:$2 sm:$0xff]
      %s680 = scalar_lea.vmem [#allocation2], 1
      %v681 = vld [vmem:[%s680] ss:$2 sm:$0xff]
      %s682 = scalar_lea.vmem [#allocation2], 17
      %v683 = vld [vmem:[%s682] ss:$2 sm:$0xff]
      %s684 = scalar_lea.vmem [#allocation2], 33
      %v685 = vld [vmem:[%s684] ss:$2 sm:$0xff]
      %s686 = scalar_lea.vmem [#allocation2], 49
      %v687 = vld [vmem:[%s686] ss:$2 sm:$0xff]
      %s688 = scalar_lea.vmem [#allocation2], 65
      %v689 = vld [vmem:[%s688] ss:$2 sm:$0xff]
      %s690 = scalar_lea.vmem [#allocation2], 81
      %v691 = vld [vmem:[%s690] ss:$2 sm:$0xff]
      %s692 = scalar_lea.vmem [#allocation2], 97
      %v693 = vld [vmem:[%s692] ss:$2 sm:$0xff]
      %s694 = scalar_lea.vmem [#allocation2], 113
      %v695 = vld [vmem:[%s694] ss:$2 sm:$0xff]
      %v696 = vmax.f32 %v665, %v681
      %v697 = vmax.f32 %v667, %v683
      %v698 = vmax.f32 %v669, %v685
      %v699 = vmax.f32 %v671, %v687
      %v700 = vmax.f32 %v673, %v689
      %v701 = vmax.f32 %v675, %v691
      %v702 = vmax.f32 %v677, %v693
      %v703 = vmax.f32 %v679, %v695
      %704 = vst.msk [vmem:[%s194] sm:$0xff] %vm600, %v696
      %705 = vst.msk [vmem:[%s194 + $0x8] sm:$0xff] %vm600, %v697
      %706 = vst.msk [vmem:[%s194 + $0x10] sm:$0xff] %vm600, %v698
      %707 = vst.msk [vmem:[%s194 + $0x18] sm:$0xff] %vm600, %v699
      %708 = vst.msk [vmem:[%s194 + $0x20] sm:$0xff] %vm600, %v700
      %709 = vst.msk [vmem:[%s194 + $0x28] sm:$0xff] %vm600, %v701
      %710 = vst.msk [vmem:[%s194 + $0x30] sm:$0xff] %vm600, %v702
      %711 = vst.msk [vmem:[%s194 + $0x38] sm:$0xff] %vm600, %v703
      %s712 = smul.u32 4, %s19
      %p713 = scmp.lt.s32.totalorder %s18, 1
      %s714 = scalar_select %p713, %s18, 1
      %p715 = scmp.lt.s32.totalorder %s712, 15
      %s716 = scalar_select %p715, %s712, 15
      %s717 = smul.addr %s716, 2
      %s718 = smul.addr %s714, 32
      %s719 = sadd.s32 %s717, %s718
      %s720 = smul.addr %s719, 8
      %s721 = scalar_lea.vmem %s3, %s720
      // Predicated region
      $region33: #{shallow_cnn_forward.3} parent=31 // pred_check
        %p722 = pneg %p114
      $region34: #{shallow_cnn_forward.3} parent=31 // pred_check_branch
        %724 = sbr.rel (%p722) target = $region36
      $region35: #{shallow_cnn_forward.3} parent=31 // pred_region
        %s725 = smul.u32 4, %s19
      $region36: #{shallow_cnn_forward.3} parent=31 // pred_fallthru
        _
    $region32: #{shallow_cnn_forward.3} parent=5 // pred_fallthru
      _
    %p726 = scmp.le.s32.totalorder 2, %s9
    // Predicated region
    $region37: #{shallow_cnn_forward.3} parent=5 // pred_check
      %p727 = pneg %p726
    $region38: #{shallow_cnn_forward.3} parent=5 // pred_check_branch
      %729 = sbr.rel (%p727) target = $region40
    $region39: #{shallow_cnn_forward.3} parent=5 // pred_region
      %s730 = ssub.s32 %s9, 2
      // Predicated region
      $region41: #{shallow_cnn_forward.3} parent=39 // pred_check
        %p731 = pneg %p120
      $region42: #{shallow_cnn_forward.3} parent=39 // pred_check_branch
        %733 = sbr.rel (%p731) target = $region44
      $region43: #{shallow_cnn_forward.3} parent=39 // pred_region
        %s734 = smul.u32 4, %s21
        %p735 = scmp.lt.s32.totalorder %s20, 1
        %s736 = scalar_select %p735, %s20, 1
        %p737 = scmp.lt.s32.totalorder %s734, 15
        %s738 = scalar_select %p737, %s734, 15
        %s739 = smul.addr %s738, 2
        %s740 = smul.addr %s736, 32
        %s741 = sadd.s32 %s739, %s740
        %s742 = smul.addr %s741, 8
        %s743 = scalar_lea.vmem %s3, %s742
      $region44: #{shallow_cnn_forward.3} parent=39 // pred_fallthru
        _
    $region40: #{shallow_cnn_forward.3} parent=5 // pred_fallthru
      _
  $region6: #{shallow_cnn_forward.3} parent=0 // loop_footer
    %s13 = sadd.s32 1, %s9
  $region7: #{shallow_cnn_forward.3} parent=0 // loop_footer_branch
    %8 = sbr.rel target = $region3
  $region8: #{shallow_cnn_forward.3} parent=0 // loop_exit
    _

// kernel: shallow_cnn_forward.4
$region0: #{shallow_cnn_forward.4}
  #allocation0 [shape = 'u32[]', space=smem, size = 0x4, offset = 0x4, fixed_abs, tag = 'smem constant byte address 0x4 - core index']
  #allocation1 [shape = 'u32[144,128]{1,0:T(1,128)}', space=vmem, size = 0x12000, scoped, tag = 'internal scratch']
  #allocation2 [shape = 'f32[4,16,64]{2,1,0:T(8,128)}', space=vmem, size = 0x8000, scoped, tag = 'scratch operand']
  %s0 = inlined_call_operand.vmem [shape: f32[2,18,18,32], index: 0, kind: input, shape index: {}]
  %s1 = inlined_call_operand.vmem [shape: f32[3,3,32,64], index: 1, kind: input, shape index: {}]
  %s2 = inlined_call_operand.vmem [shape: f32[1,64], index: 2, kind: input, shape index: {}]
  %s3 = inlined_call_operand.vmem [shape: f32[2,8,8,64], index: 3, kind: output, shape index: {}]
  %s4 = sld [smem:[#allocation0]]
  $region45: #{shallow_cnn_forward.4} parent=0
    _
  %s6 = ssub.s32 1, %s4
  %s7 = scalar_select 0, %s6, %s4
  loop: start=0, step=1, limit=6
  $region2: #{shallow_cnn_forward.4} parent=0 // loop_pre_header
    _
  $region3: #{shallow_cnn_forward.4} parent=0 // loop_header
    %s9 = sphi 0, %s13
    %p10 = scmp.ge.s32.totalorder %s9, 6
    %s16 = sphi 0, %s28
    %s17 = sphi 0, %s24
    %s18 = sphi 0, %s16
    %s19 = sphi 0, %s17
    %s20 = sphi 0, %s18
    %s21 = sphi 0, %s19
    %s31 = sphi 0, %s33
    %s34 = sphi 0, %s31
    %s35 = sphi 0, %s34
    %s51 = sphi 0, %s35
    %s55 = sphi 0, %s55
    %s57 = sphi 0, %s55
    %s58 = sphi 0, %s57
    %s72 = sphi 0, %s58
    %s76 = sphi 0, %s76
    %s78 = sphi 0, %s76
    %s79 = sphi 0, %s78
    %s93 = sphi 0, %s79
    %s101 = sphi 0, %s103
    %s104 = sphi 0, %s101
    %s105 = sphi 0, %s104
    %s121 = sphi 0, %s105
  $region4: #{shallow_cnn_forward.4} parent=0 // loop_header_branch
    %12 = sbr.rel (%p10) target = $region8
  $region5: #{shallow_cnn_forward.4} parent=0 // loop_body
    %s14 = ssub.s32 %s9, 1
    %s15 = ssub.s32 %s9, 2
    %s22 = sadd.s32 1, %s17
    %p23 = scmp.ge.s32.totalorder %s22, 2
    %s24 = scalar_select %p23, 0, %s22
    %s25 = sadd.s32 1, %s16
    %s26 = scalar_select %p23, %s25, %s16
    %p27 = scmp.ge.s32.totalorder %s26, 2
    %s28 = scalar_select %p27, 0, %s26
    %s29 = ssub.s32 %s16, %s28
    %p30 = scmp.eq.s32.totalorder %s29, 0
    %s32 = sadd.s32 %s31, 1
    %s33 = scalar_select %p30, %s31, %s32
    %p36 = pneg %p30
    %p37 = scmp.eq.s32.totalorder %s9, 3
    %p38 = por %p36, %p37
    %p39 = scmp.ne.s32.totalorder %s31, %s34
    %p40 = scmp.eq.s32.totalorder %s9, 0
    %p41 = por %p39, %p40
    %p42 = scmp.ne.s32.totalorder %s31, %s34
    %p43 = scmp.eq.s32.totalorder %s14, 3
    %p44 = por %p42, %p43
    %p45 = scmp.ne.s32.totalorder %s34, %s35
    %p46 = scmp.eq.s32.totalorder %s14, 0
    %p47 = por %p45, %p46
    %p48 = scmp.ne.s32.totalorder %s34, %s35
    %p49 = scmp.eq.s32.totalorder %s15, 3
    %p50 = por %p48, %p49
    %p52 = scmp.ne.s32.totalorder %s35, %s51
    %p53 = scmp.eq.s32.totalorder %s15, 0
    %p54 = por %p52, %p53
    %s56 = sadd.s32 %s55, 1
    %p59 = scmp.eq.s32.totalorder %s9, 3
    %p60 = scmp.ne.s32.totalorder %s55, %s57
    %p61 = scmp.eq.s32.totalorder %s9, 0
    %p62 = por %p60, %p61
    %p63 = scmp.ne.s32.totalorder %s55, %s57
    %p64 = scmp.eq.s32.totalorder %s14, 3
    %p65 = por %p63, %p64
    %p66 = scmp.ne.s32.totalorder %s57, %s58
    %p67 = scmp.eq.s32.totalorder %s14, 0
    %p68 = por %p66, %p67
    %p69 = scmp.ne.s32.totalorder %s57, %s58
    %p70 = scmp.eq.s32.totalorder %s15, 3
    %p71 = por %p69, %p70
    %p73 = scmp.ne.s32.totalorder %s58, %s72
    %p74 = scmp.eq.s32.totalorder %s15, 0
    %p75 = por %p73, %p74
    %s77 = sadd.s32 %s76, 1
    %p80 = scmp.eq.s32.totalorder %s9, 3
    %p81 = scmp.ne.s32.totalorder %s76, %s78
    %p82 = scmp.eq.s32.totalorder %s9, 0
    %p83 = por %p81, %p82
    %p84 = scmp.ne.s32.totalorder %s76, %s78
    %p85 = scmp.eq.s32.totalorder %s14, 3
    %p86 = por %p84, %p85
    %p87 = scmp.ne.s32.totalorder %s78, %s79
    %p88 = scmp.eq.s32.totalorder %s14, 0
    %p89 = por %p87, %p88
    %p90 = scmp.ne.s32.totalorder %s78, %s79
    %p91 = scmp.eq.s32.totalorder %s15, 3
    %p92 = por %p90, %p91
    %p94 = scmp.ne.s32.totalorder %s79, %s93
    %p95 = scmp.eq.s32.totalorder %s15, 0
    %p96 = por %p94, %p95
    %s97 = ssub.s32 %s16, %s28
    %s98 = ssub.s32 %s17, %s24
    %s99 = sor.u32 %s97, %s98
    %p100 = scmp.eq.s32.totalorder %s99, 0
    %s102 = sadd.s32 %s101, 1
    %s103 = scalar_select %p100, %s101, %s102
    %p106 = pneg %p100
    %p107 = scmp.eq.s32.totalorder %s9, 3
    %p108 = por %p106, %p107
    %p109 = scmp.ne.s32.totalorder %s101, %s104
    %p110 = scmp.eq.s32.totalorder %s9, 0
    %p111 = por %p109, %p110
    %p112 = scmp.ne.s32.totalorder %s101, %s104
    %p113 = scmp.eq.s32.totalorder %s14, 3
    %p114 = por %p112, %p113
    %p115 = scmp.ne.s32.totalorder %s104, %s105
    %p116 = scmp.eq.s32.totalorder %s14, 0
    %p117 = por %p115, %p116
    %p118 = scmp.ne.s32.totalorder %s104, %s105
    %p119 = scmp.eq.s32.totalorder %s15, 3
    %p120 = por %p118, %p119
    %p122 = scmp.ne.s32.totalorder %s105, %s121
    %p123 = scmp.eq.s32.totalorder %s15, 0
    %p124 = por %p122, %p123
    %p125 = scmp.le.s32.totalorder 1, %s9
    %p126 = scmp.lt.s32.totalorder %s9, 5
    %p127 = pnand %p125, %p126
    %p128 = pneg %p127
    // Predicated region
    $region9: #{shallow_cnn_forward.4} parent=5 // pred_check
      _
    $region10: #{shallow_cnn_forward.4} parent=5 // pred_check_branch
      %130 = sbr.rel (%p127) target = $region12
    $region11: #{shallow_cnn_forward.4} parent=5 // pred_region
      %s131 = ssub.s32 %s9, 1
      // Predicated region
      $region13: #{shallow_cnn_forward.4} parent=11 // pred_check
        %p132 = pneg %p68
      $region14: #{shallow_cnn_forward.4} parent=11 // pred_check_branch
        %134 = sbr.rel (%p132) target = $region16
      $region15: #{shallow_cnn_forward.4} parent=11 // pred_region
        _
      $region16: #{shallow_cnn_forward.4} parent=11 // pred_fallthru
        _
      // Predicated region
      $region17: #{shallow_cnn_forward.4} parent=11 // pred_check
        %p135 = pneg %p89
      $region18: #{shallow_cnn_forward.4} parent=11 // pred_check_branch
        %137 = sbr.rel (%p135) target = $region20
      $region19: #{shallow_cnn_forward.4} parent=11 // pred_region
        _
      $region20: #{shallow_cnn_forward.4} parent=11 // pred_fallthru
        _
    $region12: #{shallow_cnn_forward.4} parent=5 // pred_fallthru
      _
    %p138 = scmp.lt.s32.totalorder %s9, 4
    // Predicated region
    $region21: #{shallow_cnn_forward.4} parent=5 // pred_check
      %p139 = pneg %p138
    $region22: #{shallow_cnn_forward.4} parent=5 // pred_check_branch
      %141 = sbr.rel (%p139) target = $region24
    $region23: #{shallow_cnn_forward.4} parent=5 // pred_region
      // Predicated region
      $region25: #{shallow_cnn_forward.4} parent=23 // pred_check
        %p142 = pneg %p41
      $region26: #{shallow_cnn_forward.4} parent=23 // pred_check_branch
        %144 = sbr.rel (%p142) target = $region28
      $region27: #{shallow_cnn_forward.4} parent=23 // pred_region
        %p145 = scmp.lt.s32.totalorder %s16, 1
        %s146 = scalar_select %p145, %s16, 1
        %s147 = smul.addr %s146, 54
        %s148 = smul.addr %s147, 8
        %s149 = scalar_lea.vmem %s0, %s148
      $region28: #{shallow_cnn_forward.4} parent=23 // pred_fallthru
        _
    $region24: #{shallow_cnn_forward.4} parent=5 // pred_fallthru
      _
    %p150 = scmp.le.s32.totalorder 1, %s9
    %p151 = scmp.lt.s32.totalorder %s9, 5
    %p152 = pnand %p150, %p151
    %p153 = pneg %p152
    // Predicated region
    $region29: #{shallow_cnn_forward.4} parent=5 // pred_check
      _
    $region30: #{shallow_cnn_forward.4} parent=5 // pred_check_branch
      %155 = sbr.rel (%p152) target = $region32
    $region31: #{shallow_cnn_forward.4} parent=5 // pred_region
      %s156 = ssub.s32 %s9, 1
      %p157 = scmp.lt.s32.totalorder %s18, 1
      %s158 = scalar_select %p157, %s18, 1
      %s159 = smul.addr %s158, 54
      %s160 = smul.addr %s159, 8
      %s161 = scalar_lea.vmem %s0, %s160
      %p162 = pneg %p47
      %p163 = pneg %p44
      %p164 = pneg %p68
      %p165 = pneg %p65
      %p166 = pneg %p89
      %p167 = pneg %p86
      %p168 = pneg %p117
      %p169 = pneg %p114
      %s170 = smul.u32 4, %s19
      %p171 = scmp.lt.s32.totalorder %s18, 1
      %s172 = scalar_select %p171, %s18, 1
      %p173 = scmp.lt.s32.totalorder %s170, 7
      %s174 = scalar_select %p173, %s170, 7
      %s175 = smul.addr %s172, 8
      %s176 = sadd.s32 %s174, %s175
      %s177 = smul.addr %s176, 8
      %s178 = scalar_lea.vmem %s3, %s177
      %p179 = scmp.lt.s32.totalorder %s18, 1
      %s180 = scalar_select %p179, %s18, 1
      %s181 = smul.addr %s180, 54
      %s182 = smul.addr %s181, 8
      %s183 = scalar_lea.vmem %s0, %s182
      %s184 = smul.u32 4, %s19
      %p185 = scmp.lt.s32.totalorder %s18, 1
      %s186 = scalar_select %p185, %s18, 1
      %p187 = scmp.lt.s32.totalorder %s184, 7
      %s188 = scalar_select %p187, %s184, 7
      %s189 = smul.addr %s186, 8
      %s190 = sadd.s32 %s188, %s189
      %s191 = smul.addr %s190, 8
      %s192 = scalar_lea.vmem %s3, %s191
      %s193 = smul.u32 4, %s19
      %s194 = smul.u32 %s19, 8
      %s195 = smul.u32 %s194, 24
      %s196 = scalar_lea.vmem %s183, %s195
      %v197 = vld [vmem:[%s196] sm:$0xff]
      %v198 = vld [vmem:[%s196 + $0x8] sm:$0xff]
      %v199 = vld [vmem:[%s196 + $0x18] sm:$0xff]
      %v200 = vld [vmem:[%s196 + $0x20] sm:$0xff]
      %v201 = vld [vmem:[%s196 + $0x30] sm:$0xff]
      %v202 = vld [vmem:[%s196 + $0x38] sm:$0xff]
      %v203 = vld [vmem:[%s196 + $0x48] sm:$0xff]
      %v204 = vld [vmem:[%s196 + $0x50] sm:$0xff]
      %v205 = vld [vmem:[%s196 + $0x60] sm:$0xff]
      %v206 = vld [vmem:[%s196 + $0x68] sm:$0xff]
      %v207 = vld [vmem:[%s196 + $0x78] sm:$0xff]
      %v208 = vld [vmem:[%s196 + $0x80] sm:$0xff]
      %v209 = vld [vmem:[%s196 + $0x90] sm:$0xff]
      %v210 = vld [vmem:[%s196 + $0x98] sm:$0xff]
      %v211 = vld [vmem:[%s196 + $0xa8] sm:$0xff]
      %v212 = vld [vmem:[%s196 + $0xb0] sm:$0xff]
      %v213 = vld [vmem:[%s1] sm:$0xff]
      %v214 = vld [vmem:[%s1 + $0x8] sm:$0xff]
      %v215 = vld [vmem:[%s1 + $0x10] sm:$0xff]
      %v216 = vld [vmem:[%s1 + $0x18] sm:$0xff]
      %v217 = vld [vmem:[%s196 + $0x1] sm:$0xff]
      %v218 = vld [vmem:[%s196 + $0x9] sm:$0xff]
      %v219 = vld [vmem:[%s196 + $0x19] sm:$0xff]
      %v220 = vld [vmem:[%s196 + $0x21] sm:$0xff]
      %v221 = vld [vmem:[%s196 + $0x31] sm:$0xff]
      %v222 = vld [vmem:[%s196 + $0x39] sm:$0xff]
      %v223 = vld [vmem:[%s196 + $0x49] sm:$0xff]
      %v224 = vld [vmem:[%s196 + $0x51] sm:$0xff]
      %v225 = vld [vmem:[%s196 + $0x61] sm:$0xff]
      %v226 = vld [vmem:[%s196 + $0x69] sm:$0xff]
      %v227 = vld [vmem:[%s196 + $0x79] sm:$0xff]
      %v228 = vld [vmem:[%s196 + $0x81] sm:$0xff]
      %v229 = vld [vmem:[%s196 + $0x91] sm:$0xff]
      %v230 = vld [vmem:[%s196 + $0x99] sm:$0xff]
      %v231 = vld [vmem:[%s196 + $0xa9] sm:$0xff]
      %v232 = vld [vmem:[%s196 + $0xb1] sm:$0xff]
      %s233 = scalar_lea.vmem %s1, 32
      %v234 = vld [vmem:[%s233] sm:$0xff]
      %v235 = vld [vmem:[%s233 + $0x8] sm:$0xff]
      %v236 = vld [vmem:[%s233 + $0x10] sm:$0xff]
      %v237 = vld [vmem:[%s233 + $0x18] sm:$0xff]
      %vm238 = vcmask 261120
      %v240 = vsel %vm238, %v217, 0
      %v243 = vsel %vm238, %v218, 0
      %v246 = vsel %vm238, %v219, 0
      %v249 = vsel %vm238, %v220, 0
      %v252 = vsel %vm238, %v221, 0
      %v255 = vsel %vm238, %v222, 0
      %v258 = vsel %vm238, %v223, 0
      %v261 = vsel %vm238, %v224, 0
      %v264 = vsel %vm238, %v225, 0
      %v267 = vsel %vm238, %v226, 0
      %v270 = vsel %vm238, %v227, 0
      %v273 = vsel %vm238, %v228, 0
      %v276 = vsel %vm238, %v229, 0
      %v279 = vsel %vm238, %v230, 0
      %v282 = vsel %vm238, %v231, 0
      %v285 = vsel %vm238, %v232, 0
      %287 = vmatprep.subr.mxu0 0.0
      %288 = vmatpush1.msra.mxu0 %v234
      %289 = vmatprep.subr.mxu0 0.0
      %290 = vmatpush1.msra.mxu0 %v235
      %291 = vmatprep.subr.mxu0 0.0
      %292 = vmatpush1.msra.mxu0 %v236
      %293 = vmatprep.subr.mxu0 0.0
      %294 = vmatpush1.msra.mxu0 %v237
      %295 = vmatprep.subr.mxu0 0.0
      %296 = vmatpush1.msra.mxu0 0.0
      %297 = vmatprep.subr.mxu0 0.0
      %298 = vmatpush1.msra.mxu0 0.0
      %299 = vmatprep.subr.mxu0 0.0
      %300 = vmatpush1.msra.mxu0 0.0
      %301 = vmatprep.subr.mxu0 0.0
      %302 = vmatpush1.msra.mxu0 0.0
      %303 = vmatprep.subr.mxu0 0.0
      %304 = vmatpush1.msra.mxu0 0.0
      %305 = vmatprep.subr.mxu0 0.0
      %306 = vmatpush1.msra.mxu0 0.0
      %307 = vmatprep.subr.mxu0 0.0
      %308 = vmatpush1.msra.mxu0 0.0
      %309 = vmatprep.subr.mxu0 0.0
      %310 = vmatpush1.msra.mxu0 0.0
      %311 = vmatprep.subr.mxu0 0.0
      %312 = vmatpush1.msra.mxu0 0.0
      %313 = vmatprep.subr.mxu0 0.0
      %314 = vmatpush1.msra.mxu0 0.0
      %315 = vmatprep.subr.mxu0 0.0
      %316 = vmatpush1.msra.mxu0 0.0
      %317 = vmatprep.subr.mxu0 0.0
      %318 = vmatpush1.msra.mxu0 0.0
      %319 = vmatprep.subr.mxu0 0.0
      %320 = vmatpush1.msra.mxu0 0.0
      %321 = vmatprep.subr.mxu0 0.0
      %322 = vmatpush1.msra.mxu0 0.0
      %323 = vmatprep.subr.mxu0 0.0
      %324 = vmatpush1.msra.mxu0 0.0
      %325 = vmatprep.subr.mxu0 0.0
      %326 = vmatpush1.msra.mxu0 0.0
      %327 = vmatprep.subr.mxu0 0.0
      %328 = vmatpush1.msra.mxu0 0.0
      %329 = vmatprep.subr.mxu0 0.0
      %330 = vmatpush1.msra.mxu0 0.0
      %331 = vmatprep.subr.mxu0 0.0
      %332 = vmatpush1.msra.mxu0 0.0
      %333 = vmatprep.subr.mxu0 0.0
      %334 = vmatpush1.msra.mxu0 0.0
      %335 = vmatprep.subr.mxu0 0.0
      %336 = vmatpush1.msra.mxu0 0.0
      %337 = vmatprep.subr.mxu0 0.0
      %338 = vmatpush1.msra.mxu0 0.0
      %339 = vmatprep.subr.mxu0 0.0
      %340 = vmatpush1.msra.mxu0 0.0
      %341 = vmatprep.subr.mxu0 0.0
      %342 = vmatpush1.msra.mxu0 0.0
      %343 = vmatprep.subr.mxu0 0.0
      %344 = vmatpush1.msra.mxu0 0.0
      %345 = vmatprep.subr.mxu0 0.0
      %346 = vmatpush1.msra.mxu0 0.0
      %347 = vmatprep.subr.mxu0 0.0
      %348 = vmatpush1.msra.mxu0 0.0
      %349 = vmatprep.subr.mxu0 0.0
      %350 = vmatpush1.msra.mxu0 0.0
      %351 = vmatprep.mubr.f32.mxu0 0.0
      %352 = vmatmul.mubr.f32.gmra.mrb[0].mxu0 %v240
      %v353 = vpop.f32.mrb[0].mxu0
      %v354 = vadd.f32 0.0, %v353
      %v355 = vpop.f32.mrb[0].mxu0
      %356 = vmatprep.mubr.f32.mxu0 0.0
      %357 = vmatmul.mubr.f32.gmra.mrb[0].mxu0 %v243
      %v358 = vpop.f32.mrb[0].mxu0
      %v359 = vadd.f32 0.0, %v358
      %v360 = vpop.f32.mrb[0].mxu0
      %361 = vmatprep.mubr.f32.mxu0 0.0
      %362 = vmatmul.mubr.f32.gmra.mrb[0].mxu0 %v246
      %v363 = vpop.f32.mrb[0].mxu0
      %v364 = vadd.f32 0.0, %v363
      %v365 = vpop.f32.mrb[0].mxu0
      %366 = vmatprep.mubr.f32.mxu0 0.0
      %367 = vmatmul.mubr.f32.gmra.mrb[0].mxu0 %v249
      %v368 = vpop.f32.mrb[0].mxu0
      %v369 = vadd.f32 0.0, %v368
      %v370 = vpop.f32.mrb[0].mxu0
      %371 = vmatprep.mubr.f32.mxu0 0.0
      %372 = vmatmul.mubr.f32.gmra.mrb[0].mxu0 %v252
      %v373 = vpop.f32.mrb[0].mxu0
      %v374 = vadd.f32 0.0, %v373
      %v375 = vpop.f32.mrb[0].mxu0
      %376 = vmatprep.mubr.f32.mxu0 0.0
      %377 = vmatmul.mubr.f32.gmra.mrb[0].mxu0 %v255
      %v378 = vpop.f32.mrb[0].mxu0
      %v379 = vadd.f32 0.0, %v378
      %v380 = vpop.f32.mrb[0].mxu0
      %381 = vmatprep.mubr.f32.mxu0 0.0
      %382 = vmatmul.mubr.f32.gmra.mrb[0].mxu0 %v258
      %v383 = vpop.f32.mrb[0].mxu0
      %v384 = vadd.f32 0.0, %v383
      %v385 = vpop.f32.mrb[0].mxu0
      %386 = vmatprep.mubr.f32.mxu0 0.0
      %387 = vmatmul.mubr.f32.gmra.mrb[0].mxu0 %v261
      %v388 = vpop.f32.mrb[0].mxu0
      %v389 = vadd.f32 0.0, %v388
      %v390 = vpop.f32.mrb[0].mxu0
      %391 = vmatprep.mubr.f32.mxu0 0.0
      %392 = vmatmul.mubr.f32.gmra.mrb[0].mxu0 %v264
      %v393 = vpop.f32.mrb[0].mxu0
      %v394 = vadd.f32 0.0, %v393
      %v395 = vpop.f32.mrb[0].mxu0
      %396 = vmatprep.mubr.f32.mxu0 0.0
      %397 = vmatmul.mubr.f32.gmra.mrb[0].mxu0 %v267
      %v398 = vpop.f32.mrb[0].mxu0
      %v399 = vadd.f32 0.0, %v398
      %v400 = vpop.f32.mrb[0].mxu0
      %401 = vmatprep.mubr.f32.mxu0 0.0
      %402 = vmatmul.mubr.f32.gmra.mrb[0].mxu0 %v270
      %v403 = vpop.f32.mrb[0].mxu0
      %v404 = vadd.f32 0.0, %v403
      %v405 = vpop.f32.mrb[0].mxu0
      %406 = vmatprep.mubr.f32.mxu0 0.0
      %407 = vmatmul.mubr.f32.gmra.mrb[0].mxu0 %v273
      %v408 = vpop.f32.mrb[0].mxu0
      %v409 = vadd.f32 0.0, %v408
      %v410 = vpop.f32.mrb[0].mxu0
      %411 = vmatprep.mubr.f32.mxu0 0.0
      %412 = vmatmul.mubr.f32.gmra.mrb[0].mxu0 %v276
      %v413 = vpop.f32.mrb[0].mxu0
      %v414 = vadd.f32 0.0, %v413
      %v415 = vpop.f32.mrb[0].mxu0
      %416 = vmatprep.mubr.f32.mxu0 0.0
      %417 = vmatmul.mubr.f32.gmra.mrb[0].mxu0 %v279
      %v418 = vpop.f32.mrb[0].mxu0
      %v419 = vadd.f32 0.0, %v418
      %v420 = vpop.f32.mrb[0].mxu0
      %421 = vmatprep.mubr.f32.mxu0 0.0
      %422 = vmatmul.mubr.f32.gmra.mrb[0].mxu0 %v282
      %v423 = vpop.f32.mrb[0].mxu0
      %v424 = vadd.f32 0.0, %v423
      %v425 = vpop.f32.mrb[0].mxu0
      %426 = vmatprep.mubr.f32.mxu0 0.0
      %427 = vmatmul.mubr.f32.gmra.mrb[0].mxu0 %v285
      %v428 = vpop.f32.mrb[0].mxu0
      %v429 = vadd.f32 0.0, %v428
      %v430 = vpop.f32.mrb[0].mxu0
      %431 = vdwg.mxu0
      %v433 = vsel %vm238, %v197, 0
      %v436 = vsel %vm238, %v198, 0
      %v439 = vsel %vm238, %v199, 0
      %v442 = vsel %vm238, %v200, 0
      %v445 = vsel %vm238, %v201, 0
      %v448 = vsel %vm238, %v202, 0
      %v451 = vsel %vm238, %v203, 0
      %v454 = vsel %vm238, %v204, 0
      %v457 = vsel %vm238, %v205, 0
      %v460 = vsel %vm238, %v206, 0
      %v463 = vsel %vm238, %v207, 0
      %v466 = vsel %vm238, %v208, 0
      %v469 = vsel %vm238, %v209, 0
      %v472 = vsel %vm238, %v210, 0
      %v475 = vsel %vm238, %v211, 0
      %v478 = vsel %vm238, %v212, 0
      %480 = vmatprep.subr.mxu0 0.0
      %481 = vmatpush1.msra.mxu0 %v213
      %482 = vmatprep.subr.mxu0 0.0
      %483 = vmatpush1.msra.mxu0 %v214
      %484 = vmatprep.subr.mxu0 0.0
      %485 = vmatpush1.msra.mxu0 %v215
      %486 = vmatprep.subr.mxu0 0.0
      %487 = vmatpush1.msra.mxu0 %v216
      %488 = vmatprep.subr.mxu0 0.0
      %489 = vmatpush1.msra.mxu0 0.0
      %490 = vmatprep.subr.mxu0 0.0
      %491 = vmatpush1.msra.mxu0 0.0
      %492 = vmatprep.subr.mxu0 0.0
      %493 = vmatpush1.msra.mxu0 0.0
      %494 = vmatprep.subr.mxu0 0.0
      %495 = vmatpush1.msra.mxu0 0.0
      %496 = vmatprep.subr.mxu0 0.0
      %497 = vmatpush1.msra.mxu0 0.0
      %498 = vmatprep.subr.mxu0 0.0
      %499 = vmatpush1.msra.mxu0 0.0
      %500 = vmatprep.subr.mxu0 0.0
      %501 = vmatpush1.msra.mxu0 0.0
      %502 = vmatprep.subr.mxu0 0.0
      %503 = vmatpush1.msra.mxu0 0.0
      %504 = vmatprep.subr.mxu0 0.0
      %505 = vmatpush1.msra.mxu0 0.0
      %506 = vmatprep.subr.mxu0 0.0
      %507 = vmatpush1.msra.mxu0 0.0
      %508 = vmatprep.subr.mxu0 0.0
      %509 = vmatpush1.msra.mxu0 0.0
      %510 = vmatprep.subr.mxu0 0.0
      %511 = vmatpush1.msra.mxu0 0.0
      %512 = vmatprep.subr.mxu0 0.0
      %513 = vmatpush1.msra.mxu0 0.0
      %514 = vmatprep.subr.mxu0 0.0
      %515 = vmatpush1.msra.mxu0 0.0
      %516 = vmatprep.subr.mxu0 0.0
      %517 = vmatpush1.msra.mxu0 0.0
      %518 = vmatprep.subr.mxu0 0.0
      %519 = vmatpush1.msra.mxu0 0.0
      %520 = vmatprep.subr.mxu0 0.0
      %521 = vmatpush1.msra.mxu0 0.0
      %522 = vmatprep.subr.mxu0 0.0
      %523 = vmatpush1.msra.mxu0 0.0
      %524 = vmatprep.subr.mxu0 0.0
      %525 = vmatpush1.msra.mxu0 0.0
      %526 = vmatprep.subr.mxu0 0.0
      %527 = vmatpush1.msra.mxu0 0.0
      %528 = vmatprep.subr.mxu0 0.0
      %529 = vmatpush1.msra.mxu0 0.0
      %530 = vmatprep.subr.mxu0 0.0
      %531 = vmatpush1.msra.mxu0 0.0
      %532 = vmatprep.subr.mxu0 0.0
      %533 = vmatpush1.msra.mxu0 0.0
      %534 = vmatprep.subr.mxu0 0.0
      %535 = vmatpush1.msra.mxu0 0.0
      %536 = vmatprep.subr.mxu0 0.0
      %537 = vmatpush1.msra.mxu0 0.0
      %538 = vmatprep.subr.mxu0 0.0
      %539 = vmatpush1.msra.mxu0 0.0
      %540 = vmatprep.subr.mxu0 0.0
      %541 = vmatpush1.msra.mxu0 0.0
      %542 = vmatprep.subr.mxu0 0.0
      %543 = vmatpush1.msra.mxu0 0.0
      %544 = vmatprep.mubr.f32.mxu0 0.0
      %545 = vmatmul.mubr.f32.gmra.mrb[0].mxu0 %v433
      %v546 = vpop.f32.mrb[0].mxu0
      %v547 = vadd.f32 %v354, %v546
      %v548 = vpop.f32.mrb[0].mxu0
      %549 = vmatprep.mubr.f32.mxu0 0.0
      %550 = vmatmul.mubr.f32.gmra.mrb[0].mxu0 %v436
      %v551 = vpop.f32.mrb[0].mxu0
      %v552 = vadd.f32 %v359, %v551
      %v553 = vpop.f32.mrb[0].mxu0
      %554 = vmatprep.mubr.f32.mxu0 0.0
      %555 = vmatmul.mubr.f32.gmra.mrb[0].mxu0 %v439
      %v556 = vpop.f32.mrb[0].mxu0
      %v557 = vadd.f32 %v364, %v556
      %v558 = vpop.f32.mrb[0].mxu0
      %559 = vmatprep.mubr.f32.mxu0 0.0
      %560 = vmatmul.mubr.f32.gmra.mrb[0].mxu0 %v442
      %v561 = vpop.f32.mrb[0].mxu0
      %v562 = vadd.f32 %v369, %v561
      %v563 = vpop.f32.mrb[0].mxu0
      %564 = vmatprep.mubr.f32.mxu0 0.0
      %565 = vmatmul.mubr.f32.gmra.mrb[0].mxu0 %v445
      %v566 = vpop.f32.mrb[0].mxu0
      %v567 = vadd.f32 %v374, %v566
      %v568 = vpop.f32.mrb[0].mxu0
      %569 = vmatprep.mubr.f32.mxu0 0.0
      %570 = vmatmul.mubr.f32.gmra.mrb[0].mxu0 %v448
      %v571 = vpop.f32.mrb[0].mxu0
      %v572 = vadd.f32 %v379, %v571
      %v573 = vpop.f32.mrb[0].mxu0
      %574 = vmatprep.mubr.f32.mxu0 0.0
      %575 = vmatmul.mubr.f32.gmra.mrb[0].mxu0 %v451
      %v576 = vpop.f32.mrb[0].mxu0
      %v577 = vadd.f32 %v384, %v576
      %v578 = vpop.f32.mrb[0].mxu0
      %579 = vmatprep.mubr.f32.mxu0 0.0
      %580 = vmatmul.mubr.f32.gmra.mrb[0].mxu0 %v454
      %v581 = vpop.f32.mrb[0].mxu0
      %v582 = vadd.f32 %v389, %v581
      %v583 = vpop.f32.mrb[0].mxu0
      %584 = vmatprep.mubr.f32.mxu0 0.0
      %585 = vmatmul.mubr.f32.gmra.mrb[0].mxu0 %v457
      %v586 = vpop.f32.mrb[0].mxu0
      %v587 = vadd.f32 %v394, %v586
      %v588 = vpop.f32.mrb[0].mxu0
      %589 = vmatprep.mubr.f32.mxu0 0.0
      %590 = vmatmul.mubr.f32.gmra.mrb[0].mxu0 %v460
      %v591 = vpop.f32.mrb[0].mxu0
      %v592 = vadd.f32 %v399, %v591
      %v593 = vpop.f32.mrb[0].mxu0
      %594 = vmatprep.mubr.f32.mxu0 0.0
      %595 = vmatmul.mubr.f32.gmra.mrb[0].mxu0 %v463
      %v596 = vpop.f32.mrb[0].mxu0
      %v597 = vadd.f32 %v404, %v596
      %v598 = vpop.f32.mrb[0].mxu0
      %599 = vmatprep.mubr.f32.mxu0 0.0
      %600 = vmatmul.mubr.f32.gmra.mrb[0].mxu0 %v466
      %v601 = vpop.f32.mrb[0].mxu0
      %v602 = vadd.f32 %v409, %v601
      %v603 = vpop.f32.mrb[0].mxu0
      %604 = vmatprep.mubr.f32.mxu0 0.0
      %605 = vmatmul.mubr.f32.gmra.mrb[0].mxu0 %v469
      %v606 = vpop.f32.mrb[0].mxu0
      %v607 = vadd.f32 %v414, %v606
      %v608 = vpop.f32.mrb[0].mxu0
      %609 = vmatprep.mubr.f32.mxu0 0.0
      %610 = vmatmul.mubr.f32.gmra.mrb[0].mxu0 %v472
      %v611 = vpop.f32.mrb[0].mxu0
      %v612 = vadd.f32 %v419, %v611
      %v613 = vpop.f32.mrb[0].mxu0
      %614 = vmatprep.mubr.f32.mxu0 0.0
      %615 = vmatmul.mubr.f32.gmra.mrb[0].mxu0 %v475
      %v616 = vpop.f32.mrb[0].mxu0
      %v617 = vadd.f32 %v424, %v616
      %v618 = vpop.f32.mrb[0].mxu0
      %619 = vmatprep.mubr.f32.mxu0 0.0
      %620 = vmatmul.mubr.f32.gmra.mrb[0].mxu0 %v478
      %v621 = vpop.f32.mrb[0].mxu0
      %v622 = vadd.f32 %v429, %v621
      %v623 = vpop.f32.mrb[0].mxu0
      %624 = vdwg.mxu0
      %v625 = vld [vmem:[%s196 + $0x2] sm:$0xff]
      %v626 = vld [vmem:[%s196 + $0xa] sm:$0xff]
      %v627 = vld [vmem:[%s196 + $0x1a] sm:$0xff]
      %v628 = vld [vmem:[%s196 + $0x22] sm:$0xff]
      %v629 = vld [vmem:[%s196 + $0x32] sm:$0xff]
      %v630 = vld [vmem:[%s196 + $0x3a] sm:$0xff]
      %v631 = vld [vmem:[%s196 + $0x4a] sm:$0xff]
      %v632 = vld [vmem:[%s196 + $0x52] sm:$0xff]
      %v633 = vld [vmem:[%s196 + $0x62] sm:$0xff]
      %v634 = vld [vmem:[%s196 + $0x6a] sm:$0xff]
      %v635 = vld [vmem:[%s196 + $0x7a] sm:$0xff]
      %v636 = vld [vmem:[%s196 + $0x82] sm:$0xff]
      %v637 = vld [vmem:[%s196 + $0x92] sm:$0xff]
      %v638 = vld [vmem:[%s196 + $0x9a] sm:$0xff]
      %v639 = vld [vmem:[%s196 + $0xaa] sm:$0xff]
      %v640 = vld [vmem:[%s196 + $0xb2] sm:$0xff]
      %s641 = scalar_lea.vmem %s1, 64
      %v642 = vld [vmem:[%s641] sm:$0xff]
      %v643 = vld [vmem:[%s641 + $0x8] sm:$0xff]
      %v644 = vld [vmem:[%s641 + $0x10] sm:$0xff]
      %v645 = vld [vmem:[%s641 + $0x18] sm:$0xff]
      %v647 = vsel %vm238, %v625, 0
      %v650 = vsel %vm238, %v626, 0
      %v653 = vsel %vm238, %v627, 0
      %v656 = vsel %vm238, %v628, 0
      %v659 = vsel %vm238, %v629, 0
      %v662 = vsel %vm238, %v630, 0
      %v665 = vsel %vm238, %v631, 0
      %v668 = vsel %vm238, %v632, 0
      %v671 = vsel %vm238, %v633, 0
      %v674 = vsel %vm238, %v634, 0
      %v677 = vsel %vm238, %v635, 0
      %v680 = vsel %vm238, %v636, 0
      %v683 = vsel %vm238, %v637, 0
      %v686 = vsel %vm238, %v638, 0
      %v689 = vsel %vm238, %v639, 0
      %v692 = vsel %vm238, %v640, 0
      %694 = vmatprep.subr.mxu0 0.0
      %695 = vmatpush1.msra.mxu0 %v642
      %696 = vmatprep.subr.mxu0 0.0
      %697 = vmatpush1.msra.mxu0 %v643
      %698 = vmatprep.subr.mxu0 0.0
      %699 = vmatpush1.msra.mxu0 %v644
      %700 = vmatprep.subr.mxu0 0.0
      %701 = vmatpush1.msra.mxu0 %v645
      %702 = vmatprep.subr.mxu0 0.0
      %703 = vmatpush1.msra.mxu0 0.0
      %704 = vmatprep.subr.mxu0 0.0
      %705 = vmatpush1.msra.mxu0 0.0
      %706 = vmatprep.subr.mxu0 0.0
      %707 = vmatpush1.msra.mxu0 0.0
      %708 = vmatprep.subr.mxu0 0.0
      %709 = vmatpush1.msra.mxu0 0.0
      %710 = vmatprep.subr.mxu0 0.0
      %711 = vmatpush1.msra.mxu0 0.0
      %712 = vmatprep.subr.mxu0 0.0
      %713 = vmatpush1.msra.mxu0 0.0
      %714 = vmatprep.subr.mxu0 0.0
      %715 = vmatpush1.msra.mxu0 0.0
      %716 = vmatprep.subr.mxu0 0.0
      %717 = vmatpush1.msra.mxu0 0.0
      %718 = vmatprep.subr.mxu0 0.0
      %719 = vmatpush1.msra.mxu0 0.0
      %720 = vmatprep.subr.mxu0 0.0
      %721 = vmatpush1.msra.mxu0 0.0
      %722 = vmatprep.subr.mxu0 0.0
      %723 = vmatpush1.msra.mxu0 0.0
      %724 = vmatprep.subr.mxu0 0.0
      %725 = vmatpush1.msra.mxu0 0.0
      %726 = vmatprep.subr.mxu0 0.0
      %727 = vmatpush1.msra.mxu0 0.0
      %728 = vmatprep.subr.mxu0 0.0
      %729 = vmatpush1.msra.mxu0 0.0
      %730 = vmatprep.subr.mxu0 0.0
      %731 = vmatpush1.msra.mxu0 0.0
      %732 = vmatprep.subr.mxu0 0.0
      %733 = vmatpush1.msra.mxu0 0.0
      %734 = vmatprep.subr.mxu0 0.0
      %735 = vmatpush1.msra.mxu0 0.0
      %736 = vmatprep.subr.mxu0 0.0
      %737 = vmatpush1.msra.mxu0 0.0
      %738 = vmatprep.subr.mxu0 0.0
      %739 = vmatpush1.msra.mxu0 0.0
      %740 = vmatprep.subr.mxu0 0.0
      %741 = vmatpush1.msra.mxu0 0.0
      %742 = vmatprep.subr.mxu0 0.0
      %743 = vmatpush1.msra.mxu0 0.0
      %744 = vmatprep.subr.mxu0 0.0
      %745 = vmatpush1.msra.mxu0 0.0
      %746 = vmatprep.subr.mxu0 0.0
      %747 = vmatpush1.msra.mxu0 0.0
      %748 = vmatprep.subr.mxu0 0.0
      %749 = vmatpush1.msra.mxu0 0.0
      %750 = vmatprep.subr.mxu0 0.0
      %751 = vmatpush1.msra.mxu0 0.0
      %752 = vmatprep.subr.mxu0 0.0
      %753 = vmatpush1.msra.mxu0 0.0
      %754 = vmatprep.subr.mxu0 0.0
      %755 = vmatpush1.msra.mxu0 0.0
      %756 = vmatprep.subr.mxu0 0.0
      %757 = vmatpush1.msra.mxu0 0.0
      %758 = vmatprep.mubr.f32.mxu0 0.0
      %759 = vmatmul.mubr.f32.gmra.mrb[0].mxu0 %v647
      %v760 = vpop.f32.mrb[0].mxu0
      %v761 = vadd.f32 0.0, %v760
      %v762 = vpop.f32.mrb[0].mxu0
      %763 = vmatprep.mubr.f32.mxu0 0.0
      %764 = vmatmul.mubr.f32.gmra.mrb[0].mxu0 %v650
      %v765 = vpop.f32.mrb[0].mxu0
      %v766 = vadd.f32 0.0, %v765
      %v767 = vpop.f32.mrb[0].mxu0
      %768 = vmatprep.mubr.f32.mxu0 0.0
      %769 = vmatmul.mubr.f32.gmra.mrb[0].mxu0 %v653
      %v770 = vpop.f32.mrb[0].mxu0
      %v771 = vadd.f32 0.0, %v770
      %v772 = vpop.f32.mrb[0].mxu0
      %773 = vmatprep.mubr.f32.mxu0 0.0
      %774 = vmatmul.mubr.f32.gmra.mrb[0].mxu0 %v656
      %v775 = vpop.f32.mrb[0].mxu0
      %v776 = vadd.f32 0.0, %v775
      %v777 = vpop.f32.mrb[0].mxu0
      %778 = vmatprep.mubr.f32.mxu0 0.0
      %779 = vmatmul.mubr.f32.gmra.mrb[0].mxu0 %v659
      %v780 = vpop.f32.mrb[0].mxu0
      %v781 = vadd.f32 0.0, %v780
      %v782 = vpop.f32.mrb[0].mxu0
      %783 = vmatprep.mubr.f32.mxu0 0.0
      %784 = vmatmul.mubr.f32.gmra.mrb[0].mxu0 %v662
      %v785 = vpop.f32.mrb[0].mxu0
      %v786 = vadd.f32 0.0, %v785
      %v787 = vpop.f32.mrb[0].mxu0
      %788 = vmatprep.mubr.f32.mxu0 0.0
      %789 = vmatmul.mubr.f32.gmra.mrb[0].mxu0 %v665
      %v790 = vpop.f32.mrb[0].mxu0
      %v791 = vadd.f32 0.0, %v790
      %v792 = vpop.f32.mrb[0].mxu0
      %793 = vmatprep.mubr.f32.mxu0 0.0
      %794 = vmatmul.mubr.f32.gmra.mrb[0].mxu0 %v668
      %v795 = vpop.f32.mrb[0].mxu0
      %v796 = vadd.f32 0.0, %v795
      %v797 = vpop.f32.mrb[0].mxu0
      %798 = vmatprep.mubr.f32.mxu0 0.0
      %799 = vmatmul.mubr.f32.gmra.mrb[0].mxu0 %v671
      %v800 = vpop.f32.mrb[0].mxu0
      %v801 = vadd.f32 0.0, %v800
      %v802 = vpop.f32.mrb[0].mxu0
      %803 = vmatprep.mubr.f32.mxu0 0.0
      %804 = vmatmul.mubr.f32.gmra.mrb[0].mxu0 %v674
      %v805 = vpop.f32.mrb[0].mxu0
      %v806 = vadd.f32 0.0, %v805
      %v807 = vpop.f32.mrb[0].mxu0
      %808 = vmatprep.mubr.f32.mxu0 0.0
      %809 = vmatmul.mubr.f32.gmra.mrb[0].mxu0 %v677
      %v810 = vpop.f32.mrb[0].mxu0
      %v811 = vadd.f32 0.0, %v810
      %v812 = vpop.f32.mrb[0].mxu0
      %813 = vmatprep.mubr.f32.mxu0 0.0
      %814 = vmatmul.mubr.f32.gmra.mrb[0].mxu0 %v680
      %v815 = vpop.f32.mrb[0].mxu0
      %v816 = vadd.f32 0.0, %v815
      %v817 = vpop.f32.mrb[0].mxu0
      %818 = vmatprep.mubr.f32.mxu0 0.0
      %819 = vmatmul.mubr.f32.gmra.mrb[0].mxu0 %v683
      %v820 = vpop.f32.mrb[0].mxu0
      %v821 = vadd.f32 0.0, %v820
      %v822 = vpop.f32.mrb[0].mxu0
      %823 = vmatprep.mubr.f32.mxu0 0.0
      %824 = vmatmul.mubr.f32.gmra.mrb[0].mxu0 %v686
      %v825 = vpop.f32.mrb[0].mxu0
      %v826 = vadd.f32 0.0, %v825
      %v827 = vpop.f32.mrb[0].mxu0
      %828 = vmatprep.mubr.f32.mxu0 0.0
      %829 = vmatmul.mubr.f32.gmra.mrb[0].mxu0 %v689
      %v830 = vpop.f32.mrb[0].mxu0
      %v831 = vadd.f32 0.0, %v830
      %v832 = vpop.f32.mrb[0].mxu0
      %833 = vmatprep.mubr.f32.mxu0 0.0
      %834 = vmatmul.mubr.f32.gmra.mrb[0].mxu0 %v692
      %v835 = vpop.f32.mrb[0].mxu0
      %v836 = vadd.f32 0.0, %v835
      %v837 = vpop.f32.mrb[0].mxu0
      %838 = vdwg.mxu0
      %v839 = vadd.f32 %v547, %v761
      %v840 = vadd.f32 %v552, %v766
      %v841 = vadd.f32 %v557, %v771
      %v842 = vadd.f32 %v562, %v776
      %v843 = vadd.f32 %v567, %v781
      %v844 = vadd.f32 %v572, %v786
      %v845 = vadd.f32 %v577, %v791
      %v846 = vadd.f32 %v582, %v796
      %v847 = vadd.f32 %v587, %v801
      %v848 = vadd.f32 %v592, %v806
      %v849 = vadd.f32 %v597, %v811
      %v850 = vadd.f32 %v602, %v816
      %v851 = vadd.f32 %v607, %v821
      %v852 = vadd.f32 %v612, %v826
      %v853 = vadd.f32 %v617, %v831
      %v854 = vadd.f32 %v622, %v836
      %s855 = sadd.s32 %s194, 1
      %s856 = smul.u32 %s855, 24
      %s857 = scalar_lea.vmem %s183, %s856
      %v858 = vld [vmem:[%s857] sm:$0xff]
      %v859 = vld [vmem:[%s857 + $0x8] sm:$0xff]
      %v860 = vld [vmem:[%s857 + $0x18] sm:$0xff]
      %v861 = vld [vmem:[%s857 + $0x20] sm:$0xff]
      %v862 = vld [vmem:[%s857 + $0x30] sm:$0xff]
      %v863 = vld [vmem:[%s857 + $0x38] sm:$0xff]
      %v864 = vld [vmem:[%s857 + $0x48] sm:$0xff]
      %v865 = vld [vmem:[%s857 + $0x50] sm:$0xff]
      %v866 = vld [vmem:[%s857 + $0x60] sm:$0xff]
      %v867 = vld [vmem:[%s857 + $0x68] sm:$0xff]
      %v868 = vld [vmem:[%s857 + $0x78] sm:$0xff]
      %v869 = vld [vmem:[%s857 + $0x80] sm:$0xff]
      %v870 = vld [vmem:[%s857 + $0x90] sm:$0xff]
      %v871 = vld [vmem:[%s857 + $0x98] sm:$0xff]
      %v872 = vld [vmem:[%s857 + $0xa8] sm:$0xff]
      %v873 = vld [vmem:[%s857 + $0xb0] sm:$0xff]
      %s874 = scalar_lea.vmem %s1, 96
      %v875 = vld [vmem:[%s874] sm:$0xff]
      %v876 = vld [vmem:[%s874 + $0x8] sm:$0xff]
      %v877 = vld [vmem:[%s874 + $0x10] sm:$0xff]
      %v878 = vld [vmem:[%s874 + $0x18] sm:$0xff]
      %v880 = vsel %vm238, %v858, 0
      %v883 = vsel %vm238, %v859, 0
      %v886 = vsel %vm238, %v860, 0
      %v889 = vsel %vm238, %v861, 0
      %v892 = vsel %vm238, %v862, 0
      %v895 = vsel %vm238, %v863, 0
      %v898 = vsel %vm238, %v864, 0
      %v901 = vsel %vm238, %v865, 0
      %v904 = vsel %vm238, %v866, 0
      %v907 = vsel %vm238, %v867, 0
      %v910 = vsel %vm238, %v868, 0
      %v913 = vsel %vm238, %v869, 0
      %v916 = vsel %vm238, %v870, 0
      %v919 = vsel %vm238, %v871, 0
      %v922 = vsel %vm238, %v872, 0
      %v925 = vsel %vm238, %v873, 0
      %927 = vmatprep.subr.mxu0 0.0
      %928 = vmatpush1.msra.mxu0 %v875
      %929 = vmatprep.subr.mxu0 0.0
      %930 = vmatpush1.msra.mxu0 %v876
      %931 = vmatprep.subr.mxu0 0.0
      %932 = vmatpush1.msra.mxu0 %v877
      %933 = vmatprep.subr.mxu0 0.0
      %934 = vmatpush1.msra.mxu0 %v878
      %935 = vmatprep.subr.mxu0 0.0
      %936 = vmatpush1.msra.mxu0 0.0
      %937 = vmatprep.subr.mxu0 0.0
      %938 = vmatpush1.msra.mxu0 0.0
      %939 = vmatprep.subr.mxu0 0.0
      %940 = vmatpush1.msra.mxu0 0.0
      %941 = vmatprep.subr.mxu0 0.0
      %942 = vmatpush1.msra.mxu0 0.0
      %943 = vmatprep.subr.mxu0 0.0
      %944 = vmatpush1.msra.mxu0 0.0
      %945 = vmatprep.subr.mxu0 0.0
      %946 = vmatpush1.msra.mxu0 0.0
      %947 = vmatprep.subr.mxu0 0.0
      %948 = vmatpush1.msra.mxu0 0.0
      %949 = vmatprep.subr.mxu0 0.0
      %950 = vmatpush1.msra.mxu0 0.0
      %951 = vmatprep.subr.mxu0 0.0
      %952 = vmatpush1.msra.mxu0 0.0
      %953 = vmatprep.subr.mxu0 0.0
      %954 = vmatpush1.msra.mxu0 0.0
      %955 = vmatprep.subr.mxu0 0.0
      %956 = vmatpush1.msra.mxu0 0.0
      %957 = vmatprep.subr.mxu0 0.0
      %958 = vmatpush1.msra.mxu0 0.0
      %959 = vmatprep.subr.mxu0 0.0
      %960 = vmatpush1.msra.mxu0 0.0
      %961 = vmatprep.subr.mxu0 0.0
      %962 = vmatpush1.msra.mxu0 0.0
      %963 = vmatprep.subr.mxu0 0.0
      %964 = vmatpush1.msra.mxu0 0.0
      %965 = vmatprep.subr.mxu0 0.0
      %966 = vmatpush1.msra.mxu0 0.0
      %967 = vmatprep.subr.mxu0 0.0
      %968 = vmatpush1.msra.mxu0 0.0
      %969 = vmatprep.subr.mxu0 0.0
      %970 = vmatpush1.msra.mxu0 0.0
      %971 = vmatprep.subr.mxu0 0.0
      %972 = vmatpush1.msra.mxu0 0.0
      %973 = vmatprep.subr.mxu0 0.0
      %974 = vmatpush1.msra.mxu0 0.0
      %975 = vmatprep.subr.mxu0 0.0
      %976 = vmatpush1.msra.mxu0 0.0
      %977 = vmatprep.subr.mxu0 0.0
      %978 = vmatpush1.msra.mxu0 0.0
      %979 = vmatprep.subr.mxu0 0.0
      %980 = vmatpush1.msra.mxu0 0.0
      %981 = vmatprep.subr.mxu0 0.0
      %982 = vmatpush1.msra.mxu0 0.0
      %983 = vmatprep.subr.mxu0 0.0
      %984 = vmatpush1.msra.mxu0 0.0
      %985 = vmatprep.subr.mxu0 0.0
      %986 = vmatpush1.msra.mxu0 0.0
      %987 = vmatprep.subr.mxu0 0.0
      %988 = vmatpush1.msra.mxu0 0.0
      %989 = vmatprep.subr.mxu0 0.0
      %990 = vmatpush1.msra.mxu0 0.0
      %991 = vmatprep.mubr.f32.mxu0 0.0
      %992 = vmatmul.mubr.f32.gmra.mrb[0].mxu0 %v880
      %v993 = vpop.f32.mrb[0].mxu0
      %v994 = vadd.f32 0.0, %v993
      %v995 = vpop.f32.mrb[0].mxu0
      %996 = vmatprep.mubr.f32.mxu0 0.0
      %997 = vmatmul.mubr.f32.gmra.mrb[0].mxu0 %v883
      %v998 = vpop.f32.mrb[0].mxu0
      %v999 = vadd.f32 0.0, %v998
      %v1000 = vpop.f32.mrb[0].mxu0
      %1001 = vmatprep.mubr.f32.mxu0 0.0
      %1002 = vmatmul.mubr.f32.gmra.mrb[0].mxu0 %v886
      %v1003 = vpop.f32.mrb[0].mxu0
      %v1004 = vadd.f32 0.0, %v1003
      %v1005 = vpop.f32.mrb[0].mxu0
      %1006 = vmatprep.mubr.f32.mxu0 0.0
      %1007 = vmatmul.mubr.f32.gmra.mrb[0].mxu0 %v889
      %v1008 = vpop.f32.mrb[0].mxu0
      %v1009 = vadd.f32 0.0, %v1008
      %v1010 = vpop.f32.mrb[0].mxu0
      %1011 = vmatprep.mubr.f32.mxu0 0.0
      %1012 = vmatmul.mubr.f32.gmra.mrb[0].mxu0 %v892
      %v1013 = vpop.f32.mrb[0].mxu0
      %v1014 = vadd.f32 0.0, %v1013
      %v1015 = vpop.f32.mrb[0].mxu0
      %1016 = vmatprep.mubr.f32.mxu0 0.0
      %1017 = vmatmul.mubr.f32.gmra.mrb[0].mxu0 %v895
      %v1018 = vpop.f32.mrb[0].mxu0
      %v1019 = vadd.f32 0.0, %v1018
      %v1020 = vpop.f32.mrb[0].mxu0
      %1021 = vmatprep.mubr.f32.mxu0 0.0
      %1022 = vmatmul.mubr.f32.gmra.mrb[0].mxu0 %v898
      %v1023 = vpop.f32.mrb[0].mxu0
      %v1024 = vadd.f32 0.0, %v1023
      %v1025 = vpop.f32.mrb[0].mxu0
      %1026 = vmatprep.mubr.f32.mxu0 0.0
      %1027 = vmatmul.mubr.f32.gmra.mrb[0].mxu0 %v901
      %v1028 = vpop.f32.mrb[0].mxu0
      %v1029 = vadd.f32 0.0, %v1028
      %v1030 = vpop.f32.mrb[0].mxu0
      %1031 = vmatprep.mubr.f32.mxu0 0.0
      %1032 = vmatmul.mubr.f32.gmra.mrb[0].mxu0 %v904
      %v1033 = vpop.f32.mrb[0].mxu0
      %v1034 = vadd.f32 0.0, %v1033
      %v1035 = vpop.f32.mrb[0].mxu0
      %1036 = vmatprep.mubr.f32.mxu0 0.0
      %1037 = vmatmul.mubr.f32.gmra.mrb[0].mxu0 %v907
      %v1038 = vpop.f32.mrb[0].mxu0
      %v1039 = vadd.f32 0.0, %v1038
      %v1040 = vpop.f32.mrb[0].mxu0
      %1041 = vmatprep.mubr.f32.mxu0 0.0
      %1042 = vmatmul.mubr.f32.gmra.mrb[0].mxu0 %v910
      %v1043 = vpop.f32.mrb[0].mxu0
      %v1044 = vadd.f32 0.0, %v1043
      %v1045 = vpop.f32.mrb[0].mxu0
      %1046 = vmatprep.mubr.f32.mxu0 0.0
      %1047 = vmatmul.mubr.f32.gmra.mrb[0].mxu0 %v913
      %v1048 = vpop.f32.mrb[0].mxu0
      %v1049 = vadd.f32 0.0, %v1048
      %v1050 = vpop.f32.mrb[0].mxu0
      %1051 = vmatprep.mubr.f32.mxu0 0.0
      %1052 = vmatmul.mubr.f32.gmra.mrb[0].mxu0 %v916
      %v1053 = vpop.f32.mrb[0].mxu0
      %v1054 = vadd.f32 0.0, %v1053
      %v1055 = vpop.f32.mrb[0].mxu0
      %1056 = vmatprep.mubr.f32.mxu0 0.0
      %1057 = vmatmul.mubr.f32.gmra.mrb[0].mxu0 %v919
      %v1058 = vpop.f32.mrb[0].mxu0
      %v1059 = vadd.f32 0.0, %v1058
      %v1060 = vpop.f32.mrb[0].mxu0
      %1061 = vmatprep.mubr.f32.mxu0 0.0
      %1062 = vmatmul.mubr.f32.gmra.mrb[0].mxu0 %v922
      %v1063 = vpop.f32.mrb[0].mxu0
      %v1064 = vadd.f32 0.0, %v1063
      %v1065 = vpop.f32.mrb[0].mxu0
      %1066 = vmatprep.mubr.f32.mxu0 0.0
      %1067 = vmatmul.mubr.f32.gmra.mrb[0].mxu0 %v925
      %v1068 = vpop.f32.mrb[0].mxu0
      %v1069 = vadd.f32 0.0, %v1068
      %v1070 = vpop.f32.mrb[0].mxu0
      %1071 = vdwg.mxu0
      %v1072 = vadd.f32 %v839, %v994
      %v1073 = vadd.f32 %v840, %v999
      %v1074 = vadd.f32 %v841, %v1004
      %v1075 = vadd.f32 %v842, %v1009
      %v1076 = vadd.f32 %v843, %v1014
      %v1077 = vadd.f32 %v844, %v1019
      %v1078 = vadd.f32 %v845, %v1024
      %v1079 = vadd.f32 %v846, %v1029
      %v1080 = vadd.f32 %v847, %v1034
      %v1081 = vadd.f32 %v848, %v1039
      %v1082 = vadd.f32 %v849, %v1044
      %v1083 = vadd.f32 %v850, %v1049
      %v1084 = vadd.f32 %v851, %v1054
      %v1085 = vadd.f32 %v852, %v1059
      %v1086 = vadd.f32 %v853, %v1064
      %v1087 = vadd.f32 %v854, %v1069
      %v1088 = vld [vmem:[%s857 + $0x1] sm:$0xff]
      %v1089 = vld [vmem:[%s857 + $0x9] sm:$0xff]
      %v1090 = vld [vmem:[%s857 + $0x19] sm:$0xff]
      %v1091 = vld [vmem:[%s857 + $0x21] sm:$0xff]
      %v1092 = vld [vmem:[%s857 + $0x31] sm:$0xff]
      %v1093 = vld [vmem:[%s857 + $0x39] sm:$0xff]
      %v1094 = vld [vmem:[%s857 + $0x49] sm:$0xff]
      %v1095 = vld [vmem:[%s857 + $0x51] sm:$0xff]
      %v1096 = vld [vmem:[%s857 + $0x61] sm:$0xff]
      %v1097 = vld [vmem:[%s857 + $0x69] sm:$0xff]
      %v1098 = vld [vmem:[%s857 + $0x79] sm:$0xff]
      %v1099 = vld [vmem:[%s857 + $0x81] sm:$0xff]
      %v1100 = vld [vmem:[%s857 + $0x91] sm:$0xff]
      %v1101 = vld [vmem:[%s857 + $0x99] sm:$0xff]
      %v1102 = vld [vmem:[%s857 + $0xa9] sm:$0xff]
      %v1103 = vld [vmem:[%s857 + $0xb1] sm:$0xff]
      %s1104 = scalar_lea.vmem %s1, 128
      %v1105 = vld [vmem:[%s1104] sm:$0xff]
      %v1106 = vld [vmem:[%s1104 + $0x8] sm:$0xff]
      %v1107 = vld [vmem:[%s1104 + $0x10] sm:$0xff]
      %v1108 = vld [vmem:[%s1104 + $0x18] sm:$0xff]
      %v1110 = vsel %vm238, %v1088, 0
      %v1113 = vsel %vm238, %v1089, 0
      %v1116 = vsel %vm238, %v1090, 0
      %v1119 = vsel %vm238, %v1091, 0
      %v1122 = vsel %vm238, %v1092, 0
      %v1125 = vsel %vm238, %v1093, 0
      %v1128 = vsel %vm238, %v1094, 0
      %v1131 = vsel %vm238, %v1095, 0
      %v1134 = vsel %vm238, %v1096, 0
      %v1137 = vsel %vm238, %v1097, 0
      %v1140 = vsel %vm238, %v1098, 0
      %v1143 = vsel %vm238, %v1099, 0
      %v1146 = vsel %vm238, %v1100, 0
      %v1149 = vsel %vm238, %v1101, 0
      %v1152 = vsel %vm238, %v1102, 0
      %v1155 = vsel %vm238, %v1103, 0
      %1157 = vmatprep.subr.mxu0 0.0
      %1158 = vmatpush1.msra.mxu0 %v1105
      %1159 = vmatprep.subr.mxu0 0.0
      %1160 = vmatpush1.msra.mxu0 %v1106
      %1161 = vmatprep.subr.mxu0 0.0
      %1162 = vmatpush1.msra.mxu0 %v1107
      %1163 = vmatprep.subr.mxu0 0.0
      %1164 = vmatpush1.msra.mxu0 %v1108
      %1165 = vmatprep.subr.mxu0 0.0
      %1166 = vmatpush1.msra.mxu0 0.0
      %1167 = vmatprep.subr.mxu0 0.0
      %1168 = vmatpush1.msra.mxu0 0.0
      %1169 = vmatprep.subr.mxu0 0.0
      %1170 = vmatpush1.msra.mxu0 0.0
      %1171 = vmatprep.subr.mxu0 0.0
      %1172 = vmatpush1.msra.mxu0 0.0
      %1173 = vmatprep.subr.mxu0 0.0
      %1174 = vmatpush1.msra.mxu0 0.0
      %1175 = vmatprep.subr.mxu0 0.0
      %1176 = vmatpush1.msra.mxu0 0.0
      %1177 = vmatprep.subr.mxu0 0.0
      %1178 = vmatpush1.msra.mxu0 0.0
      %1179 = vmatprep.subr.mxu0 0.0
      %1180 = vmatpush1.msra.mxu0 0.0
      %1181 = vmatprep.subr.mxu0 0.0
      %1182 = vmatpush1.msra.mxu0 0.0
      %1183 = vmatprep.subr.mxu0 0.0
      %1184 = vmatpush1.msra.mxu0 0.0
      %1185 = vmatprep.subr.mxu0 0.0
      %1186 = vmatpush1.msra.mxu0 0.0
      %1187 = vmatprep.subr.mxu0 0.0
      %1188 = vmatpush1.msra.mxu0 0.0
      %1189 = vmatprep.subr.mxu0 0.0
      %1190 = vmatpush1.msra.mxu0 0.0
      %1191 = vmatprep.subr.mxu0 0.0
      %1192 = vmatpush1.msra.mxu0 0.0
      %1193 = vmatprep.subr.mxu0 0.0
      %1194 = vmatpush1.msra.mxu0 0.0
      %1195 = vmatprep.subr.mxu0 0.0
      %1196 = vmatpush1.msra.mxu0 0.0
      %1197 = vmatprep.subr.mxu0 0.0
      %1198 = vmatpush1.msra.mxu0 0.0
      %1199 = vmatprep.subr.mxu0 0.0
      %1200 = vmatpush1.msra.mxu0 0.0
      %1201 = vmatprep.subr.mxu0 0.0
      %1202 = vmatpush1.msra.mxu0 0.0
      %1203 = vmatprep.subr.mxu0 0.0
      %1204 = vmatpush1.msra.mxu0 0.0
      %1205 = vmatprep.subr.mxu0 0.0
      %1206 = vmatpush1.msra.mxu0 0.0
      %1207 = vmatprep.subr.mxu0 0.0
      %1208 = vmatpush1.msra.mxu0 0.0
      %1209 = vmatprep.subr.mxu0 0.0
      %1210 = vmatpush1.msra.mxu0 0.0
      %1211 = vmatprep.subr.mxu0 0.0
      %1212 = vmatpush1.msra.mxu0 0.0
      %1213 = vmatprep.subr.mxu0 0.0
      %1214 = vmatpush1.msra.mxu0 0.0
      %1215 = vmatprep.subr.mxu0 0.0
      %1216 = vmatpush1.msra.mxu0 0.0
      %1217 = vmatprep.subr.mxu0 0.0
      %1218 = vmatpush1.msra.mxu0 0.0
      %1219 = vmatprep.subr.mxu0 0.0
      %1220 = vmatpush1.msra.mxu0 0.0
      %1221 = vmatprep.mubr.f32.mxu0 0.0
      %1222 = vmatmul.mubr.f32.gmra.mrb[0].mxu0 %v1110
      %v1223 = vpop.f32.mrb[0].mxu0
      %v1224 = vadd.f32 0.0, %v1223
      %v1225 = vpop.f32.mrb[0].mxu0
      %1226 = vmatprep.mubr.f32.mxu0 0.0
      %1227 = vmatmul.mubr.f32.gmra.mrb[0].mxu0 %v1113
      %v1228 = vpop.f32.mrb[0].mxu0
      %v1229 = vadd.f32 0.0, %v1228
      %v1230 = vpop.f32.mrb[0].mxu0
      %1231 = vmatprep.mubr.f32.mxu0 0.0
      %1232 = vmatmul.mubr.f32.gmra.mrb[0].mxu0 %v1116
      %v1233 = vpop.f32.mrb[0].mxu0
      %v1234 = vadd.f32 0.0, %v1233
      %v1235 = vpop.f32.mrb[0].mxu0
      %1236 = vmatprep.mubr.f32.mxu0 0.0
      %1237 = vmatmul.mubr.f32.gmra.mrb[0].mxu0 %v1119
      %v1238 = vpop.f32.mrb[0].mxu0
      %v1239 = vadd.f32 0.0, %v1238
      %v1240 = vpop.f32.mrb[0].mxu0
      %1241 = vmatprep.mubr.f32.mxu0 0.0
      %1242 = vmatmul.mubr.f32.gmra.mrb[0].mxu0 %v1122
      %v1243 = vpop.f32.mrb[0].mxu0
      %v1244 = vadd.f32 0.0, %v1243
      %v1245 = vpop.f32.mrb[0].mxu0
      %1246 = vmatprep.mubr.f32.mxu0 0.0
      %1247 = vmatmul.mubr.f32.gmra.mrb[0].mxu0 %v1125
      %v1248 = vpop.f32.mrb[0].mxu0
      %v1249 = vadd.f32 0.0, %v1248
      %v1250 = vpop.f32.mrb[0].mxu0
      %1251 = vmatprep.mubr.f32.mxu0 0.0
      %1252 = vmatmul.mubr.f32.gmra.mrb[0].mxu0 %v1128
      %v1253 = vpop.f32.mrb[0].mxu0
      %v1254 = vadd.f32 0.0, %v1253
      %v1255 = vpop.f32.mrb[0].mxu0
      %1256 = vmatprep.mubr.f32.mxu0 0.0
      %1257 = vmatmul.mubr.f32.gmra.mrb[0].mxu0 %v1131
      %v1258 = vpop.f32.mrb[0].mxu0
      %v1259 = vadd.f32 0.0, %v1258
      %v1260 = vpop.f32.mrb[0].mxu0
      %1261 = vmatprep.mubr.f32.mxu0 0.0
      %1262 = vmatmul.mubr.f32.gmra.mrb[0].mxu0 %v1134
      %v1263 = vpop.f32.mrb[0].mxu0
      %v1264 = vadd.f32 0.0, %v1263
      %v1265 = vpop.f32.mrb[0].mxu0
      %1266 = vmatprep.mubr.f32.mxu0 0.0
      %1267 = vmatmul.mubr.f32.gmra.mrb[0].mxu0 %v1137
      %v1268 = vpop.f32.mrb[0].mxu0
      %v1269 = vadd.f32 0.0, %v1268
      %v1270 = vpop.f32.mrb[0].mxu0
      %1271 = vmatprep.mubr.f32.mxu0 0.0
      %1272 = vmatmul.mubr.f32.gmra.mrb[0].mxu0 %v1140
      %v1273 = vpop.f32.mrb[0].mxu0
      %v1274 = vadd.f32 0.0, %v1273
      %v1275 = vpop.f32.mrb[0].mxu0
      %1276 = vmatprep.mubr.f32.mxu0 0.0
      %1277 = vmatmul.mubr.f32.gmra.mrb[0].mxu0 %v1143
      %v1278 = vpop.f32.mrb[0].mxu0
      %v1279 = vadd.f32 0.0, %v1278
      %v1280 = vpop.f32.mrb[0].mxu0
      %1281 = vmatprep.mubr.f32.mxu0 0.0
      %1282 = vmatmul.mubr.f32.gmra.mrb[0].mxu0 %v1146
      %v1283 = vpop.f32.mrb[0].mxu0
      %v1284 = vadd.f32 0.0, %v1283
      %v1285 = vpop.f32.mrb[0].mxu0
      %1286 = vmatprep.mubr.f32.mxu0 0.0
      %1287 = vmatmul.mubr.f32.gmra.mrb[0].mxu0 %v1149
      %v1288 = vpop.f32.mrb[0].mxu0
      %v1289 = vadd.f32 0.0, %v1288
      %v1290 = vpop.f32.mrb[0].mxu0
      %1291 = vmatprep.mubr.f32.mxu0 0.0
      %1292 = vmatmul.mubr.f32.gmra.mrb[0].mxu0 %v1152
      %v1293 = vpop.f32.mrb[0].mxu0
      %v1294 = vadd.f32 0.0, %v1293
      %v1295 = vpop.f32.mrb[0].mxu0
      %1296 = vmatprep.mubr.f32.mxu0 0.0
      %1297 = vmatmul.mubr.f32.gmra.mrb[0].mxu0 %v1155
      %v1298 = vpop.f32.mrb[0].mxu0
      %v1299 = vadd.f32 0.0, %v1298
      %v1300 = vpop.f32.mrb[0].mxu0
      %1301 = vdwg.mxu0
      %v1302 = vadd.f32 %v1072, %v1224
      %v1303 = vadd.f32 %v1073, %v1229
      %v1304 = vadd.f32 %v1074, %v1234
      %v1305 = vadd.f32 %v1075, %v1239
      %v1306 = vadd.f32 %v1076, %v1244
      %v1307 = vadd.f32 %v1077, %v1249
      %v1308 = vadd.f32 %v1078, %v1254
      %v1309 = vadd.f32 %v1079, %v1259
      %v1310 = vadd.f32 %v1080, %v1264
      %v1311 = vadd.f32 %v1081, %v1269
      %v1312 = vadd.f32 %v1082, %v1274
      %v1313 = vadd.f32 %v1083, %v1279
      %v1314 = vadd.f32 %v1084, %v1284
      %v1315 = vadd.f32 %v1085, %v1289
      %v1316 = vadd.f32 %v1086, %v1294
      %v1317 = vadd.f32 %v1087, %v1299
      %v1318 = vld [vmem:[%s857 + $0x2] sm:$0xff]
      %v1319 = vld [vmem:[%s857 + $0xa] sm:$0xff]
      %v1320 = vld [vmem:[%s857 + $0x1a] sm:$0xff]
      %v1321 = vld [vmem:[%s857 + $0x22] sm:$0xff]
      %v1322 = vld [vmem:[%s857 + $0x32] sm:$0xff]
      %v1323 = vld [vmem:[%s857 + $0x3a] sm:$0xff]
      %v1324 = vld [vmem:[%s857 + $0x4a] sm:$0xff]
      %v1325 = vld [vmem:[%s857 + $0x52] sm:$0xff]
      %v1326 = vld [vmem:[%s857 + $0x62] sm:$0xff]
      %v1327 = vld [vmem:[%s857 + $0x6a] sm:$0xff]
      %v1328 = vld [vmem:[%s857 + $0x7a] sm:$0xff]
      %v1329 = vld [vmem:[%s857 + $0x82] sm:$0xff]
      %v1330 = vld [vmem:[%s857 + $0x92] sm:$0xff]
      %v1331 = vld [vmem:[%s857 + $0x9a] sm:$0xff]
      %v1332 = vld [vmem:[%s857 + $0xaa] sm:$0xff]
      %v1333 = vld [vmem:[%s857 + $0xb2] sm:$0xff]
      %s1334 = scalar_lea.vmem %s1, 160
      %v1335 = vld [vmem:[%s1334] sm:$0xff]
      %v1336 = vld [vmem:[%s1334 + $0x8] sm:$0xff]
      %v1337 = vld [vmem:[%s1334 + $0x10] sm:$0xff]
      %v1338 = vld [vmem:[%s1334 + $0x18] sm:$0xff]
      %v1340 = vsel %vm238, %v1318, 0
      %v1343 = vsel %vm238, %v1319, 0
      %v1346 = vsel %vm238, %v1320, 0
      %v1349 = vsel %vm238, %v1321, 0
      %v1352 = vsel %vm238, %v1322, 0
      %v1355 = vsel %vm238, %v1323, 0
      %v1358 = vsel %vm238, %v1324, 0
      %v1361 = vsel %vm238, %v1325, 0
      %v1364 = vsel %vm238, %v1326, 0
      %v1367 = vsel %vm238, %v1327, 0
      %v1370 = vsel %vm238, %v1328, 0
      %v1373 = vsel %vm238, %v1329, 0
      %v1376 = vsel %vm238, %v1330, 0
      %v1379 = vsel %vm238, %v1331, 0
      %v1382 = vsel %vm238, %v1332, 0
      %v1385 = vsel %vm238, %v1333, 0
      %1387 = vmatprep.subr.mxu0 0.0
      %1388 = vmatpush1.msra.mxu0 %v1335
      %1389 = vmatprep.subr.mxu0 0.0
      %1390 = vmatpush1.msra.mxu0 %v1336
      %1391 = vmatprep.subr.mxu0 0.0
      %1392 = vmatpush1.msra.mxu0 %v1337
      %1393 = vmatprep.subr.mxu0 0.0
      %1394 = vmatpush1.msra.mxu0 %v1338
      %1395 = vmatprep.subr.mxu0 0.0
      %1396 = vmatpush1.msra.mxu0 0.0
      %1397 = vmatprep.subr.mxu0 0.0
      %1398 = vmatpush1.msra.mxu0 0.0
      %1399 = vmatprep.subr.mxu0 0.0
      %1400 = vmatpush1.msra.mxu0 0.0
      %1401 = vmatprep.subr.mxu0 0.0
      %1402 = vmatpush1.msra.mxu0 0.0
      %1403 = vmatprep.subr.mxu0 0.0
      %1404 = vmatpush1.msra.mxu0 0.0
      %1405 = vmatprep.subr.mxu0 0.0
      %1406 = vmatpush1.msra.mxu0 0.0
      %1407 = vmatprep.subr.mxu0 0.0
      %1408 = vmatpush1.msra.mxu0 0.0
      %1409 = vmatprep.subr.mxu0 0.0
      %1410 = vmatpush1.msra.mxu0 0.0
      %1411 = vmatprep.subr.mxu0 0.0
      %1412 = vmatpush1.msra.mxu0 0.0
      %1413 = vmatprep.subr.mxu0 0.0
      %1414 = vmatpush1.msra.mxu0 0.0
      %1415 = vmatprep.subr.mxu0 0.0
      %1416 = vmatpush1.msra.mxu0 0.0
      %1417 = vmatprep.subr.mxu0 0.0
      %1418 = vmatpush1.msra.mxu0 0.0
      %1419 = vmatprep.subr.mxu0 0.0
      %1420 = vmatpush1.msra.mxu0 0.0
      %1421 = vmatprep.subr.mxu0 0.0
      %1422 = vmatpush1.msra.mxu0 0.0
      %1423 = vmatprep.subr.mxu0 0.0
      %1424 = vmatpush1.msra.mxu0 0.0
      %1425 = vmatprep.subr.mxu0 0.0
      %1426 = vmatpush1.msra.mxu0 0.0
      %1427 = vmatprep.subr.mxu0 0.0
      %1428 = vmatpush1.msra.mxu0 0.0
      %1429 = vmatprep.subr.mxu0 0.0
      %1430 = vmatpush1.msra.mxu0 0.0
      %1431 = vmatprep.subr.mxu0 0.0
      %1432 = vmatpush1.msra.mxu0 0.0
      %1433 = vmatprep.subr.mxu0 0.0
      %1434 = vmatpush1.msra.mxu0 0.0
      %1435 = vmatprep.subr.mxu0 0.0
      %1436 = vmatpush1.msra.mxu0 0.0
      %1437 = vmatprep.subr.mxu0 0.0
      %1438 = vmatpush1.msra.mxu0 0.0
      %1439 = vmatprep.subr.mxu0 0.0
      %1440 = vmatpush1.msra.mxu0 0.0
      %1441 = vmatprep.subr.mxu0 0.0
      %1442 = vmatpush1.msra.mxu0 0.0
      %1443 = vmatprep.subr.mxu0 0.0
      %1444 = vmatpush1.msra.mxu0 0.0
      %1445 = vmatprep.subr.mxu0 0.0
      %1446 = vmatpush1.msra.mxu0 0.0
      %1447 = vmatprep.subr.mxu0 0.0
      %1448 = vmatpush1.msra.mxu0 0.0
      %1449 = vmatprep.subr.mxu0 0.0
      %1450 = vmatpush1.msra.mxu0 0.0
      %1451 = vmatprep.mubr.f32.mxu0 0.0
      %1452 = vmatmul.mubr.f32.gmra.mrb[0].mxu0 %v1340
      %v1453 = vpop.f32.mrb[0].mxu0
      %v1454 = vadd.f32 0.0, %v1453
      %v1455 = vpop.f32.mrb[0].mxu0
      %1456 = vmatprep.mubr.f32.mxu0 0.0
      %1457 = vmatmul.mubr.f32.gmra.mrb[0].mxu0 %v1343
      %v1458 = vpop.f32.mrb[0].mxu0
      %v1459 = vadd.f32 0.0, %v1458
      %v1460 = vpop.f32.mrb[0].mxu0
      %1461 = vmatprep.mubr.f32.mxu0 0.0
      %1462 = vmatmul.mubr.f32.gmra.mrb[0].mxu0 %v1346
      %v1463 = vpop.f32.mrb[0].mxu0
      %v1464 = vadd.f32 0.0, %v1463
      %v1465 = vpop.f32.mrb[0].mxu0
      %1466 = vmatprep.mubr.f32.mxu0 0.0
      %1467 = vmatmul.mubr.f32.gmra.mrb[0].mxu0 %v1349
      %v1468 = vpop.f32.mrb[0].mxu0
      %v1469 = vadd.f32 0.0, %v1468
      %v1470 = vpop.f32.mrb[0].mxu0
      %1471 = vmatprep.mubr.f32.mxu0 0.0
      %1472 = vmatmul.mubr.f32.gmra.mrb[0].mxu0 %v1352
      %v1473 = vpop.f32.mrb[0].mxu0
      %v1474 = vadd.f32 0.0, %v1473
      %v1475 = vpop.f32.mrb[0].mxu0
      %1476 = vmatprep.mubr.f32.mxu0 0.0
      %1477 = vmatmul.mubr.f32.gmra.mrb[0].mxu0 %v1355
      %v1478 = vpop.f32.mrb[0].mxu0
      %v1479 = vadd.f32 0.0, %v1478
      %v1480 = vpop.f32.mrb[0].mxu0
      %1481 = vmatprep.mubr.f32.mxu0 0.0
      %1482 = vmatmul.mubr.f32.gmra.mrb[0].mxu0 %v1358
      %v1483 = vpop.f32.mrb[0].mxu0
      %v1484 = vadd.f32 0.0, %v1483
      %v1485 = vpop.f32.mrb[0].mxu0
      %1486 = vmatprep.mubr.f32.mxu0 0.0
      %1487 = vmatmul.mubr.f32.gmra.mrb[0].mxu0 %v1361
      %v1488 = vpop.f32.mrb[0].mxu0
      %v1489 = vadd.f32 0.0, %v1488
      %v1490 = vpop.f32.mrb[0].mxu0
      %1491 = vmatprep.mubr.f32.mxu0 0.0
      %1492 = vmatmul.mubr.f32.gmra.mrb[0].mxu0 %v1364
      %v1493 = vpop.f32.mrb[0].mxu0
      %v1494 = vadd.f32 0.0, %v1493
      %v1495 = vpop.f32.mrb[0].mxu0
      %1496 = vmatprep.mubr.f32.mxu0 0.0
      %1497 = vmatmul.mubr.f32.gmra.mrb[0].mxu0 %v1367
      %v1498 = vpop.f32.mrb[0].mxu0
      %v1499 = vadd.f32 0.0, %v1498
      %v1500 = vpop.f32.mrb[0].mxu0
      %1501 = vmatprep.mubr.f32.mxu0 0.0
      %1502 = vmatmul.mubr.f32.gmra.mrb[0].mxu0 %v1370
      %v1503 = vpop.f32.mrb[0].mxu0
      %v1504 = vadd.f32 0.0, %v1503
      %v1505 = vpop.f32.mrb[0].mxu0
      %1506 = vmatprep.mubr.f32.mxu0 0.0
      %1507 = vmatmul.mubr.f32.gmra.mrb[0].mxu0 %v1373
      %v1508 = vpop.f32.mrb[0].mxu0
      %v1509 = vadd.f32 0.0, %v1508
      %v1510 = vpop.f32.mrb[0].mxu0
      %1511 = vmatprep.mubr.f32.mxu0 0.0
      %1512 = vmatmul.mubr.f32.gmra.mrb[0].mxu0 %v1376
      %v1513 = vpop.f32.mrb[0].mxu0
      %v1514 = vadd.f32 0.0, %v1513
      %v1515 = vpop.f32.mrb[0].mxu0
      %1516 = vmatprep.mubr.f32.mxu0 0.0
      %1517 = vmatmul.mubr.f32.gmra.mrb[0].mxu0 %v1379
      %v1518 = vpop.f32.mrb[0].mxu0
      %v1519 = vadd.f32 0.0, %v1518
      %v1520 = vpop.f32.mrb[0].mxu0
      %1521 = vmatprep.mubr.f32.mxu0 0.0
      %1522 = vmatmul.mubr.f32.gmra.mrb[0].mxu0 %v1382
      %v1523 = vpop.f32.mrb[0].mxu0
      %v1524 = vadd.f32 0.0, %v1523
      %v1525 = vpop.f32.mrb[0].mxu0
      %1526 = vmatprep.mubr.f32.mxu0 0.0
      %1527 = vmatmul.mubr.f32.gmra.mrb[0].mxu0 %v1385
      %v1528 = vpop.f32.mrb[0].mxu0
      %v1529 = vadd.f32 0.0, %v1528
      %v1530 = vpop.f32.mrb[0].mxu0
      %1531 = vdwg.mxu0
      %v1532 = vadd.f32 %v1302, %v1454
      %v1533 = vadd.f32 %v1303, %v1459
      %v1534 = vadd.f32 %v1304, %v1464
      %v1535 = vadd.f32 %v1305, %v1469
      %v1536 = vadd.f32 %v1306, %v1474
      %v1537 = vadd.f32 %v1307, %v1479
      %v1538 = vadd.f32 %v1308, %v1484
      %v1539 = vadd.f32 %v1309, %v1489
      %v1540 = vadd.f32 %v1310, %v1494
      %v1541 = vadd.f32 %v1311, %v1499
      %v1542 = vadd.f32 %v1312, %v1504
      %v1543 = vadd.f32 %v1313, %v1509
      %v1544 = vadd.f32 %v1314, %v1514
      %v1545 = vadd.f32 %v1315, %v1519
      %v1546 = vadd.f32 %v1316, %v1524
      %v1547 = vadd.f32 %v1317, %v1529
      %s1548 = sadd.s32 %s194, 2
      %s1549 = smul.u32 %s1548, 24
      %s1550 = scalar_lea.vmem %s183, %s1549
      %v1551 = vld [vmem:[%s1550] sm:$0xff]
      %v1552 = vld [vmem:[%s1550 + $0x8] sm:$0xff]
      %v1553 = vld [vmem:[%s1550 + $0x18] sm:$0xff]
      %v1554 = vld [vmem:[%s1550 + $0x20] sm:$0xff]
      %v1555 = vld [vmem:[%s1550 + $0x30] sm:$0xff]
      %v1556 = vld [vmem:[%s1550 + $0x38] sm:$0xff]
      %v1557 = vld [vmem:[%s1550 + $0x48] sm:$0xff]
      %v1558 = vld [vmem:[%s1550 + $0x50] sm:$0xff]
      %v1559 = vld [vmem:[%s1550 + $0x60] sm:$0xff]
      %v1560 = vld [vmem:[%s1550 + $0x68] sm:$0xff]
      %v1561 = vld [vmem:[%s1550 + $0x78] sm:$0xff]
      %v1562 = vld [vmem:[%s1550 + $0x80] sm:$0xff]
      %v1563 = vld [vmem:[%s1550 + $0x90] sm:$0xff]
      %v1564 = vld [vmem:[%s1550 + $0x98] sm:$0xff]
      %v1565 = vld [vmem:[%s1550 + $0xa8] sm:$0xff]
      %v1566 = vld [vmem:[%s1550 + $0xb0] sm:$0xff]
      %s1567 = scalar_lea.vmem %s1, 192
      %v1568 = vld [vmem:[%s1567] sm:$0xff]
      %v1569 = vld [vmem:[%s1567 + $0x8] sm:$0xff]
      %v1570 = vld [vmem:[%s1567 + $0x10] sm:$0xff]
      %v1571 = vld [vmem:[%s1567 + $0x18] sm:$0xff]
      %v1573 = vsel %vm238, %v1551, 0
      %v1576 = vsel %vm238, %v1552, 0
      %v1579 = vsel %vm238, %v1553, 0
      %v1582 = vsel %vm238, %v1554, 0
      %v1585 = vsel %vm238, %v1555, 0
      %v1588 = vsel %vm238, %v1556, 0
      %v1591 = vsel %vm238, %v1557, 0
      %v1594 = vsel %vm238, %v1558, 0
      %v1597 = vsel %vm238, %v1559, 0
      %v1600 = vsel %vm238, %v1560, 0
      %v1603 = vsel %vm238, %v1561, 0
      %v1606 = vsel %vm238, %v1562, 0
      %v1609 = vsel %vm238, %v1563, 0
      %v1612 = vsel %vm238, %v1564, 0
      %v1615 = vsel %vm238, %v1565, 0
      %v1618 = vsel %vm238, %v1566, 0
      %1620 = vmatprep.subr.mxu0 0.0
      %1621 = vmatpush1.msra.mxu0 %v1568
      %1622 = vmatprep.subr.mxu0 0.0
      %1623 = vmatpush1.msra.mxu0 %v1569
      %1624 = vmatprep.subr.mxu0 0.0
      %1625 = vmatpush1.msra.mxu0 %v1570
      %1626 = vmatprep.subr.mxu0 0.0
      %1627 = vmatpush1.msra.mxu0 %v1571
      %1628 = vmatprep.subr.mxu0 0.0
      %1629 = vmatpush1.msra.mxu0 0.0
      %1630 = vmatprep.subr.mxu0 0.0
      %1631 = vmatpush1.msra.mxu0 0.0
      %1632 = vmatprep.subr.mxu0 0.0
      %1633 = vmatpush1.msra.mxu0 0.0
      %1634 = vmatprep.subr.mxu0 0.0
      %1635 = vmatpush1.msra.mxu0 0.0
      %1636 = vmatprep.subr.mxu0 0.0
      %1637 = vmatpush1.msra.mxu0 0.0
      %1638 = vmatprep.subr.mxu0 0.0
      %1639 = vmatpush1.msra.mxu0 0.0
      %1640 = vmatprep.subr.mxu0 0.0
      %1641 = vmatpush1.msra.mxu0 0.0
      %1642 = vmatprep.subr.mxu0 0.0
      %1643 = vmatpush1.msra.mxu0 0.0
      %1644 = vmatprep.subr.mxu0 0.0
      %1645 = vmatpush1.msra.mxu0 0.0
      %1646 = vmatprep.subr.mxu0 0.0
      %1647 = vmatpush1.msra.mxu0 0.0
      %1648 = vmatprep.subr.mxu0 0.0
      %1649 = vmatpush1.msra.mxu0 0.0
      %1650 = vmatprep.subr.mxu0 0.0
      %1651 = vmatpush1.msra.mxu0 0.0
      %1652 = vmatprep.subr.mxu0 0.0
      %1653 = vmatpush1.msra.mxu0 0.0
      %1654 = vmatprep.subr.mxu0 0.0
      %1655 = vmatpush1.msra.mxu0 0.0
      %1656 = vmatprep.subr.mxu0 0.0
      %1657 = vmatpush1.msra.mxu0 0.0
      %1658 = vmatprep.subr.mxu0 0.0
      %1659 = vmatpush1.msra.mxu0 0.0
      %1660 = vmatprep.subr.mxu0 0.0
      %1661 = vmatpush1.msra.mxu0 0.0
      %1662 = vmatprep.subr.mxu0 0.0
      %1663 = vmatpush1.msra.mxu0 0.0
      %1664 = vmatprep.subr.mxu0 0.0
      %1665 = vmatpush1.msra.mxu0 0.0
      %1666 = vmatprep.subr.mxu0 0.0
      %1667 = vmatpush1.msra.mxu0 0.0
      %1668 = vmatprep.subr.mxu0 0.0
      %1669 = vmatpush1.msra.mxu0 0.0
      %1670 = vmatprep.subr.mxu0 0.0
      %1671 = vmatpush1.msra.mxu0 0.0
      %1672 = vmatprep.subr.mxu0 0.0
      %1673 = vmatpush1.msra.mxu0 0.0
      %1674 = vmatprep.subr.mxu0 0.0
      %1675 = vmatpush1.msra.mxu0 0.0
      %1676 = vmatprep.subr.mxu0 0.0
      %1677 = vmatpush1.msra.mxu0 0.0
      %1678 = vmatprep.subr.mxu0 0.0
      %1679 = vmatpush1.msra.mxu0 0.0
      %1680 = vmatprep.subr.mxu0 0.0
      %1681 = vmatpush1.msra.mxu0 0.0
      %1682 = vmatprep.subr.mxu0 0.0
      %1683 = vmatpush1.msra.mxu0 0.0
      %1684 = vmatprep.mubr.f32.mxu0 0.0
      %1685 = vmatmul.mubr.f32.gmra.mrb[0].mxu0 %v1573
      %v1686 = vpop.f32.mrb[0].mxu0
      %v1687 = vadd.f32 0.0, %v1686
      %v1688 = vpop.f32.mrb[0].mxu0
      %1689 = vmatprep.mubr.f32.mxu0 0.0
      %1690 = vmatmul.mubr.f32.gmra.mrb[0].mxu0 %v1576
      %v1691 = vpop.f32.mrb[0].mxu0
      %v1692 = vadd.f32 0.0, %v1691
      %v1693 = vpop.f32.mrb[0].mxu0
      %1694 = vmatprep.mubr.f32.mxu0 0.0
      %1695 = vmatmul.mubr.f32.gmra.mrb[0].mxu0 %v1579
      %v1696 = vpop.f32.mrb[0].mxu0
      %v1697 = vadd.f32 0.0, %v1696
      %v1698 = vpop.f32.mrb[0].mxu0
      %1699 = vmatprep.mubr.f32.mxu0 0.0
      %1700 = vmatmul.mubr.f32.gmra.mrb[0].mxu0 %v1582
      %v1701 = vpop.f32.mrb[0].mxu0
      %v1702 = vadd.f32 0.0, %v1701
      %v1703 = vpop.f32.mrb[0].mxu0
      %1704 = vmatprep.mubr.f32.mxu0 0.0
      %1705 = vmatmul.mubr.f32.gmra.mrb[0].mxu0 %v1585
      %v1706 = vpop.f32.mrb[0].mxu0
      %v1707 = vadd.f32 0.0, %v1706
      %v1708 = vpop.f32.mrb[0].mxu0
      %1709 = vmatprep.mubr.f32.mxu0 0.0
      %1710 = vmatmul.mubr.f32.gmra.mrb[0].mxu0 %v1588
      %v1711 = vpop.f32.mrb[0].mxu0
      %v1712 = vadd.f32 0.0, %v1711
      %v1713 = vpop.f32.mrb[0].mxu0
      %1714 = vmatprep.mubr.f32.mxu0 0.0
      %1715 = vmatmul.mubr.f32.gmra.mrb[0].mxu0 %v1591
      %v1716 = vpop.f32.mrb[0].mxu0
      %v1717 = vadd.f32 0.0, %v1716
      %v1718 = vpop.f32.mrb[0].mxu0
      %1719 = vmatprep.mubr.f32.mxu0 0.0
      %1720 = vmatmul.mubr.f32.gmra.mrb[0].mxu0 %v1594
      %v1721 = vpop.f32.mrb[0].mxu0
      %v1722 = vadd.f32 0.0, %v1721
      %v1723 = vpop.f32.mrb[0].mxu0
      %1724 = vmatprep.mubr.f32.mxu0 0.0
      %1725 = vmatmul.mubr.f32.gmra.mrb[0].mxu0 %v1597
      %v1726 = vpop.f32.mrb[0].mxu0
      %v1727 = vadd.f32 0.0, %v1726
      %v1728 = vpop.f32.mrb[0].mxu0
      %1729 = vmatprep.mubr.f32.mxu0 0.0
      %1730 = vmatmul.mubr.f32.gmra.mrb[0].mxu0 %v1600
      %v1731 = vpop.f32.mrb[0].mxu0
      %v1732 = vadd.f32 0.0, %v1731
      %v1733 = vpop.f32.mrb[0].mxu0
      %1734 = vmatprep.mubr.f32.mxu0 0.0
      %1735 = vmatmul.mubr.f32.gmra.mrb[0].mxu0 %v1603
      %v1736 = vpop.f32.mrb[0].mxu0
      %v1737 = vadd.f32 0.0, %v1736
      %v1738 = vpop.f32.mrb[0].mxu0
      %1739 = vmatprep.mubr.f32.mxu0 0.0
      %1740 = vmatmul.mubr.f32.gmra.mrb[0].mxu0 %v1606
      %v1741 = vpop.f32.mrb[0].mxu0
      %v1742 = vadd.f32 0.0, %v1741
      %v1743 = vpop.f32.mrb[0].mxu0
      %1744 = vmatprep.mubr.f32.mxu0 0.0
      %1745 = vmatmul.mubr.f32.gmra.mrb[0].mxu0 %v1609
      %v1746 = vpop.f32.mrb[0].mxu0
      %v1747 = vadd.f32 0.0, %v1746
      %v1748 = vpop.f32.mrb[0].mxu0
      %1749 = vmatprep.mubr.f32.mxu0 0.0
      %1750 = vmatmul.mubr.f32.gmra.mrb[0].mxu0 %v1612
      %v1751 = vpop.f32.mrb[0].mxu0
      %v1752 = vadd.f32 0.0, %v1751
      %v1753 = vpop.f32.mrb[0].mxu0
      %1754 = vmatprep.mubr.f32.mxu0 0.0
      %1755 = vmatmul.mubr.f32.gmra.mrb[0].mxu0 %v1615
      %v1756 = vpop.f32.mrb[0].mxu0
      %v1757 = vadd.f32 0.0, %v1756
      %v1758 = vpop.f32.mrb[0].mxu0
      %1759 = vmatprep.mubr.f32.mxu0 0.0
      %1760 = vmatmul.mubr.f32.gmra.mrb[0].mxu0 %v1618
      %v1761 = vpop.f32.mrb[0].mxu0
      %v1762 = vadd.f32 0.0, %v1761
      %v1763 = vpop.f32.mrb[0].mxu0
      %1764 = vdwg.mxu0
      %v1765 = vadd.f32 %v1532, %v1687
      %v1766 = vadd.f32 %v1533, %v1692
      %v1767 = vadd.f32 %v1534, %v1697
      %v1768 = vadd.f32 %v1535, %v1702
      %v1769 = vadd.f32 %v1536, %v1707
      %v1770 = vadd.f32 %v1537, %v1712
      %v1771 = vadd.f32 %v1538, %v1717
      %v1772 = vadd.f32 %v1539, %v1722
      %v1773 = vadd.f32 %v1540, %v1727
      %v1774 = vadd.f32 %v1541, %v1732
      %v1775 = vadd.f32 %v1542, %v1737
      %v1776 = vadd.f32 %v1543, %v1742
      %v1777 = vadd.f32 %v1544, %v1747
      %v1778 = vadd.f32 %v1545, %v1752
      %v1779 = vadd.f32 %v1546, %v1757
      %v1780 = vadd.f32 %v1547, %v1762
      %v1781 = vld [vmem:[%s1550 + $0x1] sm:$0xff]
      %v1782 = vld [vmem:[%s1550 + $0x9] sm:$0xff]
      %v1783 = vld [vmem:[%s1550 + $0x19] sm:$0xff]
      %v1784 = vld [vmem:[%s1550 + $0x21] sm:$0xff]
      %v1785 = vld [vmem:[%s1550 + $0x31] sm:$0xff]
      %v1786 = vld [vmem:[%s1550 + $0x39] sm:$0xff]
      %v1787 = vld [vmem:[%s1550 + $0x49] sm:$0xff]
      %v1788 = vld [vmem:[%s1550 + $0x51] sm:$0xff]
      %v1789 = vld [vmem:[%s1550 + $0x61] sm:$0xff]
      %v1790 = vld [vmem:[%s1550 + $0x69] sm:$0xff]
      %v1791 = vld [vmem:[%s1550 + $0x79] sm:$0xff]
      %v1792 = vld [vmem:[%s1550 + $0x81] sm:$0xff]
      %v1793 = vld [vmem:[%s1550 + $0x91] sm:$0xff]
      %v1794 = vld [vmem:[%s1550 + $0x99] sm:$0xff]
      %v1795 = vld [vmem:[%s1550 + $0xa9] sm:$0xff]
      %v1796 = vld [vmem:[%s1550 + $0xb1] sm:$0xff]
      %s1797 = scalar_lea.vmem %s1, 224
      %v1798 = vld [vmem:[%s1797] sm:$0xff]
      %v1799 = vld [vmem:[%s1797 + $0x8] sm:$0xff]
      %v1800 = vld [vmem:[%s1797 + $0x10] sm:$0xff]
      %v1801 = vld [vmem:[%s1797 + $0x18] sm:$0xff]
      %v1803 = vsel %vm238, %v1781, 0
      %v1806 = vsel %vm238, %v1782, 0
      %v1809 = vsel %vm238, %v1783, 0
      %v1812 = vsel %vm238, %v1784, 0
      %v1815 = vsel %vm238, %v1785, 0
      %v1818 = vsel %vm238, %v1786, 0
      %v1821 = vsel %vm238, %v1787, 0
      %v1824 = vsel %vm238, %v1788, 0
      %v1827 = vsel %vm238, %v1789, 0
      %v1830 = vsel %vm238, %v1790, 0
      %v1833 = vsel %vm238, %v1791, 0
      %v1836 = vsel %vm238, %v1792, 0
      %v1839 = vsel %vm238, %v1793, 0
      %v1842 = vsel %vm238, %v1794, 0
      %v1845 = vsel %vm238, %v1795, 0
      %v1848 = vsel %vm238, %v1796, 0
      %1850 = vmatprep.subr.mxu0 0.0
      %1851 = vmatpush1.msra.mxu0 %v1798
      %1852 = vmatprep.subr.mxu0 0.0
      %1853 = vmatpush1.msra.mxu0 %v1799
      %1854 = vmatprep.subr.mxu0 0.0
      %1855 = vmatpush1.msra.mxu0 %v1800
      %1856 = vmatprep.subr.mxu0 0.0
      %1857 = vmatpush1.msra.mxu0 %v1801
      %1858 = vmatprep.subr.mxu0 0.0
      %1859 = vmatpush1.msra.mxu0 0.0
      %1860 = vmatprep.subr.mxu0 0.0
      %1861 = vmatpush1.msra.mxu0 0.0
      %1862 = vmatprep.subr.mxu0 0.0
      %1863 = vmatpush1.msra.mxu0 0.0
      %1864 = vmatprep.subr.mxu0 0.0
      %1865 = vmatpush1.msra.mxu0 0.0
      %1866 = vmatprep.subr.mxu0 0.0
      %1867 = vmatpush1.msra.mxu0 0.0
      %1868 = vmatprep.subr.mxu0 0.0
      %1869 = vmatpush1.msra.mxu0 0.0
      %1870 = vmatprep.subr.mxu0 0.0
      %1871 = vmatpush1.msra.mxu0 0.0
      %1872 = vmatprep.subr.mxu0 0.0
      %1873 = vmatpush1.msra.mxu0 0.0
      %1874 = vmatprep.subr.mxu0 0.0
      %1875 = vmatpush1.msra.mxu0 0.0
      %1876 = vmatprep.subr.mxu0 0.0
      %1877 = vmatpush1.msra.mxu0 0.0
      %1878 = vmatprep.subr.mxu0 0.0
      %1879 = vmatpush1.msra.mxu0 0.0
      %1880 = vmatprep.subr.mxu0 0.0
      %1881 = vmatpush1.msra.mxu0 0.0
      %1882 = vmatprep.subr.mxu0 0.0
      %1883 = vmatpush1.msra.mxu0 0.0
      %1884 = vmatprep.subr.mxu0 0.0
      %1885 = vmatpush1.msra.mxu0 0.0
      %1886 = vmatprep.subr.mxu0 0.0
      %1887 = vmatpush1.msra.mxu0 0.0
      %1888 = vmatprep.subr.mxu0 0.0
      %1889 = vmatpush1.msra.mxu0 0.0
      %1890 = vmatprep.subr.mxu0 0.0
      %1891 = vmatpush1.msra.mxu0 0.0
      %1892 = vmatprep.subr.mxu0 0.0
      %1893 = vmatpush1.msra.mxu0 0.0
      %1894 = vmatprep.subr.mxu0 0.0
      %1895 = vmatpush1.msra.mxu0 0.0
      %1896 = vmatprep.subr.mxu0 0.0
      %1897 = vmatpush1.msra.mxu0 0.0
      %1898 = vmatprep.subr.mxu0 0.0
      %1899 = vmatpush1.msra.mxu0 0.0
      %1900 = vmatprep.subr.mxu0 0.0
      %1901 = vmatpush1.msra.mxu0 0.0
      %1902 = vmatprep.subr.mxu0 0.0
      %1903 = vmatpush1.msra.mxu0 0.0
      %1904 = vmatprep.subr.mxu0 0.0
      %1905 = vmatpush1.msra.mxu0 0.0
      %1906 = vmatprep.subr.mxu0 0.0
      %1907 = vmatpush1.msra.mxu0 0.0
      %1908 = vmatprep.subr.mxu0 0.0
      %1909 = vmatpush1.msra.mxu0 0.0
      %1910 = vmatprep.subr.mxu0 0.0
      %1911 = vmatpush1.msra.mxu0 0.0
      %1912 = vmatprep.subr.mxu0 0.0
      %1913 = vmatpush1.msra.mxu0 0.0
      %1914 = vmatprep.mubr.f32.mxu0 0.0
      %1915 = vmatmul.mubr.f32.gmra.mrb[0].mxu0 %v1803
      %v1916 = vpop.f32.mrb[0].mxu0
      %v1917 = vadd.f32 0.0, %v1916
      %v1918 = vpop.f32.mrb[0].mxu0
      %1919 = vmatprep.mubr.f32.mxu0 0.0
      %1920 = vmatmul.mubr.f32.gmra.mrb[0].mxu0 %v1806
      %v1921 = vpop.f32.mrb[0].mxu0
      %v1922 = vadd.f32 0.0, %v1921
      %v1923 = vpop.f32.mrb[0].mxu0
      %1924 = vmatprep.mubr.f32.mxu0 0.0
      %1925 = vmatmul.mubr.f32.gmra.mrb[0].mxu0 %v1809
      %v1926 = vpop.f32.mrb[0].mxu0
      %v1927 = vadd.f32 0.0, %v1926
      %v1928 = vpop.f32.mrb[0].mxu0
      %1929 = vmatprep.mubr.f32.mxu0 0.0
      %1930 = vmatmul.mubr.f32.gmra.mrb[0].mxu0 %v1812
      %v1931 = vpop.f32.mrb[0].mxu0
      %v1932 = vadd.f32 0.0, %v1931
      %v1933 = vpop.f32.mrb[0].mxu0
      %1934 = vmatprep.mubr.f32.mxu0 0.0
      %1935 = vmatmul.mubr.f32.gmra.mrb[0].mxu0 %v1815
      %v1936 = vpop.f32.mrb[0].mxu0
      %v1937 = vadd.f32 0.0, %v1936
      %v1938 = vpop.f32.mrb[0].mxu0
      %1939 = vmatprep.mubr.f32.mxu0 0.0
      %1940 = vmatmul.mubr.f32.gmra.mrb[0].mxu0 %v1818
      %v1941 = vpop.f32.mrb[0].mxu0
      %v1942 = vadd.f32 0.0, %v1941
      %v1943 = vpop.f32.mrb[0].mxu0
      %1944 = vmatprep.mubr.f32.mxu0 0.0
      %1945 = vmatmul.mubr.f32.gmra.mrb[0].mxu0 %v1821
      %v1946 = vpop.f32.mrb[0].mxu0
      %v1947 = vadd.f32 0.0, %v1946
      %v1948 = vpop.f32.mrb[0].mxu0
      %1949 = vmatprep.mubr.f32.mxu0 0.0
      %1950 = vmatmul.mubr.f32.gmra.mrb[0].mxu0 %v1824
      %v1951 = vpop.f32.mrb[0].mxu0
      %v1952 = vadd.f32 0.0, %v1951
      %v1953 = vpop.f32.mrb[0].mxu0
      %1954 = vmatprep.mubr.f32.mxu0 0.0
      %1955 = vmatmul.mubr.f32.gmra.mrb[0].mxu0 %v1827
      %v1956 = vpop.f32.mrb[0].mxu0
      %v1957 = vadd.f32 0.0, %v1956
      %v1958 = vpop.f32.mrb[0].mxu0
      %1959 = vmatprep.mubr.f32.mxu0 0.0
      %1960 = vmatmul.mubr.f32.gmra.mrb[0].mxu0 %v1830
      %v1961 = vpop.f32.mrb[0].mxu0
      %v1962 = vadd.f32 0.0, %v1961
      %v1963 = vpop.f32.mrb[0].mxu0
      %1964 = vmatprep.mubr.f32.mxu0 0.0
      %1965 = vmatmul.mubr.f32.gmra.mrb[0].mxu0 %v1833
      %v1966 = vpop.f32.mrb[0].mxu0
      %v1967 = vadd.f32 0.0, %v1966
      %v1968 = vpop.f32.mrb[0].mxu0
      %1969 = vmatprep.mubr.f32.mxu0 0.0
      %1970 = vmatmul.mubr.f32.gmra.mrb[0].mxu0 %v1836
      %v1971 = vpop.f32.mrb[0].mxu0
      %v1972 = vadd.f32 0.0, %v1971
      %v1973 = vpop.f32.mrb[0].mxu0
      %1974 = vmatprep.mubr.f32.mxu0 0.0
      %1975 = vmatmul.mubr.f32.gmra.mrb[0].mxu0 %v1839
      %v1976 = vpop.f32.mrb[0].mxu0
      %v1977 = vadd.f32 0.0, %v1976
      %v1978 = vpop.f32.mrb[0].mxu0
      %1979 = vmatprep.mubr.f32.mxu0 0.0
      %1980 = vmatmul.mubr.f32.gmra.mrb[0].mxu0 %v1842
      %v1981 = vpop.f32.mrb[0].mxu0
      %v1982 = vadd.f32 0.0, %v1981
      %v1983 = vpop.f32.mrb[0].mxu0
      %1984 = vmatprep.mubr.f32.mxu0 0.0
      %1985 = vmatmul.mubr.f32.gmra.mrb[0].mxu0 %v1845
      %v1986 = vpop.f32.mrb[0].mxu0
      %v1987 = vadd.f32 0.0, %v1986
      %v1988 = vpop.f32.mrb[0].mxu0
      %1989 = vmatprep.mubr.f32.mxu0 0.0
      %1990 = vmatmul.mubr.f32.gmra.mrb[0].mxu0 %v1848
      %v1991 = vpop.f32.mrb[0].mxu0
      %v1992 = vadd.f32 0.0, %v1991
      %v1993 = vpop.f32.mrb[0].mxu0
      %1994 = vdwg.mxu0
      %v1995 = vadd.f32 %v1765, %v1917
      %v1996 = vadd.f32 %v1766, %v1922
      %v1997 = vadd.f32 %v1767, %v1927
      %v1998 = vadd.f32 %v1768, %v1932
      %v1999 = vadd.f32 %v1769, %v1937
      %v2000 = vadd.f32 %v1770, %v1942
      %v2001 = vadd.f32 %v1771, %v1947
      %v2002 = vadd.f32 %v1772, %v1952
      %v2003 = vadd.f32 %v1773, %v1957
      %v2004 = vadd.f32 %v1774, %v1962
      %v2005 = vadd.f32 %v1775, %v1967
      %v2006 = vadd.f32 %v1776, %v1972
      %v2007 = vadd.f32 %v1777, %v1977
      %v2008 = vadd.f32 %v1778, %v1982
      %v2009 = vadd.f32 %v1779, %v1987
      %v2010 = vadd.f32 %v1780, %v1992
      %v2011 = vld [vmem:[%s1550 + $0x2] sm:$0xff]
      %v2012 = vld [vmem:[%s1550 + $0xa] sm:$0xff]
      %v2013 = vld [vmem:[%s1550 + $0x1a] sm:$0xff]
      %v2014 = vld [vmem:[%s1550 + $0x22] sm:$0xff]
      %v2015 = vld [vmem:[%s1550 + $0x32] sm:$0xff]
      %v2016 = vld [vmem:[%s1550 + $0x3a] sm:$0xff]
      %v2017 = vld [vmem:[%s1550 + $0x4a] sm:$0xff]
      %v2018 = vld [vmem:[%s1550 + $0x52] sm:$0xff]
      %v2019 = vld [vmem:[%s1550 + $0x62] sm:$0xff]
      %v2020 = vld [vmem:[%s1550 + $0x6a] sm:$0xff]
      %v2021 = vld [vmem:[%s1550 + $0x7a] sm:$0xff]
      %v2022 = vld [vmem:[%s1550 + $0x82] sm:$0xff]
      %v2023 = vld [vmem:[%s1550 + $0x92] sm:$0xff]
      %v2024 = vld [vmem:[%s1550 + $0x9a] sm:$0xff]
      %v2025 = vld [vmem:[%s1550 + $0xaa] sm:$0xff]
      %v2026 = vld [vmem:[%s1550 + $0xb2] sm:$0xff]
      %s2027 = scalar_lea.vmem %s1, 256
      %v2028 = vld [vmem:[%s2027] sm:$0xff]
      %v2029 = vld [vmem:[%s2027 + $0x8] sm:$0xff]
      %v2030 = vld [vmem:[%s2027 + $0x10] sm:$0xff]
      %v2031 = vld [vmem:[%s2027 + $0x18] sm:$0xff]
      %v2033 = vsel %vm238, %v2011, 0
      %v2036 = vsel %vm238, %v2012, 0
      %v2039 = vsel %vm238, %v2013, 0
      %v2042 = vsel %vm238, %v2014, 0
      %v2045 = vsel %vm238, %v2015, 0
      %v2048 = vsel %vm238, %v2016, 0
      %v2051 = vsel %vm238, %v2017, 0
      %v2054 = vsel %vm238, %v2018, 0
      %v2057 = vsel %vm238, %v2019, 0
      %v2060 = vsel %vm238, %v2020, 0
      %v2063 = vsel %vm238, %v2021, 0
      %v2066 = vsel %vm238, %v2022, 0
      %v2069 = vsel %vm238, %v2023, 0
      %v2072 = vsel %vm238, %v2024, 0
      %v2075 = vsel %vm238, %v2025, 0
      %v2078 = vsel %vm238, %v2026, 0
      %2080 = vmatprep.subr.mxu0 0.0
      %2081 = vmatpush1.msra.mxu0 %v2028
      %2082 = vmatprep.subr.mxu0 0.0
      %2083 = vmatpush1.msra.mxu0 %v2029
      %2084 = vmatprep.subr.mxu0 0.0
      %2085 = vmatpush1.msra.mxu0 %v2030
      %2086 = vmatprep.subr.mxu0 0.0
      %2087 = vmatpush1.msra.mxu0 %v2031
      %2088 = vmatprep.subr.mxu0 0.0
      %2089 = vmatpush1.msra.mxu0 0.0
      %2090 = vmatprep.subr.mxu0 0.0
      %2091 = vmatpush1.msra.mxu0 0.0
      %2092 = vmatprep.subr.mxu0 0.0
      %2093 = vmatpush1.msra.mxu0 0.0
      %2094 = vmatprep.subr.mxu0 0.0
      %2095 = vmatpush1.msra.mxu0 0.0
      %2096 = vmatprep.subr.mxu0 0.0
      %2097 = vmatpush1.msra.mxu0 0.0
      %2098 = vmatprep.subr.mxu0 0.0
      %2099 = vmatpush1.msra.mxu0 0.0
      %2100 = vmatprep.subr.mxu0 0.0
      %2101 = vmatpush1.msra.mxu0 0.0
      %2102 = vmatprep.subr.mxu0 0.0
      %2103 = vmatpush1.msra.mxu0 0.0
      %2104 = vmatprep.subr.mxu0 0.0
      %2105 = vmatpush1.msra.mxu0 0.0
      %2106 = vmatprep.subr.mxu0 0.0
      %2107 = vmatpush1.msra.mxu0 0.0
      %2108 = vmatprep.subr.mxu0 0.0
      %2109 = vmatpush1.msra.mxu0 0.0
      %2110 = vmatprep.subr.mxu0 0.0
      %2111 = vmatpush1.msra.mxu0 0.0
      %2112 = vmatprep.subr.mxu0 0.0
      %2113 = vmatpush1.msra.mxu0 0.0
      %2114 = vmatprep.subr.mxu0 0.0
      %2115 = vmatpush1.msra.mxu0 0.0
      %2116 = vmatprep.subr.mxu0 0.0
      %2117 = vmatpush1.msra.mxu0 0.0
      %2118 = vmatprep.subr.mxu0 0.0
      %2119 = vmatpush1.msra.mxu0 0.0
      %2120 = vmatprep.subr.mxu0 0.0
      %2121 = vmatpush1.msra.mxu0 0.0
      %2122 = vmatprep.subr.mxu0 0.0
      %2123 = vmatpush1.msra.mxu0 0.0
      %2124 = vmatprep.subr.mxu0 0.0
      %2125 = vmatpush1.msra.mxu0 0.0
      %2126 = vmatprep.subr.mxu0 0.0
      %2127 = vmatpush1.msra.mxu0 0.0
      %2128 = vmatprep.subr.mxu0 0.0
      %2129 = vmatpush1.msra.mxu0 0.0
      %2130 = vmatprep.subr.mxu0 0.0
      %2131 = vmatpush1.msra.mxu0 0.0
      %2132 = vmatprep.subr.mxu0 0.0
      %2133 = vmatpush1.msra.mxu0 0.0
      %2134 = vmatprep.subr.mxu0 0.0
      %2135 = vmatpush1.msra.mxu0 0.0
      %2136 = vmatprep.subr.mxu0 0.0
      %2137 = vmatpush1.msra.mxu0 0.0
      %2138 = vmatprep.subr.mxu0 0.0
      %2139 = vmatpush1.msra.mxu0 0.0
      %2140 = vmatprep.subr.mxu0 0.0
      %2141 = vmatpush1.msra.mxu0 0.0
      %2142 = vmatprep.subr.mxu0 0.0
      %2143 = vmatpush1.msra.mxu0 0.0
      %2144 = vmatprep.mubr.f32.mxu0 0.0
      %2145 = vmatmul.mubr.f32.gmra.mrb[0].mxu0 %v2033
      %v2146 = vpop.f32.mrb[0].mxu0
      %v2147 = vadd.f32 0.0, %v2146
      %v2148 = vpop.f32.mrb[0].mxu0
      %2149 = vmatprep.mubr.f32.mxu0 0.0
      %2150 = vmatmul.mubr.f32.gmra.mrb[0].mxu0 %v2036
      %v2151 = vpop.f32.mrb[0].mxu0
      %v2152 = vadd.f32 0.0, %v2151
      %v2153 = vpop.f32.mrb[0].mxu0
      %2154 = vmatprep.mubr.f32.mxu0 0.0
      %2155 = vmatmul.mubr.f32.gmra.mrb[0].mxu0 %v2039
      %v2156 = vpop.f32.mrb[0].mxu0
      %v2157 = vadd.f32 0.0, %v2156
      %v2158 = vpop.f32.mrb[0].mxu0
      %2159 = vmatprep.mubr.f32.mxu0 0.0
      %2160 = vmatmul.mubr.f32.gmra.mrb[0].mxu0 %v2042
      %v2161 = vpop.f32.mrb[0].mxu0
      %v2162 = vadd.f32 0.0, %v2161
      %v2163 = vpop.f32.mrb[0].mxu0
      %2164 = vmatprep.mubr.f32.mxu0 0.0
      %2165 = vmatmul.mubr.f32.gmra.mrb[0].mxu0 %v2045
      %v2166 = vpop.f32.mrb[0].mxu0
      %v2167 = vadd.f32 0.0, %v2166
      %v2168 = vpop.f32.mrb[0].mxu0
      %2169 = vmatprep.mubr.f32.mxu0 0.0
      %2170 = vmatmul.mubr.f32.gmra.mrb[0].mxu0 %v2048
      %v2171 = vpop.f32.mrb[0].mxu0
      %v2172 = vadd.f32 0.0, %v2171
      %v2173 = vpop.f32.mrb[0].mxu0
      %2174 = vmatprep.mubr.f32.mxu0 0.0
      %2175 = vmatmul.mubr.f32.gmra.mrb[0].mxu0 %v2051
      %v2176 = vpop.f32.mrb[0].mxu0
      %v2177 = vadd.f32 0.0, %v2176
      %v2178 = vpop.f32.mrb[0].mxu0
      %2179 = vmatprep.mubr.f32.mxu0 0.0
      %2180 = vmatmul.mubr.f32.gmra.mrb[0].mxu0 %v2054
      %v2181 = vpop.f32.mrb[0].mxu0
      %v2182 = vadd.f32 0.0, %v2181
      %v2183 = vpop.f32.mrb[0].mxu0
      %2184 = vmatprep.mubr.f32.mxu0 0.0
      %2185 = vmatmul.mubr.f32.gmra.mrb[0].mxu0 %v2057
      %v2186 = vpop.f32.mrb[0].mxu0
      %v2187 = vadd.f32 0.0, %v2186
      %v2188 = vpop.f32.mrb[0].mxu0
      %2189 = vmatprep.mubr.f32.mxu0 0.0
      %2190 = vmatmul.mubr.f32.gmra.mrb[0].mxu0 %v2060
      %v2191 = vpop.f32.mrb[0].mxu0
      %v2192 = vadd.f32 0.0, %v2191
      %v2193 = vpop.f32.mrb[0].mxu0
      %2194 = vmatprep.mubr.f32.mxu0 0.0
      %2195 = vmatmul.mubr.f32.gmra.mrb[0].mxu0 %v2063
      %v2196 = vpop.f32.mrb[0].mxu0
      %v2197 = vadd.f32 0.0, %v2196
      %v2198 = vpop.f32.mrb[0].mxu0
      %2199 = vmatprep.mubr.f32.mxu0 0.0
      %2200 = vmatmul.mubr.f32.gmra.mrb[0].mxu0 %v2066
      %v2201 = vpop.f32.mrb[0].mxu0
      %v2202 = vadd.f32 0.0, %v2201
      %v2203 = vpop.f32.mrb[0].mxu0
      %2204 = vmatprep.mubr.f32.mxu0 0.0
      %2205 = vmatmul.mubr.f32.gmra.mrb[0].mxu0 %v2069
      %v2206 = vpop.f32.mrb[0].mxu0
      %v2207 = vadd.f32 0.0, %v2206
      %v2208 = vpop.f32.mrb[0].mxu0
      %2209 = vmatprep.mubr.f32.mxu0 0.0
      %2210 = vmatmul.mubr.f32.gmra.mrb[0].mxu0 %v2072
      %v2211 = vpop.f32.mrb[0].mxu0
      %v2212 = vadd.f32 0.0, %v2211
      %v2213 = vpop.f32.mrb[0].mxu0
      %2214 = vmatprep.mubr.f32.mxu0 0.0
      %2215 = vmatmul.mubr.f32.gmra.mrb[0].mxu0 %v2075
      %v2216 = vpop.f32.mrb[0].mxu0
      %v2217 = vadd.f32 0.0, %v2216
      %v2218 = vpop.f32.mrb[0].mxu0
      %2219 = vmatprep.mubr.f32.mxu0 0.0
      %2220 = vmatmul.mubr.f32.gmra.mrb[0].mxu0 %v2078
      %v2221 = vpop.f32.mrb[0].mxu0
      %v2222 = vadd.f32 0.0, %v2221
      %v2223 = vpop.f32.mrb[0].mxu0
      %2224 = vdwg.mxu0
      %v2225 = vadd.f32 %v1995, %v2147
      %v2226 = vadd.f32 %v1996, %v2152
      %v2227 = vadd.f32 %v1997, %v2157
      %v2228 = vadd.f32 %v1998, %v2162
      %v2229 = vadd.f32 %v1999, %v2167
      %v2230 = vadd.f32 %v2000, %v2172
      %v2231 = vadd.f32 %v2001, %v2177
      %v2232 = vadd.f32 %v2002, %v2182
      %v2233 = vadd.f32 %v2003, %v2187
      %v2234 = vadd.f32 %v2004, %v2192
      %v2235 = vadd.f32 %v2005, %v2197
      %v2236 = vadd.f32 %v2006, %v2202
      %v2237 = vadd.f32 %v2007, %v2207
      %v2238 = vadd.f32 %v2008, %v2212
      %v2239 = vadd.f32 %v2009, %v2217
      %v2240 = vadd.f32 %v2010, %v2222
      %v2241 = vld [vmem:[%s2] sm:$0x1]
      %v2243 = vlaneseq
      %v2244 = vshrl.u32 %v2243, 7
      %v2245 = vsub.s32 0, %v2244
      %v2246 = vrot.slane %v2241, %v2245
      %v2248 = vadd.f32 %v2225, %v2246
      %v2249 = vadd.f32 %v2226, %v2246
      %v2250 = vadd.f32 %v2227, %v2246
      %v2251 = vadd.f32 %v2228, %v2246
      %v2252 = vadd.f32 %v2229, %v2246
      %v2253 = vadd.f32 %v2230, %v2246
      %v2254 = vadd.f32 %v2231, %v2246
      %v2255 = vadd.f32 %v2232, %v2246
      %v2256 = vadd.f32 %v2233, %v2246
      %v2257 = vadd.f32 %v2234, %v2246
      %v2258 = vadd.f32 %v2235, %v2246
      %v2259 = vadd.f32 %v2236, %v2246
      %v2260 = vadd.f32 %v2237, %v2246
      %v2261 = vadd.f32 %v2238, %v2246
      %v2262 = vadd.f32 %v2239, %v2246
      %v2263 = vadd.f32 %v2240, %v2246
      %v2264 = vmax.f32 %v2248, 0.0
      %v2265 = vmax.f32 %v2249, 0.0
      %v2266 = vmax.f32 %v2250, 0.0
      %v2267 = vmax.f32 %v2251, 0.0
      %v2268 = vmax.f32 %v2252, 0.0
      %v2269 = vmax.f32 %v2253, 0.0
      %v2270 = vmax.f32 %v2254, 0.0
      %v2271 = vmax.f32 %v2255, 0.0
      %v2272 = vmax.f32 %v2256, 0.0
      %v2273 = vmax.f32 %v2257, 0.0
      %v2274 = vmax.f32 %v2258, 0.0
      %v2275 = vmax.f32 %v2259, 0.0
      %v2276 = vmax.f32 %v2260, 0.0
      %v2277 = vmax.f32 %v2261, 0.0
      %v2278 = vmax.f32 %v2262, 0.0
      %v2279 = vmax.f32 %v2263, 0.0
      %vm2280 = vcmask 523264
      %v2281 = vsel %vm2280, %v2264, -inf
      %v2282 = vsel %vm2280, %v2266, -inf
      %v2283 = vmax.f32 %v2281, %v2282
      %v2284 = vsel %vm2280, %v2265, -inf
      %v2285 = vsel %vm2280, %v2267, -inf
      %v2286 = vmax.f32 %v2284, %v2285
      %v2287 = vsel %vm2280, %v2268, -inf
      %v2288 = vsel %vm2280, %v2270, -inf
      %v2289 = vmax.f32 %v2287, %v2288
      %v2290 = vsel %vm2280, %v2269, -inf
      %v2291 = vsel %vm2280, %v2271, -inf
      %v2292 = vmax.f32 %v2290, %v2291
      %v2293 = vsel %vm2280, %v2272, -inf
      %v2294 = vsel %vm2280, %v2274, -inf
      %v2295 = vmax.f32 %v2293, %v2294
      %v2296 = vsel %vm2280, %v2273, -inf
      %v2297 = vsel %vm2280, %v2275, -inf
      %v2298 = vmax.f32 %v2296, %v2297
      %v2299 = vsel %vm2280, %v2276, -inf
      %v2300 = vsel %vm2280, %v2278, -inf
      %v2301 = vmax.f32 %v2299, %v2300
      %v2302 = vsel %vm2280, %v2277, -inf
      %v2303 = vsel %vm2280, %v2279, -inf
      %v2304 = vmax.f32 %v2302, %v2303
      %2305 = vst.msk [vmem:[#allocation2] sm:$0xff] %vm2280, %v2283
      %2306 = vst.msk [vmem:[#allocation2 + $0x8] sm:$0xff] %vm2280, %v2286
      %2307 = vst.msk [vmem:[#allocation2 + $0x10] sm:$0xff] %vm2280, %v2289
      %2308 = vst.msk [vmem:[#allocation2 + $0x18] sm:$0xff] %vm2280, %v2292
      %2309 = vst.msk [vmem:[#allocation2 + $0x20] sm:$0xff] %vm2280, %v2295
      %2310 = vst.msk [vmem:[#allocation2 + $0x28] sm:$0xff] %vm2280, %v2298
      %2311 = vst.msk [vmem:[#allocation2 + $0x30] sm:$0xff] %vm2280, %v2301
      %2312 = vst.msk [vmem:[#allocation2 + $0x38] sm:$0xff] %vm2280, %v2304
      %v2313 = vld [vmem:[#allocation2] ss:$2 sm:$0xff]
      %s2314 = scalar_lea.vmem [#allocation2], 16
      %v2315 = vld [vmem:[%s2314] ss:$2 sm:$0xff]
      %s2316 = scalar_lea.vmem [#allocation2], 32
      %v2317 = vld [vmem:[%s2316] ss:$2 sm:$0xff]
      %s2318 = scalar_lea.vmem [#allocation2], 48
      %v2319 = vld [vmem:[%s2318] ss:$2 sm:$0xff]
      %s2320 = scalar_lea.vmem [#allocation2], 1
      %v2321 = vld [vmem:[%s2320] ss:$2 sm:$0xff]
      %s2322 = scalar_lea.vmem [#allocation2], 17
      %v2323 = vld [vmem:[%s2322] ss:$2 sm:$0xff]
      %s2324 = scalar_lea.vmem [#allocation2], 33
      %v2325 = vld [vmem:[%s2324] ss:$2 sm:$0xff]
      %s2326 = scalar_lea.vmem [#allocation2], 49
      %v2327 = vld [vmem:[%s2326] ss:$2 sm:$0xff]
      %v2328 = vmax.f32 %v2313, %v2321
      %v2329 = vmax.f32 %v2315, %v2323
      %v2330 = vmax.f32 %v2317, %v2325
      %v2331 = vmax.f32 %v2319, %v2327
      %2332 = vst.msk [vmem:[%s192] sm:$0xff] %vm2280, %v2328
      %2333 = vst.msk [vmem:[%s192 + $0x8] sm:$0xff] %vm2280, %v2329
      %2334 = vst.msk [vmem:[%s192 + $0x10] sm:$0xff] %vm2280, %v2330
      %2335 = vst.msk [vmem:[%s192 + $0x18] sm:$0xff] %vm2280, %v2331
      %s2336 = smul.u32 4, %s19
      %p2337 = scmp.lt.s32.totalorder %s18, 1
      %s2338 = scalar_select %p2337, %s18, 1
      %p2339 = scmp.lt.s32.totalorder %s2336, 7
      %s2340 = scalar_select %p2339, %s2336, 7
      %s2341 = smul.addr %s2338, 8
      %s2342 = sadd.s32 %s2340, %s2341
      %s2343 = smul.addr %s2342, 8
      %s2344 = scalar_lea.vmem %s3, %s2343
      // Predicated region
      $region33: #{shallow_cnn_forward.4} parent=31 // pred_check
        %p2345 = pneg %p114
      $region34: #{shallow_cnn_forward.4} parent=31 // pred_check_branch
        %2347 = sbr.rel (%p2345) target = $region36
      $region35: #{shallow_cnn_forward.4} parent=31 // pred_region
        %s2348 = smul.u32 4, %s19
      $region36: #{shallow_cnn_forward.4} parent=31 // pred_fallthru
        _
    $region32: #{shallow_cnn_forward.4} parent=5 // pred_fallthru
      _
    %p2349 = scmp.le.s32.totalorder 2, %s9
    // Predicated region
    $region37: #{shallow_cnn_forward.4} parent=5 // pred_check
      %p2350 = pneg %p2349
    $region38: #{shallow_cnn_forward.4} parent=5 // pred_check_branch
      %2352 = sbr.rel (%p2350) target = $region40
    $region39: #{shallow_cnn_forward.4} parent=5 // pred_region
      %s2353 = ssub.s32 %s9, 2
      // Predicated region
      $region41: #{shallow_cnn_forward.4} parent=39 // pred_check
        %p2354 = pneg %p120
      $region42: #{shallow_cnn_forward.4} parent=39 // pred_check_branch
        %2356 = sbr.rel (%p2354) target = $region44
      $region43: #{shallow_cnn_forward.4} parent=39 // pred_region
        %s2357 = smul.u32 4, %s21
        %p2358 = scmp.lt.s32.totalorder %s20, 1
        %s2359 = scalar_select %p2358, %s20, 1
        %p2360 = scmp.lt.s32.totalorder %s2357, 7
        %s2361 = scalar_select %p2360, %s2357, 7
        %s2362 = smul.addr %s2359, 8
        %s2363 = sadd.s32 %s2361, %s2362
        %s2364 = smul.addr %s2363, 8
        %s2365 = scalar_lea.vmem %s3, %s2364
      $region44: #{shallow_cnn_forward.4} parent=39 // pred_fallthru
        _
    $region40: #{shallow_cnn_forward.4} parent=5 // pred_fallthru
      _
  $region6: #{shallow_cnn_forward.4} parent=0 // loop_footer
    %s13 = sadd.s32 1, %s9
  $region7: #{shallow_cnn_forward.4} parent=0 // loop_footer_branch
    %8 = sbr.rel target = $region3
  $region8: #{shallow_cnn_forward.4} parent=0 // loop_exit
    _

// kernel: shallow_cnn_forward.5
$region0: #{shallow_cnn_forward.5}
  #allocation0 [shape = 'u32[]', space=smem, size = 0x4, offset = 0x4, fixed_abs, tag = 'smem constant byte address 0x4 - core index']
  #allocation1 [shape = 'u32[144,128]{1,0:T(1,128)}', space=vmem, size = 0x12000, scoped, tag = 'internal scratch']
  %s0 = inlined_call_operand.vmem [shape: f32[2,4096], index: 0, kind: input, shape index: {}]
  %s1 = inlined_call_operand.vmem [shape: f32[4096,256], index: 1, kind: input, shape index: {}]
  %s2 = inlined_call_operand.vmem [shape: f32[1,256], index: 2, kind: input, shape index: {}]
  %s3 = inlined_call_operand.vmem [shape: f32[256,128], index: 3, kind: input, shape index: {}]
  %s4 = inlined_call_operand.vmem [shape: f32[1,128], index: 4, kind: input, shape index: {}]
  %s5 = inlined_call_operand.hbm [shape: f32[2,128], index: 5, kind: output, shape index: {}]
  %s6 = sld [smem:[#allocation0]]
  $region30: #{shallow_cnn_forward.5} parent=0
    _
  %s8 = ssub.s32 1, %s6
  %s9 = scalar_select 0, %s8, %s6
  $region1: #{shallow_cnn_forward.5} parent=0
    #allocation2 [shape = 'u8[1024]{0}', space=vmem, size = 0x400, scoped, tag = 'output window, operand 0, single buffered']
    #allocation3 [shape = 's32[1]{0}', space=sflag, size = 0x4, scoped, tag = 'scoped memory for shallow_cnn_forward.5']
    %10 = vsyncpa [#allocation3], 0
    // Predicated region
    $region2: #{shallow_cnn_forward.5} parent=1 // pred_check
      _
    $region3: #{shallow_cnn_forward.5} parent=1 // pred_check_branch
      %12 = sbr.rel (0) target = $region5
    $region4: #{shallow_cnn_forward.5} parent=1 // pred_region
      _
    $region5: #{shallow_cnn_forward.5} parent=1 // pred_fallthru
      _
    // Predicated region
    $region6: #{shallow_cnn_forward.5} parent=1 // pred_check
      _
    $region7: #{shallow_cnn_forward.5} parent=1 // pred_check_branch
      %14 = sbr.rel (0) target = $region9
    $region8: #{shallow_cnn_forward.5} parent=1 // pred_region
      _
    $region9: #{shallow_cnn_forward.5} parent=1 // pred_fallthru
      _
    // Predicated region
    $region10: #{shallow_cnn_forward.5} parent=1 // pred_check
      _
    $region11: #{shallow_cnn_forward.5} parent=1 // pred_check_branch
      %16 = sbr.rel (0) target = $region13
    $region12: #{shallow_cnn_forward.5} parent=1 // pred_region
      _
    $region13: #{shallow_cnn_forward.5} parent=1 // pred_fallthru
      _
    // Predicated region
    $region14: #{shallow_cnn_forward.5} parent=1 // pred_check
      _
    $region15: #{shallow_cnn_forward.5} parent=1 // pred_check_branch
      %18 = sbr.rel (0) target = $region17
    $region16: #{shallow_cnn_forward.5} parent=1 // pred_region
      _
    $region17: #{shallow_cnn_forward.5} parent=1 // pred_fallthru
      _
    // Predicated region
    $region18: #{shallow_cnn_forward.5} parent=1 // pred_check
      _
    $region19: #{shallow_cnn_forward.5} parent=1 // pred_check_branch
      %20 = sbr.rel (0) target = $region21
    $region20: #{shallow_cnn_forward.5} parent=1 // pred_region
      _
    $region21: #{shallow_cnn_forward.5} parent=1 // pred_fallthru
      _
    %v21 = vld [vmem:[%s0] sm:$0xff]
    %v22 = vld [vmem:[%s0 + $0x8] sm:$0xff]
    %v23 = vld [vmem:[%s0 + $0x10] sm:$0xff]
    %v24 = vld [vmem:[%s0 + $0x18] sm:$0xff]
    %v25 = vld [vmem:[%s0 + $0x20] sm:$0xff]
    %v26 = vld [vmem:[%s0 + $0x28] sm:$0xff]
    %v27 = vld [vmem:[%s0 + $0x30] sm:$0xff]
    %v28 = vld [vmem:[%s0 + $0x38] sm:$0xff]
    %v29 = vld [vmem:[%s1] sm:$0xff]
    %v30 = vld [vmem:[%s1 + $0x8] sm:$0xff]
    %v31 = vld [vmem:[%s1 + $0x10] sm:$0xff]
    %v32 = vld [vmem:[%s1 + $0x18] sm:$0xff]
    %v33 = vld [vmem:[%s1 + $0x20] sm:$0xff]
    %v34 = vld [vmem:[%s1 + $0x28] sm:$0xff]
    %v35 = vld [vmem:[%s1 + $0x30] sm:$0xff]
    %v36 = vld [vmem:[%s1 + $0x38] sm:$0xff]
    %v37 = vld [vmem:[%s1 + $0x40] sm:$0xff]
    %v38 = vld [vmem:[%s1 + $0x48] sm:$0xff]
    %v39 = vld [vmem:[%s1 + $0x50] sm:$0xff]
    %v40 = vld [vmem:[%s1 + $0x58] sm:$0xff]
    %v41 = vld [vmem:[%s1 + $0x60] sm:$0xff]
    %v42 = vld [vmem:[%s1 + $0x68] sm:$0xff]
    %v43 = vld [vmem:[%s1 + $0x70] sm:$0xff]
    %v44 = vld [vmem:[%s1 + $0x78] sm:$0xff]
    %v45 = vld [vmem:[%s1 + $0x80] sm:$0xff]
    %v46 = vld [vmem:[%s1 + $0x88] sm:$0xff]
    %v47 = vld [vmem:[%s1 + $0x90] sm:$0xff]
    %v48 = vld [vmem:[%s1 + $0x98] sm:$0xff]
    %v49 = vld [vmem:[%s1 + $0xa0] sm:$0xff]
    %v50 = vld [vmem:[%s1 + $0xa8] sm:$0xff]
    %v51 = vld [vmem:[%s1 + $0xb0] sm:$0xff]
    %v52 = vld [vmem:[%s1 + $0xb8] sm:$0xff]
    %v53 = vld [vmem:[%s1 + $0xc0] sm:$0xff]
    %v54 = vld [vmem:[%s1 + $0xc8] sm:$0xff]
    %v55 = vld [vmem:[%s1 + $0xd0] sm:$0xff]
    %v56 = vld [vmem:[%s1 + $0xd8] sm:$0xff]
    %v57 = vld [vmem:[%s1 + $0xe0] sm:$0xff]
    %v58 = vld [vmem:[%s1 + $0xe8] sm:$0xff]
    %v59 = vld [vmem:[%s1 + $0xf0] sm:$0xff]
    %v60 = vld [vmem:[%s1 + $0xf8] sm:$0xff]
    %v61 = vld [vmem:[%s1 + $0x100] sm:$0xff]
    %v62 = vld [vmem:[%s1 + $0x108] sm:$0xff]
    %v63 = vld [vmem:[%s1 + $0x110] sm:$0xff]
    %v64 = vld [vmem:[%s1 + $0x118] sm:$0xff]
    %v65 = vld [vmem:[%s1 + $0x120] sm:$0xff]
    %v66 = vld [vmem:[%s1 + $0x128] sm:$0xff]
    %v67 = vld [vmem:[%s1 + $0x130] sm:$0xff]
    %v68 = vld [vmem:[%s1 + $0x138] sm:$0xff]
    %v69 = vld [vmem:[%s1 + $0x140] sm:$0xff]
    %v70 = vld [vmem:[%s1 + $0x148] sm:$0xff]
    %v71 = vld [vmem:[%s1 + $0x150] sm:$0xff]
    %v72 = vld [vmem:[%s1 + $0x158] sm:$0xff]
    %v73 = vld [vmem:[%s1 + $0x160] sm:$0xff]
    %v74 = vld [vmem:[%s1 + $0x168] sm:$0xff]
    %v75 = vld [vmem:[%s1 + $0x170] sm:$0xff]
    %v76 = vld [vmem:[%s1 + $0x178] sm:$0xff]
    %v77 = vld [vmem:[%s1 + $0x180] sm:$0xff]
    %v78 = vld [vmem:[%s1 + $0x188] sm:$0xff]
    %v79 = vld [vmem:[%s1 + $0x190] sm:$0xff]
    %v80 = vld [vmem:[%s1 + $0x198] sm:$0xff]
    %v81 = vld [vmem:[%s1 + $0x1a0] sm:$0xff]
    %v82 = vld [vmem:[%s1 + $0x1a8] sm:$0xff]
    %v83 = vld [vmem:[%s1 + $0x1b0] sm:$0xff]
    %v84 = vld [vmem:[%s1 + $0x1b8] sm:$0xff]
    %v85 = vld [vmem:[%s1 + $0x1c0] sm:$0xff]
    %v86 = vld [vmem:[%s1 + $0x1c8] sm:$0xff]
    %v87 = vld [vmem:[%s1 + $0x1d0] sm:$0xff]
    %v88 = vld [vmem:[%s1 + $0x1d8] sm:$0xff]
    %v89 = vld [vmem:[%s1 + $0x1e0] sm:$0xff]
    %v90 = vld [vmem:[%s1 + $0x1e8] sm:$0xff]
    %v91 = vld [vmem:[%s1 + $0x1f0] sm:$0xff]
    %v92 = vld [vmem:[%s1 + $0x1f8] sm:$0xff]
    %v93 = vld [vmem:[%s1 + $0x200] sm:$0xff]
    %v94 = vld [vmem:[%s1 + $0x208] sm:$0xff]
    %v95 = vld [vmem:[%s1 + $0x210] sm:$0xff]
    %v96 = vld [vmem:[%s1 + $0x218] sm:$0xff]
    %v97 = vld [vmem:[%s1 + $0x220] sm:$0xff]
    %v98 = vld [vmem:[%s1 + $0x228] sm:$0xff]
    %v99 = vld [vmem:[%s1 + $0x230] sm:$0xff]
    %v100 = vld [vmem:[%s1 + $0x238] sm:$0xff]
    %v101 = vld [vmem:[%s1 + $0x240] sm:$0xff]
    %v102 = vld [vmem:[%s1 + $0x248] sm:$0xff]
    %v103 = vld [vmem:[%s1 + $0x250] sm:$0xff]
    %v104 = vld [vmem:[%s1 + $0x258] sm:$0xff]
    %v105 = vld [vmem:[%s1 + $0x260] sm:$0xff]
    %v106 = vld [vmem:[%s1 + $0x268] sm:$0xff]
    %v107 = vld [vmem:[%s1 + $0x270] sm:$0xff]
    %v108 = vld [vmem:[%s1 + $0x278] sm:$0xff]
    %v109 = vld [vmem:[%s1 + $0x280] sm:$0xff]
    %v110 = vld [vmem:[%s1 + $0x288] sm:$0xff]
    %v111 = vld [vmem:[%s1 + $0x290] sm:$0xff]
    %v112 = vld [vmem:[%s1 + $0x298] sm:$0xff]
    %v113 = vld [vmem:[%s1 + $0x2a0] sm:$0xff]
    %v114 = vld [vmem:[%s1 + $0x2a8] sm:$0xff]
    %v115 = vld [vmem:[%s1 + $0x2b0] sm:$0xff]
    %v116 = vld [vmem:[%s1 + $0x2b8] sm:$0xff]
    %v117 = vld [vmem:[%s1 + $0x2c0] sm:$0xff]
    %v118 = vld [vmem:[%s1 + $0x2c8] sm:$0xff]
    %v119 = vld [vmem:[%s1 + $0x2d0] sm:$0xff]
    %v120 = vld [vmem:[%s1 + $0x2d8] sm:$0xff]
    %v121 = vld [vmem:[%s1 + $0x2e0] sm:$0xff]
    %v122 = vld [vmem:[%s1 + $0x2e8] sm:$0xff]
    %v123 = vld [vmem:[%s1 + $0x2f0] sm:$0xff]
    %v124 = vld [vmem:[%s1 + $0x2f8] sm:$0xff]
    %v125 = vld [vmem:[%s1 + $0x300] sm:$0xff]
    %v126 = vld [vmem:[%s1 + $0x308] sm:$0xff]
    %v127 = vld [vmem:[%s1 + $0x310] sm:$0xff]
    %v128 = vld [vmem:[%s1 + $0x318] sm:$0xff]
    %v129 = vld [vmem:[%s1 + $0x320] sm:$0xff]
    %v130 = vld [vmem:[%s1 + $0x328] sm:$0xff]
    %v131 = vld [vmem:[%s1 + $0x330] sm:$0xff]
    %v132 = vld [vmem:[%s1 + $0x338] sm:$0xff]
    %v133 = vld [vmem:[%s1 + $0x340] sm:$0xff]
    %v134 = vld [vmem:[%s1 + $0x348] sm:$0xff]
    %v135 = vld [vmem:[%s1 + $0x350] sm:$0xff]
    %v136 = vld [vmem:[%s1 + $0x358] sm:$0xff]
    %v137 = vld [vmem:[%s1 + $0x360] sm:$0xff]
    %v138 = vld [vmem:[%s1 + $0x368] sm:$0xff]
    %v139 = vld [vmem:[%s1 + $0x370] sm:$0xff]
    %v140 = vld [vmem:[%s1 + $0x378] sm:$0xff]
    %v141 = vld [vmem:[%s1 + $0x380] sm:$0xff]
    %v142 = vld [vmem:[%s1 + $0x388] sm:$0xff]
    %v143 = vld [vmem:[%s1 + $0x390] sm:$0xff]
    %v144 = vld [vmem:[%s1 + $0x398] sm:$0xff]
    %v145 = vld [vmem:[%s1 + $0x3a0] sm:$0xff]
    %v146 = vld [vmem:[%s1 + $0x3a8] sm:$0xff]
    %v147 = vld [vmem:[%s1 + $0x3b0] sm:$0xff]
    %v148 = vld [vmem:[%s1 + $0x3b8] sm:$0xff]
    %v149 = vld [vmem:[%s1 + $0x3c0] sm:$0xff]
    %v150 = vld [vmem:[%s1 + $0x3c8] sm:$0xff]
    %v151 = vld [vmem:[%s1 + $0x3d0] sm:$0xff]
    %v152 = vld [vmem:[%s1 + $0x3d8] sm:$0xff]
    %v153 = vld [vmem:[%s1 + $0x3e0] sm:$0xff]
    %v154 = vld [vmem:[%s1 + $0x3e8] sm:$0xff]
    %v155 = vld [vmem:[%s1 + $0x3f0] sm:$0xff]
    %v156 = vld [vmem:[%s1 + $0x3f8] sm:$0xff]
    %v157 = vld [vmem:[%s1 + $0x400] sm:$0xff]
    %v158 = vld [vmem:[%s1 + $0x408] sm:$0xff]
    %v159 = vld [vmem:[%s1 + $0x410] sm:$0xff]
    %v160 = vld [vmem:[%s1 + $0x418] sm:$0xff]
    %v161 = vld [vmem:[%s1 + $0x420] sm:$0xff]
    %v162 = vld [vmem:[%s1 + $0x428] sm:$0xff]
    %v163 = vld [vmem:[%s1 + $0x430] sm:$0xff]
    %v164 = vld [vmem:[%s1 + $0x438] sm:$0xff]
    %v165 = vld [vmem:[%s1 + $0x440] sm:$0xff]
    %v166 = vld [vmem:[%s1 + $0x448] sm:$0xff]
    %v167 = vld [vmem:[%s1 + $0x450] sm:$0xff]
    %v168 = vld [vmem:[%s1 + $0x458] sm:$0xff]
    %v169 = vld [vmem:[%s1 + $0x460] sm:$0xff]
    %v170 = vld [vmem:[%s1 + $0x468] sm:$0xff]
    %v171 = vld [vmem:[%s1 + $0x470] sm:$0xff]
    %v172 = vld [vmem:[%s1 + $0x478] sm:$0xff]
    %v173 = vld [vmem:[%s1 + $0x480] sm:$0xff]
    %v174 = vld [vmem:[%s1 + $0x488] sm:$0xff]
    %v175 = vld [vmem:[%s1 + $0x490] sm:$0xff]
    %v176 = vld [vmem:[%s1 + $0x498] sm:$0xff]
    %v177 = vld [vmem:[%s1 + $0x4a0] sm:$0xff]
    %v178 = vld [vmem:[%s1 + $0x4a8] sm:$0xff]
    %v179 = vld [vmem:[%s1 + $0x4b0] sm:$0xff]
    %v180 = vld [vmem:[%s1 + $0x4b8] sm:$0xff]
    %v181 = vld [vmem:[%s1 + $0x4c0] sm:$0xff]
    %v182 = vld [vmem:[%s1 + $0x4c8] sm:$0xff]
    %v183 = vld [vmem:[%s1 + $0x4d0] sm:$0xff]
    %v184 = vld [vmem:[%s1 + $0x4d8] sm:$0xff]
    %v185 = vld [vmem:[%s1 + $0x4e0] sm:$0xff]
    %v186 = vld [vmem:[%s1 + $0x4e8] sm:$0xff]
    %v187 = vld [vmem:[%s1 + $0x4f0] sm:$0xff]
    %v188 = vld [vmem:[%s1 + $0x4f8] sm:$0xff]
    %v189 = vld [vmem:[%s1 + $0x500] sm:$0xff]
    %v190 = vld [vmem:[%s1 + $0x508] sm:$0xff]
    %v191 = vld [vmem:[%s1 + $0x510] sm:$0xff]
    %v192 = vld [vmem:[%s1 + $0x518] sm:$0xff]
    %v193 = vld [vmem:[%s1 + $0x520] sm:$0xff]
    %v194 = vld [vmem:[%s1 + $0x528] sm:$0xff]
    %v195 = vld [vmem:[%s1 + $0x530] sm:$0xff]
    %v196 = vld [vmem:[%s1 + $0x538] sm:$0xff]
    %v197 = vld [vmem:[%s1 + $0x540] sm:$0xff]
    %v198 = vld [vmem:[%s1 + $0x548] sm:$0xff]
    %v199 = vld [vmem:[%s1 + $0x550] sm:$0xff]
    %v200 = vld [vmem:[%s1 + $0x558] sm:$0xff]
    %v201 = vld [vmem:[%s1 + $0x560] sm:$0xff]
    %v202 = vld [vmem:[%s1 + $0x568] sm:$0xff]
    %v203 = vld [vmem:[%s1 + $0x570] sm:$0xff]
    %v204 = vld [vmem:[%s1 + $0x578] sm:$0xff]
    %v205 = vld [vmem:[%s1 + $0x580] sm:$0xff]
    %v206 = vld [vmem:[%s1 + $0x588] sm:$0xff]
    %v207 = vld [vmem:[%s1 + $0x590] sm:$0xff]
    %v208 = vld [vmem:[%s1 + $0x598] sm:$0xff]
    %v209 = vld [vmem:[%s1 + $0x5a0] sm:$0xff]
    %v210 = vld [vmem:[%s1 + $0x5a8] sm:$0xff]
    %v211 = vld [vmem:[%s1 + $0x5b0] sm:$0xff]
    %v212 = vld [vmem:[%s1 + $0x5b8] sm:$0xff]
    %v213 = vld [vmem:[%s1 + $0x5c0] sm:$0xff]
    %v214 = vld [vmem:[%s1 + $0x5c8] sm:$0xff]
    %v215 = vld [vmem:[%s1 + $0x5d0] sm:$0xff]
    %v216 = vld [vmem:[%s1 + $0x5d8] sm:$0xff]
    %v217 = vld [vmem:[%s1 + $0x5e0] sm:$0xff]
    %v218 = vld [vmem:[%s1 + $0x5e8] sm:$0xff]
    %v219 = vld [vmem:[%s1 + $0x5f0] sm:$0xff]
    %v220 = vld [vmem:[%s1 + $0x5f8] sm:$0xff]
    %v221 = vld [vmem:[%s1 + $0x600] sm:$0xff]
    %v222 = vld [vmem:[%s1 + $0x608] sm:$0xff]
    %v223 = vld [vmem:[%s1 + $0x610] sm:$0xff]
    %v224 = vld [vmem:[%s1 + $0x618] sm:$0xff]
    %v225 = vld [vmem:[%s1 + $0x620] sm:$0xff]
    %v226 = vld [vmem:[%s1 + $0x628] sm:$0xff]
    %v227 = vld [vmem:[%s1 + $0x630] sm:$0xff]
    %v228 = vld [vmem:[%s1 + $0x638] sm:$0xff]
    %v229 = vld [vmem:[%s1 + $0x640] sm:$0xff]
    %v230 = vld [vmem:[%s1 + $0x648] sm:$0xff]
    %v231 = vld [vmem:[%s1 + $0x650] sm:$0xff]
    %v232 = vld [vmem:[%s1 + $0x658] sm:$0xff]
    %v233 = vld [vmem:[%s1 + $0x660] sm:$0xff]
    %v234 = vld [vmem:[%s1 + $0x668] sm:$0xff]
    %v235 = vld [vmem:[%s1 + $0x670] sm:$0xff]
    %v236 = vld [vmem:[%s1 + $0x678] sm:$0xff]
    %v237 = vld [vmem:[%s1 + $0x680] sm:$0xff]
    %v238 = vld [vmem:[%s1 + $0x688] sm:$0xff]
    %v239 = vld [vmem:[%s1 + $0x690] sm:$0xff]
    %v240 = vld [vmem:[%s1 + $0x698] sm:$0xff]
    %v241 = vld [vmem:[%s1 + $0x6a0] sm:$0xff]
    %v242 = vld [vmem:[%s1 + $0x6a8] sm:$0xff]
    %v243 = vld [vmem:[%s1 + $0x6b0] sm:$0xff]
    %v244 = vld [vmem:[%s1 + $0x6b8] sm:$0xff]
    %v245 = vld [vmem:[%s1 + $0x6c0] sm:$0xff]
    %v246 = vld [vmem:[%s1 + $0x6c8] sm:$0xff]
    %v247 = vld [vmem:[%s1 + $0x6d0] sm:$0xff]
    %v248 = vld [vmem:[%s1 + $0x6d8] sm:$0xff]
    %v249 = vld [vmem:[%s1 + $0x6e0] sm:$0xff]
    %v250 = vld [vmem:[%s1 + $0x6e8] sm:$0xff]
    %v251 = vld [vmem:[%s1 + $0x6f0] sm:$0xff]
    %v252 = vld [vmem:[%s1 + $0x6f8] sm:$0xff]
    %v253 = vld [vmem:[%s1 + $0x700] sm:$0xff]
    %v254 = vld [vmem:[%s1 + $0x708] sm:$0xff]
    %v255 = vld [vmem:[%s1 + $0x710] sm:$0xff]
    %v256 = vld [vmem:[%s1 + $0x718] sm:$0xff]
    %v257 = vld [vmem:[%s1 + $0x720] sm:$0xff]
    %v258 = vld [vmem:[%s1 + $0x728] sm:$0xff]
    %v259 = vld [vmem:[%s1 + $0x730] sm:$0xff]
    %v260 = vld [vmem:[%s1 + $0x738] sm:$0xff]
    %v261 = vld [vmem:[%s1 + $0x740] sm:$0xff]
    %v262 = vld [vmem:[%s1 + $0x748] sm:$0xff]
    %v263 = vld [vmem:[%s1 + $0x750] sm:$0xff]
    %v264 = vld [vmem:[%s1 + $0x758] sm:$0xff]
    %v265 = vld [vmem:[%s1 + $0x760] sm:$0xff]
    %v266 = vld [vmem:[%s1 + $0x768] sm:$0xff]
    %v267 = vld [vmem:[%s1 + $0x770] sm:$0xff]
    %v268 = vld [vmem:[%s1 + $0x778] sm:$0xff]
    %v269 = vld [vmem:[%s1 + $0x780] sm:$0xff]
    %v270 = vld [vmem:[%s1 + $0x788] sm:$0xff]
    %v271 = vld [vmem:[%s1 + $0x790] sm:$0xff]
    %v272 = vld [vmem:[%s1 + $0x798] sm:$0xff]
    %v273 = vld [vmem:[%s1 + $0x7a0] sm:$0xff]
    %v274 = vld [vmem:[%s1 + $0x7a8] sm:$0xff]
    %v275 = vld [vmem:[%s1 + $0x7b0] sm:$0xff]
    %v276 = vld [vmem:[%s1 + $0x7b8] sm:$0xff]
    %v277 = vld [vmem:[%s1 + $0x7c0] sm:$0xff]
    %v278 = vld [vmem:[%s1 + $0x7c8] sm:$0xff]
    %v279 = vld [vmem:[%s1 + $0x7d0] sm:$0xff]
    %v280 = vld [vmem:[%s1 + $0x7d8] sm:$0xff]
    %v281 = vld [vmem:[%s1 + $0x7e0] sm:$0xff]
    %v282 = vld [vmem:[%s1 + $0x7e8] sm:$0xff]
    %v283 = vld [vmem:[%s1 + $0x7f0] sm:$0xff]
    %v284 = vld [vmem:[%s1 + $0x7f8] sm:$0xff]
    %v285 = vld [vmem:[%s1 + $0x800] sm:$0xff]
    %v286 = vld [vmem:[%s1 + $0x808] sm:$0xff]
    %v287 = vld [vmem:[%s1 + $0x810] sm:$0xff]
    %v288 = vld [vmem:[%s1 + $0x818] sm:$0xff]
    %v289 = vld [vmem:[%s1 + $0x820] sm:$0xff]
    %v290 = vld [vmem:[%s1 + $0x828] sm:$0xff]
    %v291 = vld [vmem:[%s1 + $0x830] sm:$0xff]
    %v292 = vld [vmem:[%s1 + $0x838] sm:$0xff]
    %v293 = vld [vmem:[%s1 + $0x840] sm:$0xff]
    %v294 = vld [vmem:[%s1 + $0x848] sm:$0xff]
    %v295 = vld [vmem:[%s1 + $0x850] sm:$0xff]
    %v296 = vld [vmem:[%s1 + $0x858] sm:$0xff]
    %v297 = vld [vmem:[%s1 + $0x860] sm:$0xff]
    %v298 = vld [vmem:[%s1 + $0x868] sm:$0xff]
    %v299 = vld [vmem:[%s1 + $0x870] sm:$0xff]
    %v300 = vld [vmem:[%s1 + $0x878] sm:$0xff]
    %v301 = vld [vmem:[%s1 + $0x880] sm:$0xff]
    %v302 = vld [vmem:[%s1 + $0x888] sm:$0xff]
    %v303 = vld [vmem:[%s1 + $0x890] sm:$0xff]
    %v304 = vld [vmem:[%s1 + $0x898] sm:$0xff]
    %v305 = vld [vmem:[%s1 + $0x8a0] sm:$0xff]
    %v306 = vld [vmem:[%s1 + $0x8a8] sm:$0xff]
    %v307 = vld [vmem:[%s1 + $0x8b0] sm:$0xff]
    %v308 = vld [vmem:[%s1 + $0x8b8] sm:$0xff]
    %v309 = vld [vmem:[%s1 + $0x8c0] sm:$0xff]
    %v310 = vld [vmem:[%s1 + $0x8c8] sm:$0xff]
    %v311 = vld [vmem:[%s1 + $0x8d0] sm:$0xff]
    %v312 = vld [vmem:[%s1 + $0x8d8] sm:$0xff]
    %v313 = vld [vmem:[%s1 + $0x8e0] sm:$0xff]
    %v314 = vld [vmem:[%s1 + $0x8e8] sm:$0xff]
    %v315 = vld [vmem:[%s1 + $0x8f0] sm:$0xff]
    %v316 = vld [vmem:[%s1 + $0x8f8] sm:$0xff]
    %v317 = vld [vmem:[%s1 + $0x900] sm:$0xff]
    %v318 = vld [vmem:[%s1 + $0x908] sm:$0xff]
    %v319 = vld [vmem:[%s1 + $0x910] sm:$0xff]
    %v320 = vld [vmem:[%s1 + $0x918] sm:$0xff]
    %v321 = vld [vmem:[%s1 + $0x920] sm:$0xff]
    %v322 = vld [vmem:[%s1 + $0x928] sm:$0xff]
    %v323 = vld [vmem:[%s1 + $0x930] sm:$0xff]
    %v324 = vld [vmem:[%s1 + $0x938] sm:$0xff]
    %v325 = vld [vmem:[%s1 + $0x940] sm:$0xff]
    %v326 = vld [vmem:[%s1 + $0x948] sm:$0xff]
    %v327 = vld [vmem:[%s1 + $0x950] sm:$0xff]
    %v328 = vld [vmem:[%s1 + $0x958] sm:$0xff]
    %v329 = vld [vmem:[%s1 + $0x960] sm:$0xff]
    %v330 = vld [vmem:[%s1 + $0x968] sm:$0xff]
    %v331 = vld [vmem:[%s1 + $0x970] sm:$0xff]
    %v332 = vld [vmem:[%s1 + $0x978] sm:$0xff]
    %v333 = vld [vmem:[%s1 + $0x980] sm:$0xff]
    %v334 = vld [vmem:[%s1 + $0x988] sm:$0xff]
    %v335 = vld [vmem:[%s1 + $0x990] sm:$0xff]
    %v336 = vld [vmem:[%s1 + $0x998] sm:$0xff]
    %v337 = vld [vmem:[%s1 + $0x9a0] sm:$0xff]
    %v338 = vld [vmem:[%s1 + $0x9a8] sm:$0xff]
    %v339 = vld [vmem:[%s1 + $0x9b0] sm:$0xff]
    %v340 = vld [vmem:[%s1 + $0x9b8] sm:$0xff]
    %v341 = vld [vmem:[%s1 + $0x9c0] sm:$0xff]
    %v342 = vld [vmem:[%s1 + $0x9c8] sm:$0xff]
    %v343 = vld [vmem:[%s1 + $0x9d0] sm:$0xff]
    %v344 = vld [vmem:[%s1 + $0x9d8] sm:$0xff]
    %v345 = vld [vmem:[%s1 + $0x9e0] sm:$0xff]
    %v346 = vld [vmem:[%s1 + $0x9e8] sm:$0xff]
    %v347 = vld [vmem:[%s1 + $0x9f0] sm:$0xff]
    %v348 = vld [vmem:[%s1 + $0x9f8] sm:$0xff]
    %v349 = vld [vmem:[%s1 + $0xa00] sm:$0xff]
    %v350 = vld [vmem:[%s1 + $0xa08] sm:$0xff]
    %v351 = vld [vmem:[%s1 + $0xa10] sm:$0xff]
    %v352 = vld [vmem:[%s1 + $0xa18] sm:$0xff]
    %v353 = vld [vmem:[%s1 + $0xa20] sm:$0xff]
    %v354 = vld [vmem:[%s1 + $0xa28] sm:$0xff]
    %v355 = vld [vmem:[%s1 + $0xa30] sm:$0xff]
    %v356 = vld [vmem:[%s1 + $0xa38] sm:$0xff]
    %v357 = vld [vmem:[%s1 + $0xa40] sm:$0xff]
    %v358 = vld [vmem:[%s1 + $0xa48] sm:$0xff]
    %v359 = vld [vmem:[%s1 + $0xa50] sm:$0xff]
    %v360 = vld [vmem:[%s1 + $0xa58] sm:$0xff]
    %v361 = vld [vmem:[%s1 + $0xa60] sm:$0xff]
    %v362 = vld [vmem:[%s1 + $0xa68] sm:$0xff]
    %v363 = vld [vmem:[%s1 + $0xa70] sm:$0xff]
    %v364 = vld [vmem:[%s1 + $0xa78] sm:$0xff]
    %v365 = vld [vmem:[%s1 + $0xa80] sm:$0xff]
    %v366 = vld [vmem:[%s1 + $0xa88] sm:$0xff]
    %v367 = vld [vmem:[%s1 + $0xa90] sm:$0xff]
    %v368 = vld [vmem:[%s1 + $0xa98] sm:$0xff]
    %v369 = vld [vmem:[%s1 + $0xaa0] sm:$0xff]
    %v370 = vld [vmem:[%s1 + $0xaa8] sm:$0xff]
    %v371 = vld [vmem:[%s1 + $0xab0] sm:$0xff]
    %v372 = vld [vmem:[%s1 + $0xab8] sm:$0xff]
    %v373 = vld [vmem:[%s1 + $0xac0] sm:$0xff]
    %v374 = vld [vmem:[%s1 + $0xac8] sm:$0xff]
    %v375 = vld [vmem:[%s1 + $0xad0] sm:$0xff]
    %v376 = vld [vmem:[%s1 + $0xad8] sm:$0xff]
    %v377 = vld [vmem:[%s1 + $0xae0] sm:$0xff]
    %v378 = vld [vmem:[%s1 + $0xae8] sm:$0xff]
    %v379 = vld [vmem:[%s1 + $0xaf0] sm:$0xff]
    %v380 = vld [vmem:[%s1 + $0xaf8] sm:$0xff]
    %v381 = vld [vmem:[%s1 + $0xb00] sm:$0xff]
    %v382 = vld [vmem:[%s1 + $0xb08] sm:$0xff]
    %v383 = vld [vmem:[%s1 + $0xb10] sm:$0xff]
    %v384 = vld [vmem:[%s1 + $0xb18] sm:$0xff]
    %v385 = vld [vmem:[%s1 + $0xb20] sm:$0xff]
    %v386 = vld [vmem:[%s1 + $0xb28] sm:$0xff]
    %v387 = vld [vmem:[%s1 + $0xb30] sm:$0xff]
    %v388 = vld [vmem:[%s1 + $0xb38] sm:$0xff]
    %v389 = vld [vmem:[%s1 + $0xb40] sm:$0xff]
    %v390 = vld [vmem:[%s1 + $0xb48] sm:$0xff]
    %v391 = vld [vmem:[%s1 + $0xb50] sm:$0xff]
    %v392 = vld [vmem:[%s1 + $0xb58] sm:$0xff]
    %v393 = vld [vmem:[%s1 + $0xb60] sm:$0xff]
    %v394 = vld [vmem:[%s1 + $0xb68] sm:$0xff]
    %v395 = vld [vmem:[%s1 + $0xb70] sm:$0xff]
    %v396 = vld [vmem:[%s1 + $0xb78] sm:$0xff]
    %v397 = vld [vmem:[%s1 + $0xb80] sm:$0xff]
    %v398 = vld [vmem:[%s1 + $0xb88] sm:$0xff]
    %v399 = vld [vmem:[%s1 + $0xb90] sm:$0xff]
    %v400 = vld [vmem:[%s1 + $0xb98] sm:$0xff]
    %v401 = vld [vmem:[%s1 + $0xba0] sm:$0xff]
    %v402 = vld [vmem:[%s1 + $0xba8] sm:$0xff]
    %v403 = vld [vmem:[%s1 + $0xbb0] sm:$0xff]
    %v404 = vld [vmem:[%s1 + $0xbb8] sm:$0xff]
    %v405 = vld [vmem:[%s1 + $0xbc0] sm:$0xff]
    %v406 = vld [vmem:[%s1 + $0xbc8] sm:$0xff]
    %v407 = vld [vmem:[%s1 + $0xbd0] sm:$0xff]
    %v408 = vld [vmem:[%s1 + $0xbd8] sm:$0xff]
    %v409 = vld [vmem:[%s1 + $0xbe0] sm:$0xff]
    %v410 = vld [vmem:[%s1 + $0xbe8] sm:$0xff]
    %v411 = vld [vmem:[%s1 + $0xbf0] sm:$0xff]
    %v412 = vld [vmem:[%s1 + $0xbf8] sm:$0xff]
    %v413 = vld [vmem:[%s1 + $0xc00] sm:$0xff]
    %v414 = vld [vmem:[%s1 + $0xc08] sm:$0xff]
    %v415 = vld [vmem:[%s1 + $0xc10] sm:$0xff]
    %v416 = vld [vmem:[%s1 + $0xc18] sm:$0xff]
    %v417 = vld [vmem:[%s1 + $0xc20] sm:$0xff]
    %v418 = vld [vmem:[%s1 + $0xc28] sm:$0xff]
    %v419 = vld [vmem:[%s1 + $0xc30] sm:$0xff]
    %v420 = vld [vmem:[%s1 + $0xc38] sm:$0xff]
    %v421 = vld [vmem:[%s1 + $0xc40] sm:$0xff]
    %v422 = vld [vmem:[%s1 + $0xc48] sm:$0xff]
    %v423 = vld [vmem:[%s1 + $0xc50] sm:$0xff]
    %v424 = vld [vmem:[%s1 + $0xc58] sm:$0xff]
    %v425 = vld [vmem:[%s1 + $0xc60] sm:$0xff]
    %v426 = vld [vmem:[%s1 + $0xc68] sm:$0xff]
    %v427 = vld [vmem:[%s1 + $0xc70] sm:$0xff]
    %v428 = vld [vmem:[%s1 + $0xc78] sm:$0xff]
    %v429 = vld [vmem:[%s1 + $0xc80] sm:$0xff]
    %v430 = vld [vmem:[%s1 + $0xc88] sm:$0xff]
    %v431 = vld [vmem:[%s1 + $0xc90] sm:$0xff]
    %v432 = vld [vmem:[%s1 + $0xc98] sm:$0xff]
    %v433 = vld [vmem:[%s1 + $0xca0] sm:$0xff]
    %v434 = vld [vmem:[%s1 + $0xca8] sm:$0xff]
    %v435 = vld [vmem:[%s1 + $0xcb0] sm:$0xff]
    %v436 = vld [vmem:[%s1 + $0xcb8] sm:$0xff]
    %v437 = vld [vmem:[%s1 + $0xcc0] sm:$0xff]
    %v438 = vld [vmem:[%s1 + $0xcc8] sm:$0xff]
    %v439 = vld [vmem:[%s1 + $0xcd0] sm:$0xff]
    %v440 = vld [vmem:[%s1 + $0xcd8] sm:$0xff]
    %v441 = vld [vmem:[%s1 + $0xce0] sm:$0xff]
    %v442 = vld [vmem:[%s1 + $0xce8] sm:$0xff]
    %v443 = vld [vmem:[%s1 + $0xcf0] sm:$0xff]
    %v444 = vld [vmem:[%s1 + $0xcf8] sm:$0xff]
    %v445 = vld [vmem:[%s1 + $0xd00] sm:$0xff]
    %v446 = vld [vmem:[%s1 + $0xd08] sm:$0xff]
    %v447 = vld [vmem:[%s1 + $0xd10] sm:$0xff]
    %v448 = vld [vmem:[%s1 + $0xd18] sm:$0xff]
    %v449 = vld [vmem:[%s1 + $0xd20] sm:$0xff]
    %v450 = vld [vmem:[%s1 + $0xd28] sm:$0xff]
    %v451 = vld [vmem:[%s1 + $0xd30] sm:$0xff]
    %v452 = vld [vmem:[%s1 + $0xd38] sm:$0xff]
    %v453 = vld [vmem:[%s1 + $0xd40] sm:$0xff]
    %v454 = vld [vmem:[%s1 + $0xd48] sm:$0xff]
    %v455 = vld [vmem:[%s1 + $0xd50] sm:$0xff]
    %v456 = vld [vmem:[%s1 + $0xd58] sm:$0xff]
    %v457 = vld [vmem:[%s1 + $0xd60] sm:$0xff]
    %v458 = vld [vmem:[%s1 + $0xd68] sm:$0xff]
    %v459 = vld [vmem:[%s1 + $0xd70] sm:$0xff]
    %v460 = vld [vmem:[%s1 + $0xd78] sm:$0xff]
    %v461 = vld [vmem:[%s1 + $0xd80] sm:$0xff]
    %v462 = vld [vmem:[%s1 + $0xd88] sm:$0xff]
    %v463 = vld [vmem:[%s1 + $0xd90] sm:$0xff]
    %v464 = vld [vmem:[%s1 + $0xd98] sm:$0xff]
    %v465 = vld [vmem:[%s1 + $0xda0] sm:$0xff]
    %v466 = vld [vmem:[%s1 + $0xda8] sm:$0xff]
    %v467 = vld [vmem:[%s1 + $0xdb0] sm:$0xff]
    %v468 = vld [vmem:[%s1 + $0xdb8] sm:$0xff]
    %v469 = vld [vmem:[%s1 + $0xdc0] sm:$0xff]
    %v470 = vld [vmem:[%s1 + $0xdc8] sm:$0xff]
    %v471 = vld [vmem:[%s1 + $0xdd0] sm:$0xff]
    %v472 = vld [vmem:[%s1 + $0xdd8] sm:$0xff]
    %v473 = vld [vmem:[%s1 + $0xde0] sm:$0xff]
    %v474 = vld [vmem:[%s1 + $0xde8] sm:$0xff]
    %v475 = vld [vmem:[%s1 + $0xdf0] sm:$0xff]
    %v476 = vld [vmem:[%s1 + $0xdf8] sm:$0xff]
    %v477 = vld [vmem:[%s1 + $0xe00] sm:$0xff]
    %v478 = vld [vmem:[%s1 + $0xe08] sm:$0xff]
    %v479 = vld [vmem:[%s1 + $0xe10] sm:$0xff]
    %v480 = vld [vmem:[%s1 + $0xe18] sm:$0xff]
    %v481 = vld [vmem:[%s1 + $0xe20] sm:$0xff]
    %v482 = vld [vmem:[%s1 + $0xe28] sm:$0xff]
    %v483 = vld [vmem:[%s1 + $0xe30] sm:$0xff]
    %v484 = vld [vmem:[%s1 + $0xe38] sm:$0xff]
    %v485 = vld [vmem:[%s1 + $0xe40] sm:$0xff]
    %v486 = vld [vmem:[%s1 + $0xe48] sm:$0xff]
    %v487 = vld [vmem:[%s1 + $0xe50] sm:$0xff]
    %v488 = vld [vmem:[%s1 + $0xe58] sm:$0xff]
    %v489 = vld [vmem:[%s1 + $0xe60] sm:$0xff]
    %v490 = vld [vmem:[%s1 + $0xe68] sm:$0xff]
    %v491 = vld [vmem:[%s1 + $0xe70] sm:$0xff]
    %v492 = vld [vmem:[%s1 + $0xe78] sm:$0xff]
    %v493 = vld [vmem:[%s1 + $0xe80] sm:$0xff]
    %v494 = vld [vmem:[%s1 + $0xe88] sm:$0xff]
    %v495 = vld [vmem:[%s1 + $0xe90] sm:$0xff]
    %v496 = vld [vmem:[%s1 + $0xe98] sm:$0xff]
    %v497 = vld [vmem:[%s1 + $0xea0] sm:$0xff]
    %v498 = vld [vmem:[%s1 + $0xea8] sm:$0xff]
    %v499 = vld [vmem:[%s1 + $0xeb0] sm:$0xff]
    %v500 = vld [vmem:[%s1 + $0xeb8] sm:$0xff]
    %v501 = vld [vmem:[%s1 + $0xec0] sm:$0xff]
    %v502 = vld [vmem:[%s1 + $0xec8] sm:$0xff]
    %v503 = vld [vmem:[%s1 + $0xed0] sm:$0xff]
    %v504 = vld [vmem:[%s1 + $0xed8] sm:$0xff]
    %v505 = vld [vmem:[%s1 + $0xee0] sm:$0xff]
    %v506 = vld [vmem:[%s1 + $0xee8] sm:$0xff]
    %v507 = vld [vmem:[%s1 + $0xef0] sm:$0xff]
    %v508 = vld [vmem:[%s1 + $0xef8] sm:$0xff]
    %v509 = vld [vmem:[%s1 + $0xf00] sm:$0xff]
    %v510 = vld [vmem:[%s1 + $0xf08] sm:$0xff]
    %v511 = vld [vmem:[%s1 + $0xf10] sm:$0xff]
    %v512 = vld [vmem:[%s1 + $0xf18] sm:$0xff]
    %v513 = vld [vmem:[%s1 + $0xf20] sm:$0xff]
    %v514 = vld [vmem:[%s1 + $0xf28] sm:$0xff]
    %v515 = vld [vmem:[%s1 + $0xf30] sm:$0xff]
    %v516 = vld [vmem:[%s1 + $0xf38] sm:$0xff]
    %v517 = vld [vmem:[%s1 + $0xf40] sm:$0xff]
    %v518 = vld [vmem:[%s1 + $0xf48] sm:$0xff]
    %v519 = vld [vmem:[%s1 + $0xf50] sm:$0xff]
    %v520 = vld [vmem:[%s1 + $0xf58] sm:$0xff]
    %v521 = vld [vmem:[%s1 + $0xf60] sm:$0xff]
    %v522 = vld [vmem:[%s1 + $0xf68] sm:$0xff]
    %v523 = vld [vmem:[%s1 + $0xf70] sm:$0xff]
    %v524 = vld [vmem:[%s1 + $0xf78] sm:$0xff]
    %v525 = vld [vmem:[%s1 + $0xf80] sm:$0xff]
    %v526 = vld [vmem:[%s1 + $0xf88] sm:$0xff]
    %v527 = vld [vmem:[%s1 + $0xf90] sm:$0xff]
    %v528 = vld [vmem:[%s1 + $0xf98] sm:$0xff]
    %v529 = vld [vmem:[%s1 + $0xfa0] sm:$0xff]
    %v530 = vld [vmem:[%s1 + $0xfa8] sm:$0xff]
    %v531 = vld [vmem:[%s1 + $0xfb0] sm:$0xff]
    %v532 = vld [vmem:[%s1 + $0xfb8] sm:$0xff]
    %v533 = vld [vmem:[%s1 + $0xfc0] sm:$0xff]
    %v534 = vld [vmem:[%s1 + $0xfc8] sm:$0xff]
    %v535 = vld [vmem:[%s1 + $0xfd0] sm:$0xff]
    %v536 = vld [vmem:[%s1 + $0xfd8] sm:$0xff]
    %v537 = vld [vmem:[%s1 + $0xfe0] sm:$0xff]
    %v538 = vld [vmem:[%s1 + $0xfe8] sm:$0xff]
    %v539 = vld [vmem:[%s1 + $0xff0] sm:$0xff]
    %v540 = vld [vmem:[%s1 + $0xff8] sm:$0xff]
    %v541 = vld [vmem:[%s1 + $0x1000] sm:$0xff]
    %v542 = vld [vmem:[%s1 + $0x1008] sm:$0xff]
    %v543 = vld [vmem:[%s1 + $0x1010] sm:$0xff]
    %v544 = vld [vmem:[%s1 + $0x1018] sm:$0xff]
    %v545 = vld [vmem:[%s1 + $0x1020] sm:$0xff]
    %v546 = vld [vmem:[%s1 + $0x1028] sm:$0xff]
    %v547 = vld [vmem:[%s1 + $0x1030] sm:$0xff]
    %v548 = vld [vmem:[%s1 + $0x1038] sm:$0xff]
    %v549 = vld [vmem:[%s1 + $0x1040] sm:$0xff]
    %v550 = vld [vmem:[%s1 + $0x1048] sm:$0xff]
    %v551 = vld [vmem:[%s1 + $0x1050] sm:$0xff]
    %v552 = vld [vmem:[%s1 + $0x1058] sm:$0xff]
    %v553 = vld [vmem:[%s1 + $0x1060] sm:$0xff]
    %v554 = vld [vmem:[%s1 + $0x1068] sm:$0xff]
    %v555 = vld [vmem:[%s1 + $0x1070] sm:$0xff]
    %v556 = vld [vmem:[%s1 + $0x1078] sm:$0xff]
    %v557 = vld [vmem:[%s1 + $0x1080] sm:$0xff]
    %v558 = vld [vmem:[%s1 + $0x1088] sm:$0xff]
    %v559 = vld [vmem:[%s1 + $0x1090] sm:$0xff]
    %v560 = vld [vmem:[%s1 + $0x1098] sm:$0xff]
    %v561 = vld [vmem:[%s1 + $0x10a0] sm:$0xff]
    %v562 = vld [vmem:[%s1 + $0x10a8] sm:$0xff]
    %v563 = vld [vmem:[%s1 + $0x10b0] sm:$0xff]
    %v564 = vld [vmem:[%s1 + $0x10b8] sm:$0xff]
    %v565 = vld [vmem:[%s1 + $0x10c0] sm:$0xff]
    %v566 = vld [vmem:[%s1 + $0x10c8] sm:$0xff]
    %v567 = vld [vmem:[%s1 + $0x10d0] sm:$0xff]
    %v568 = vld [vmem:[%s1 + $0x10d8] sm:$0xff]
    %v569 = vld [vmem:[%s1 + $0x10e0] sm:$0xff]
    %v570 = vld [vmem:[%s1 + $0x10e8] sm:$0xff]
    %v571 = vld [vmem:[%s1 + $0x10f0] sm:$0xff]
    %v572 = vld [vmem:[%s1 + $0x10f8] sm:$0xff]
    %v573 = vld [vmem:[%s1 + $0x1100] sm:$0xff]
    %v574 = vld [vmem:[%s1 + $0x1108] sm:$0xff]
    %v575 = vld [vmem:[%s1 + $0x1110] sm:$0xff]
    %v576 = vld [vmem:[%s1 + $0x1118] sm:$0xff]
    %v577 = vld [vmem:[%s1 + $0x1120] sm:$0xff]
    %v578 = vld [vmem:[%s1 + $0x1128] sm:$0xff]
    %v579 = vld [vmem:[%s1 + $0x1130] sm:$0xff]
    %v580 = vld [vmem:[%s1 + $0x1138] sm:$0xff]
    %v581 = vld [vmem:[%s1 + $0x1140] sm:$0xff]
    %v582 = vld [vmem:[%s1 + $0x1148] sm:$0xff]
    %v583 = vld [vmem:[%s1 + $0x1150] sm:$0xff]
    %v584 = vld [vmem:[%s1 + $0x1158] sm:$0xff]
    %v585 = vld [vmem:[%s1 + $0x1160] sm:$0xff]
    %v586 = vld [vmem:[%s1 + $0x1168] sm:$0xff]
    %v587 = vld [vmem:[%s1 + $0x1170] sm:$0xff]
    %v588 = vld [vmem:[%s1 + $0x1178] sm:$0xff]
    %v589 = vld [vmem:[%s1 + $0x1180] sm:$0xff]
    %v590 = vld [vmem:[%s1 + $0x1188] sm:$0xff]
    %v591 = vld [vmem:[%s1 + $0x1190] sm:$0xff]
    %v592 = vld [vmem:[%s1 + $0x1198] sm:$0xff]
    %v593 = vld [vmem:[%s1 + $0x11a0] sm:$0xff]
    %v594 = vld [vmem:[%s1 + $0x11a8] sm:$0xff]
    %v595 = vld [vmem:[%s1 + $0x11b0] sm:$0xff]
    %v596 = vld [vmem:[%s1 + $0x11b8] sm:$0xff]
    %v597 = vld [vmem:[%s1 + $0x11c0] sm:$0xff]
    %v598 = vld [vmem:[%s1 + $0x11c8] sm:$0xff]
    %v599 = vld [vmem:[%s1 + $0x11d0] sm:$0xff]
    %v600 = vld [vmem:[%s1 + $0x11d8] sm:$0xff]
    %v601 = vld [vmem:[%s1 + $0x11e0] sm:$0xff]
    %v602 = vld [vmem:[%s1 + $0x11e8] sm:$0xff]
    %v603 = vld [vmem:[%s1 + $0x11f0] sm:$0xff]
    %v604 = vld [vmem:[%s1 + $0x11f8] sm:$0xff]
    %v605 = vld [vmem:[%s1 + $0x1200] sm:$0xff]
    %v606 = vld [vmem:[%s1 + $0x1208] sm:$0xff]
    %v607 = vld [vmem:[%s1 + $0x1210] sm:$0xff]
    %v608 = vld [vmem:[%s1 + $0x1218] sm:$0xff]
    %v609 = vld [vmem:[%s1 + $0x1220] sm:$0xff]
    %v610 = vld [vmem:[%s1 + $0x1228] sm:$0xff]
    %v611 = vld [vmem:[%s1 + $0x1230] sm:$0xff]
    %v612 = vld [vmem:[%s1 + $0x1238] sm:$0xff]
    %v613 = vld [vmem:[%s1 + $0x1240] sm:$0xff]
    %v614 = vld [vmem:[%s1 + $0x1248] sm:$0xff]
    %v615 = vld [vmem:[%s1 + $0x1250] sm:$0xff]
    %v616 = vld [vmem:[%s1 + $0x1258] sm:$0xff]
    %v617 = vld [vmem:[%s1 + $0x1260] sm:$0xff]
    %v618 = vld [vmem:[%s1 + $0x1268] sm:$0xff]
    %v619 = vld [vmem:[%s1 + $0x1270] sm:$0xff]
    %v620 = vld [vmem:[%s1 + $0x1278] sm:$0xff]
    %v621 = vld [vmem:[%s1 + $0x1280] sm:$0xff]
    %v622 = vld [vmem:[%s1 + $0x1288] sm:$0xff]
    %v623 = vld [vmem:[%s1 + $0x1290] sm:$0xff]
    %v624 = vld [vmem:[%s1 + $0x1298] sm:$0xff]
    %v625 = vld [vmem:[%s1 + $0x12a0] sm:$0xff]
    %v626 = vld [vmem:[%s1 + $0x12a8] sm:$0xff]
    %v627 = vld [vmem:[%s1 + $0x12b0] sm:$0xff]
    %v628 = vld [vmem:[%s1 + $0x12b8] sm:$0xff]
    %v629 = vld [vmem:[%s1 + $0x12c0] sm:$0xff]
    %v630 = vld [vmem:[%s1 + $0x12c8] sm:$0xff]
    %v631 = vld [vmem:[%s1 + $0x12d0] sm:$0xff]
    %v632 = vld [vmem:[%s1 + $0x12d8] sm:$0xff]
    %v633 = vld [vmem:[%s1 + $0x12e0] sm:$0xff]
    %v634 = vld [vmem:[%s1 + $0x12e8] sm:$0xff]
    %v635 = vld [vmem:[%s1 + $0x12f0] sm:$0xff]
    %v636 = vld [vmem:[%s1 + $0x12f8] sm:$0xff]
    %v637 = vld [vmem:[%s1 + $0x1300] sm:$0xff]
    %v638 = vld [vmem:[%s1 + $0x1308] sm:$0xff]
    %v639 = vld [vmem:[%s1 + $0x1310] sm:$0xff]
    %v640 = vld [vmem:[%s1 + $0x1318] sm:$0xff]
    %v641 = vld [vmem:[%s1 + $0x1320] sm:$0xff]
    %v642 = vld [vmem:[%s1 + $0x1328] sm:$0xff]
    %v643 = vld [vmem:[%s1 + $0x1330] sm:$0xff]
    %v644 = vld [vmem:[%s1 + $0x1338] sm:$0xff]
    %v645 = vld [vmem:[%s1 + $0x1340] sm:$0xff]
    %v646 = vld [vmem:[%s1 + $0x1348] sm:$0xff]
    %v647 = vld [vmem:[%s1 + $0x1350] sm:$0xff]
    %v648 = vld [vmem:[%s1 + $0x1358] sm:$0xff]
    %v649 = vld [vmem:[%s1 + $0x1360] sm:$0xff]
    %v650 = vld [vmem:[%s1 + $0x1368] sm:$0xff]
    %v651 = vld [vmem:[%s1 + $0x1370] sm:$0xff]
    %v652 = vld [vmem:[%s1 + $0x1378] sm:$0xff]
    %v653 = vld [vmem:[%s1 + $0x1380] sm:$0xff]
    %v654 = vld [vmem:[%s1 + $0x1388] sm:$0xff]
    %v655 = vld [vmem:[%s1 + $0x1390] sm:$0xff]
    %v656 = vld [vmem:[%s1 + $0x1398] sm:$0xff]
    %v657 = vld [vmem:[%s1 + $0x13a0] sm:$0xff]
    %v658 = vld [vmem:[%s1 + $0x13a8] sm:$0xff]
    %v659 = vld [vmem:[%s1 + $0x13b0] sm:$0xff]
    %v660 = vld [vmem:[%s1 + $0x13b8] sm:$0xff]
    %v661 = vld [vmem:[%s1 + $0x13c0] sm:$0xff]
    %v662 = vld [vmem:[%s1 + $0x13c8] sm:$0xff]
    %v663 = vld [vmem:[%s1 + $0x13d0] sm:$0xff]
    %v664 = vld [vmem:[%s1 + $0x13d8] sm:$0xff]
    %v665 = vld [vmem:[%s1 + $0x13e0] sm:$0xff]
    %v666 = vld [vmem:[%s1 + $0x13e8] sm:$0xff]
    %v667 = vld [vmem:[%s1 + $0x13f0] sm:$0xff]
    %v668 = vld [vmem:[%s1 + $0x13f8] sm:$0xff]
    %v669 = vld [vmem:[%s1 + $0x1400] sm:$0xff]
    %v670 = vld [vmem:[%s1 + $0x1408] sm:$0xff]
    %v671 = vld [vmem:[%s1 + $0x1410] sm:$0xff]
    %v672 = vld [vmem:[%s1 + $0x1418] sm:$0xff]
    %v673 = vld [vmem:[%s1 + $0x1420] sm:$0xff]
    %v674 = vld [vmem:[%s1 + $0x1428] sm:$0xff]
    %v675 = vld [vmem:[%s1 + $0x1430] sm:$0xff]
    %v676 = vld [vmem:[%s1 + $0x1438] sm:$0xff]
    %v677 = vld [vmem:[%s1 + $0x1440] sm:$0xff]
    %v678 = vld [vmem:[%s1 + $0x1448] sm:$0xff]
    %v679 = vld [vmem:[%s1 + $0x1450] sm:$0xff]
    %v680 = vld [vmem:[%s1 + $0x1458] sm:$0xff]
    %v681 = vld [vmem:[%s1 + $0x1460] sm:$0xff]
    %v682 = vld [vmem:[%s1 + $0x1468] sm:$0xff]
    %v683 = vld [vmem:[%s1 + $0x1470] sm:$0xff]
    %v684 = vld [vmem:[%s1 + $0x1478] sm:$0xff]
    %v685 = vld [vmem:[%s1 + $0x1480] sm:$0xff]
    %v686 = vld [vmem:[%s1 + $0x1488] sm:$0xff]
    %v687 = vld [vmem:[%s1 + $0x1490] sm:$0xff]
    %v688 = vld [vmem:[%s1 + $0x1498] sm:$0xff]
    %v689 = vld [vmem:[%s1 + $0x14a0] sm:$0xff]
    %v690 = vld [vmem:[%s1 + $0x14a8] sm:$0xff]
    %v691 = vld [vmem:[%s1 + $0x14b0] sm:$0xff]
    %v692 = vld [vmem:[%s1 + $0x14b8] sm:$0xff]
    %v693 = vld [vmem:[%s1 + $0x14c0] sm:$0xff]
    %v694 = vld [vmem:[%s1 + $0x14c8] sm:$0xff]
    %v695 = vld [vmem:[%s1 + $0x14d0] sm:$0xff]
    %v696 = vld [vmem:[%s1 + $0x14d8] sm:$0xff]
    %v697 = vld [vmem:[%s1 + $0x14e0] sm:$0xff]
    %v698 = vld [vmem:[%s1 + $0x14e8] sm:$0xff]
    %v699 = vld [vmem:[%s1 + $0x14f0] sm:$0xff]
    %v700 = vld [vmem:[%s1 + $0x14f8] sm:$0xff]
    %v701 = vld [vmem:[%s1 + $0x1500] sm:$0xff]
    %v702 = vld [vmem:[%s1 + $0x1508] sm:$0xff]
    %v703 = vld [vmem:[%s1 + $0x1510] sm:$0xff]
    %v704 = vld [vmem:[%s1 + $0x1518] sm:$0xff]
    %v705 = vld [vmem:[%s1 + $0x1520] sm:$0xff]
    %v706 = vld [vmem:[%s1 + $0x1528] sm:$0xff]
    %v707 = vld [vmem:[%s1 + $0x1530] sm:$0xff]
    %v708 = vld [vmem:[%s1 + $0x1538] sm:$0xff]
    %v709 = vld [vmem:[%s1 + $0x1540] sm:$0xff]
    %v710 = vld [vmem:[%s1 + $0x1548] sm:$0xff]
    %v711 = vld [vmem:[%s1 + $0x1550] sm:$0xff]
    %v712 = vld [vmem:[%s1 + $0x1558] sm:$0xff]
    %v713 = vld [vmem:[%s1 + $0x1560] sm:$0xff]
    %v714 = vld [vmem:[%s1 + $0x1568] sm:$0xff]
    %v715 = vld [vmem:[%s1 + $0x1570] sm:$0xff]
    %v716 = vld [vmem:[%s1 + $0x1578] sm:$0xff]
    %v717 = vld [vmem:[%s1 + $0x1580] sm:$0xff]
    %v718 = vld [vmem:[%s1 + $0x1588] sm:$0xff]
    %v719 = vld [vmem:[%s1 + $0x1590] sm:$0xff]
    %v720 = vld [vmem:[%s1 + $0x1598] sm:$0xff]
    %v721 = vld [vmem:[%s1 + $0x15a0] sm:$0xff]
    %v722 = vld [vmem:[%s1 + $0x15a8] sm:$0xff]
    %v723 = vld [vmem:[%s1 + $0x15b0] sm:$0xff]
    %v724 = vld [vmem:[%s1 + $0x15b8] sm:$0xff]
    %v725 = vld [vmem:[%s1 + $0x15c0] sm:$0xff]
    %v726 = vld [vmem:[%s1 + $0x15c8] sm:$0xff]
    %v727 = vld [vmem:[%s1 + $0x15d0] sm:$0xff]
    %v728 = vld [vmem:[%s1 + $0x15d8] sm:$0xff]
    %v729 = vld [vmem:[%s1 + $0x15e0] sm:$0xff]
    %v730 = vld [vmem:[%s1 + $0x15e8] sm:$0xff]
    %v731 = vld [vmem:[%s1 + $0x15f0] sm:$0xff]
    %v732 = vld [vmem:[%s1 + $0x15f8] sm:$0xff]
    %v733 = vld [vmem:[%s1 + $0x1600] sm:$0xff]
    %v734 = vld [vmem:[%s1 + $0x1608] sm:$0xff]
    %v735 = vld [vmem:[%s1 + $0x1610] sm:$0xff]
    %v736 = vld [vmem:[%s1 + $0x1618] sm:$0xff]
    %v737 = vld [vmem:[%s1 + $0x1620] sm:$0xff]
    %v738 = vld [vmem:[%s1 + $0x1628] sm:$0xff]
    %v739 = vld [vmem:[%s1 + $0x1630] sm:$0xff]
    %v740 = vld [vmem:[%s1 + $0x1638] sm:$0xff]
    %v741 = vld [vmem:[%s1 + $0x1640] sm:$0xff]
    %v742 = vld [vmem:[%s1 + $0x1648] sm:$0xff]
    %v743 = vld [vmem:[%s1 + $0x1650] sm:$0xff]
    %v744 = vld [vmem:[%s1 + $0x1658] sm:$0xff]
    %v745 = vld [vmem:[%s1 + $0x1660] sm:$0xff]
    %v746 = vld [vmem:[%s1 + $0x1668] sm:$0xff]
    %v747 = vld [vmem:[%s1 + $0x1670] sm:$0xff]
    %v748 = vld [vmem:[%s1 + $0x1678] sm:$0xff]
    %v749 = vld [vmem:[%s1 + $0x1680] sm:$0xff]
    %v750 = vld [vmem:[%s1 + $0x1688] sm:$0xff]
    %v751 = vld [vmem:[%s1 + $0x1690] sm:$0xff]
    %v752 = vld [vmem:[%s1 + $0x1698] sm:$0xff]
    %v753 = vld [vmem:[%s1 + $0x16a0] sm:$0xff]
    %v754 = vld [vmem:[%s1 + $0x16a8] sm:$0xff]
    %v755 = vld [vmem:[%s1 + $0x16b0] sm:$0xff]
    %v756 = vld [vmem:[%s1 + $0x16b8] sm:$0xff]
    %v757 = vld [vmem:[%s1 + $0x16c0] sm:$0xff]
    %v758 = vld [vmem:[%s1 + $0x16c8] sm:$0xff]
    %v759 = vld [vmem:[%s1 + $0x16d0] sm:$0xff]
    %v760 = vld [vmem:[%s1 + $0x16d8] sm:$0xff]
    %v761 = vld [vmem:[%s1 + $0x16e0] sm:$0xff]
    %v762 = vld [vmem:[%s1 + $0x16e8] sm:$0xff]
    %v763 = vld [vmem:[%s1 + $0x16f0] sm:$0xff]
    %v764 = vld [vmem:[%s1 + $0x16f8] sm:$0xff]
    %v765 = vld [vmem:[%s1 + $0x1700] sm:$0xff]
    %v766 = vld [vmem:[%s1 + $0x1708] sm:$0xff]
    %v767 = vld [vmem:[%s1 + $0x1710] sm:$0xff]
    %v768 = vld [vmem:[%s1 + $0x1718] sm:$0xff]
    %v769 = vld [vmem:[%s1 + $0x1720] sm:$0xff]
    %v770 = vld [vmem:[%s1 + $0x1728] sm:$0xff]
    %v771 = vld [vmem:[%s1 + $0x1730] sm:$0xff]
    %v772 = vld [vmem:[%s1 + $0x1738] sm:$0xff]
    %v773 = vld [vmem:[%s1 + $0x1740] sm:$0xff]
    %v774 = vld [vmem:[%s1 + $0x1748] sm:$0xff]
    %v775 = vld [vmem:[%s1 + $0x1750] sm:$0xff]
    %v776 = vld [vmem:[%s1 + $0x1758] sm:$0xff]
    %v777 = vld [vmem:[%s1 + $0x1760] sm:$0xff]
    %v778 = vld [vmem:[%s1 + $0x1768] sm:$0xff]
    %v779 = vld [vmem:[%s1 + $0x1770] sm:$0xff]
    %v780 = vld [vmem:[%s1 + $0x1778] sm:$0xff]
    %v781 = vld [vmem:[%s1 + $0x1780] sm:$0xff]
    %v782 = vld [vmem:[%s1 + $0x1788] sm:$0xff]
    %v783 = vld [vmem:[%s1 + $0x1790] sm:$0xff]
    %v784 = vld [vmem:[%s1 + $0x1798] sm:$0xff]
    %v785 = vld [vmem:[%s1 + $0x17a0] sm:$0xff]
    %v786 = vld [vmem:[%s1 + $0x17a8] sm:$0xff]
    %v787 = vld [vmem:[%s1 + $0x17b0] sm:$0xff]
    %v788 = vld [vmem:[%s1 + $0x17b8] sm:$0xff]
    %v789 = vld [vmem:[%s1 + $0x17c0] sm:$0xff]
    %v790 = vld [vmem:[%s1 + $0x17c8] sm:$0xff]
    %v791 = vld [vmem:[%s1 + $0x17d0] sm:$0xff]
    %v792 = vld [vmem:[%s1 + $0x17d8] sm:$0xff]
    %v793 = vld [vmem:[%s1 + $0x17e0] sm:$0xff]
    %v794 = vld [vmem:[%s1 + $0x17e8] sm:$0xff]
    %v795 = vld [vmem:[%s1 + $0x17f0] sm:$0xff]
    %v796 = vld [vmem:[%s1 + $0x17f8] sm:$0xff]
    %v797 = vld [vmem:[%s1 + $0x1800] sm:$0xff]
    %v798 = vld [vmem:[%s1 + $0x1808] sm:$0xff]
    %v799 = vld [vmem:[%s1 + $0x1810] sm:$0xff]
    %v800 = vld [vmem:[%s1 + $0x1818] sm:$0xff]
    %v801 = vld [vmem:[%s1 + $0x1820] sm:$0xff]
    %v802 = vld [vmem:[%s1 + $0x1828] sm:$0xff]
    %v803 = vld [vmem:[%s1 + $0x1830] sm:$0xff]
    %v804 = vld [vmem:[%s1 + $0x1838] sm:$0xff]
    %v805 = vld [vmem:[%s1 + $0x1840] sm:$0xff]
    %v806 = vld [vmem:[%s1 + $0x1848] sm:$0xff]
    %v807 = vld [vmem:[%s1 + $0x1850] sm:$0xff]
    %v808 = vld [vmem:[%s1 + $0x1858] sm:$0xff]
    %v809 = vld [vmem:[%s1 + $0x1860] sm:$0xff]
    %v810 = vld [vmem:[%s1 + $0x1868] sm:$0xff]
    %v811 = vld [vmem:[%s1 + $0x1870] sm:$0xff]
    %v812 = vld [vmem:[%s1 + $0x1878] sm:$0xff]
    %v813 = vld [vmem:[%s1 + $0x1880] sm:$0xff]
    %v814 = vld [vmem:[%s1 + $0x1888] sm:$0xff]
    %v815 = vld [vmem:[%s1 + $0x1890] sm:$0xff]
    %v816 = vld [vmem:[%s1 + $0x1898] sm:$0xff]
    %v817 = vld [vmem:[%s1 + $0x18a0] sm:$0xff]
    %v818 = vld [vmem:[%s1 + $0x18a8] sm:$0xff]
    %v819 = vld [vmem:[%s1 + $0x18b0] sm:$0xff]
    %v820 = vld [vmem:[%s1 + $0x18b8] sm:$0xff]
    %v821 = vld [vmem:[%s1 + $0x18c0] sm:$0xff]
    %v822 = vld [vmem:[%s1 + $0x18c8] sm:$0xff]
    %v823 = vld [vmem:[%s1 + $0x18d0] sm:$0xff]
    %v824 = vld [vmem:[%s1 + $0x18d8] sm:$0xff]
    %v825 = vld [vmem:[%s1 + $0x18e0] sm:$0xff]
    %v826 = vld [vmem:[%s1 + $0x18e8] sm:$0xff]
    %v827 = vld [vmem:[%s1 + $0x18f0] sm:$0xff]
    %v828 = vld [vmem:[%s1 + $0x18f8] sm:$0xff]
    %v829 = vld [vmem:[%s1 + $0x1900] sm:$0xff]
    %v830 = vld [vmem:[%s1 + $0x1908] sm:$0xff]
    %v831 = vld [vmem:[%s1 + $0x1910] sm:$0xff]
    %v832 = vld [vmem:[%s1 + $0x1918] sm:$0xff]
    %v833 = vld [vmem:[%s1 + $0x1920] sm:$0xff]
    %v834 = vld [vmem:[%s1 + $0x1928] sm:$0xff]
    %v835 = vld [vmem:[%s1 + $0x1930] sm:$0xff]
    %v836 = vld [vmem:[%s1 + $0x1938] sm:$0xff]
    %v837 = vld [vmem:[%s1 + $0x1940] sm:$0xff]
    %v838 = vld [vmem:[%s1 + $0x1948] sm:$0xff]
    %v839 = vld [vmem:[%s1 + $0x1950] sm:$0xff]
    %v840 = vld [vmem:[%s1 + $0x1958] sm:$0xff]
    %v841 = vld [vmem:[%s1 + $0x1960] sm:$0xff]
    %v842 = vld [vmem:[%s1 + $0x1968] sm:$0xff]
    %v843 = vld [vmem:[%s1 + $0x1970] sm:$0xff]
    %v844 = vld [vmem:[%s1 + $0x1978] sm:$0xff]
    %v845 = vld [vmem:[%s1 + $0x1980] sm:$0xff]
    %v846 = vld [vmem:[%s1 + $0x1988] sm:$0xff]
    %v847 = vld [vmem:[%s1 + $0x1990] sm:$0xff]
    %v848 = vld [vmem:[%s1 + $0x1998] sm:$0xff]
    %v849 = vld [vmem:[%s1 + $0x19a0] sm:$0xff]
    %v850 = vld [vmem:[%s1 + $0x19a8] sm:$0xff]
    %v851 = vld [vmem:[%s1 + $0x19b0] sm:$0xff]
    %v852 = vld [vmem:[%s1 + $0x19b8] sm:$0xff]
    %v853 = vld [vmem:[%s1 + $0x19c0] sm:$0xff]
    %v854 = vld [vmem:[%s1 + $0x19c8] sm:$0xff]
    %v855 = vld [vmem:[%s1 + $0x19d0] sm:$0xff]
    %v856 = vld [vmem:[%s1 + $0x19d8] sm:$0xff]
    %v857 = vld [vmem:[%s1 + $0x19e0] sm:$0xff]
    %v858 = vld [vmem:[%s1 + $0x19e8] sm:$0xff]
    %v859 = vld [vmem:[%s1 + $0x19f0] sm:$0xff]
    %v860 = vld [vmem:[%s1 + $0x19f8] sm:$0xff]
    %v861 = vld [vmem:[%s1 + $0x1a00] sm:$0xff]
    %v862 = vld [vmem:[%s1 + $0x1a08] sm:$0xff]
    %v863 = vld [vmem:[%s1 + $0x1a10] sm:$0xff]
    %v864 = vld [vmem:[%s1 + $0x1a18] sm:$0xff]
    %v865 = vld [vmem:[%s1 + $0x1a20] sm:$0xff]
    %v866 = vld [vmem:[%s1 + $0x1a28] sm:$0xff]
    %v867 = vld [vmem:[%s1 + $0x1a30] sm:$0xff]
    %v868 = vld [vmem:[%s1 + $0x1a38] sm:$0xff]
    %v869 = vld [vmem:[%s1 + $0x1a40] sm:$0xff]
    %v870 = vld [vmem:[%s1 + $0x1a48] sm:$0xff]
    %v871 = vld [vmem:[%s1 + $0x1a50] sm:$0xff]
    %v872 = vld [vmem:[%s1 + $0x1a58] sm:$0xff]
    %v873 = vld [vmem:[%s1 + $0x1a60] sm:$0xff]
    %v874 = vld [vmem:[%s1 + $0x1a68] sm:$0xff]
    %v875 = vld [vmem:[%s1 + $0x1a70] sm:$0xff]
    %v876 = vld [vmem:[%s1 + $0x1a78] sm:$0xff]
    %v877 = vld [vmem:[%s1 + $0x1a80] sm:$0xff]
    %v878 = vld [vmem:[%s1 + $0x1a88] sm:$0xff]
    %v879 = vld [vmem:[%s1 + $0x1a90] sm:$0xff]
    %v880 = vld [vmem:[%s1 + $0x1a98] sm:$0xff]
    %v881 = vld [vmem:[%s1 + $0x1aa0] sm:$0xff]
    %v882 = vld [vmem:[%s1 + $0x1aa8] sm:$0xff]
    %v883 = vld [vmem:[%s1 + $0x1ab0] sm:$0xff]
    %v884 = vld [vmem:[%s1 + $0x1ab8] sm:$0xff]
    %v885 = vld [vmem:[%s1 + $0x1ac0] sm:$0xff]
    %v886 = vld [vmem:[%s1 + $0x1ac8] sm:$0xff]
    %v887 = vld [vmem:[%s1 + $0x1ad0] sm:$0xff]
    %v888 = vld [vmem:[%s1 + $0x1ad8] sm:$0xff]
    %v889 = vld [vmem:[%s1 + $0x1ae0] sm:$0xff]
    %v890 = vld [vmem:[%s1 + $0x1ae8] sm:$0xff]
    %v891 = vld [vmem:[%s1 + $0x1af0] sm:$0xff]
    %v892 = vld [vmem:[%s1 + $0x1af8] sm:$0xff]
    %v893 = vld [vmem:[%s1 + $0x1b00] sm:$0xff]
    %v894 = vld [vmem:[%s1 + $0x1b08] sm:$0xff]
    %v895 = vld [vmem:[%s1 + $0x1b10] sm:$0xff]
    %v896 = vld [vmem:[%s1 + $0x1b18] sm:$0xff]
    %v897 = vld [vmem:[%s1 + $0x1b20] sm:$0xff]
    %v898 = vld [vmem:[%s1 + $0x1b28] sm:$0xff]
    %v899 = vld [vmem:[%s1 + $0x1b30] sm:$0xff]
    %v900 = vld [vmem:[%s1 + $0x1b38] sm:$0xff]
    %v901 = vld [vmem:[%s1 + $0x1b40] sm:$0xff]
    %v902 = vld [vmem:[%s1 + $0x1b48] sm:$0xff]
    %v903 = vld [vmem:[%s1 + $0x1b50] sm:$0xff]
    %v904 = vld [vmem:[%s1 + $0x1b58] sm:$0xff]
    %v905 = vld [vmem:[%s1 + $0x1b60] sm:$0xff]
    %v906 = vld [vmem:[%s1 + $0x1b68] sm:$0xff]
    %v907 = vld [vmem:[%s1 + $0x1b70] sm:$0xff]
    %v908 = vld [vmem:[%s1 + $0x1b78] sm:$0xff]
    %v909 = vld [vmem:[%s1 + $0x1b80] sm:$0xff]
    %v910 = vld [vmem:[%s1 + $0x1b88] sm:$0xff]
    %v911 = vld [vmem:[%s1 + $0x1b90] sm:$0xff]
    %v912 = vld [vmem:[%s1 + $0x1b98] sm:$0xff]
    %v913 = vld [vmem:[%s1 + $0x1ba0] sm:$0xff]
    %v914 = vld [vmem:[%s1 + $0x1ba8] sm:$0xff]
    %v915 = vld [vmem:[%s1 + $0x1bb0] sm:$0xff]
    %v916 = vld [vmem:[%s1 + $0x1bb8] sm:$0xff]
    %v917 = vld [vmem:[%s1 + $0x1bc0] sm:$0xff]
    %v918 = vld [vmem:[%s1 + $0x1bc8] sm:$0xff]
    %v919 = vld [vmem:[%s1 + $0x1bd0] sm:$0xff]
    %v920 = vld [vmem:[%s1 + $0x1bd8] sm:$0xff]
    %v921 = vld [vmem:[%s1 + $0x1be0] sm:$0xff]
    %v922 = vld [vmem:[%s1 + $0x1be8] sm:$0xff]
    %v923 = vld [vmem:[%s1 + $0x1bf0] sm:$0xff]
    %v924 = vld [vmem:[%s1 + $0x1bf8] sm:$0xff]
    %v925 = vld [vmem:[%s1 + $0x1c00] sm:$0xff]
    %v926 = vld [vmem:[%s1 + $0x1c08] sm:$0xff]
    %v927 = vld [vmem:[%s1 + $0x1c10] sm:$0xff]
    %v928 = vld [vmem:[%s1 + $0x1c18] sm:$0xff]
    %v929 = vld [vmem:[%s1 + $0x1c20] sm:$0xff]
    %v930 = vld [vmem:[%s1 + $0x1c28] sm:$0xff]
    %v931 = vld [vmem:[%s1 + $0x1c30] sm:$0xff]
    %v932 = vld [vmem:[%s1 + $0x1c38] sm:$0xff]
    %v933 = vld [vmem:[%s1 + $0x1c40] sm:$0xff]
    %v934 = vld [vmem:[%s1 + $0x1c48] sm:$0xff]
    %v935 = vld [vmem:[%s1 + $0x1c50] sm:$0xff]
    %v936 = vld [vmem:[%s1 + $0x1c58] sm:$0xff]
    %v937 = vld [vmem:[%s1 + $0x1c60] sm:$0xff]
    %v938 = vld [vmem:[%s1 + $0x1c68] sm:$0xff]
    %v939 = vld [vmem:[%s1 + $0x1c70] sm:$0xff]
    %v940 = vld [vmem:[%s1 + $0x1c78] sm:$0xff]
    %v941 = vld [vmem:[%s1 + $0x1c80] sm:$0xff]
    %v942 = vld [vmem:[%s1 + $0x1c88] sm:$0xff]
    %v943 = vld [vmem:[%s1 + $0x1c90] sm:$0xff]
    %v944 = vld [vmem:[%s1 + $0x1c98] sm:$0xff]
    %v945 = vld [vmem:[%s1 + $0x1ca0] sm:$0xff]
    %v946 = vld [vmem:[%s1 + $0x1ca8] sm:$0xff]
    %v947 = vld [vmem:[%s1 + $0x1cb0] sm:$0xff]
    %v948 = vld [vmem:[%s1 + $0x1cb8] sm:$0xff]
    %v949 = vld [vmem:[%s1 + $0x1cc0] sm:$0xff]
    %v950 = vld [vmem:[%s1 + $0x1cc8] sm:$0xff]
    %v951 = vld [vmem:[%s1 + $0x1cd0] sm:$0xff]
    %v952 = vld [vmem:[%s1 + $0x1cd8] sm:$0xff]
    %v953 = vld [vmem:[%s1 + $0x1ce0] sm:$0xff]
    %v954 = vld [vmem:[%s1 + $0x1ce8] sm:$0xff]
    %v955 = vld [vmem:[%s1 + $0x1cf0] sm:$0xff]
    %v956 = vld [vmem:[%s1 + $0x1cf8] sm:$0xff]
    %v957 = vld [vmem:[%s1 + $0x1d00] sm:$0xff]
    %v958 = vld [vmem:[%s1 + $0x1d08] sm:$0xff]
    %v959 = vld [vmem:[%s1 + $0x1d10] sm:$0xff]
    %v960 = vld [vmem:[%s1 + $0x1d18] sm:$0xff]
    %v961 = vld [vmem:[%s1 + $0x1d20] sm:$0xff]
    %v962 = vld [vmem:[%s1 + $0x1d28] sm:$0xff]
    %v963 = vld [vmem:[%s1 + $0x1d30] sm:$0xff]
    %v964 = vld [vmem:[%s1 + $0x1d38] sm:$0xff]
    %v965 = vld [vmem:[%s1 + $0x1d40] sm:$0xff]
    %v966 = vld [vmem:[%s1 + $0x1d48] sm:$0xff]
    %v967 = vld [vmem:[%s1 + $0x1d50] sm:$0xff]
    %v968 = vld [vmem:[%s1 + $0x1d58] sm:$0xff]
    %v969 = vld [vmem:[%s1 + $0x1d60] sm:$0xff]
    %v970 = vld [vmem:[%s1 + $0x1d68] sm:$0xff]
    %v971 = vld [vmem:[%s1 + $0x1d70] sm:$0xff]
    %v972 = vld [vmem:[%s1 + $0x1d78] sm:$0xff]
    %v973 = vld [vmem:[%s1 + $0x1d80] sm:$0xff]
    %v974 = vld [vmem:[%s1 + $0x1d88] sm:$0xff]
    %v975 = vld [vmem:[%s1 + $0x1d90] sm:$0xff]
    %v976 = vld [vmem:[%s1 + $0x1d98] sm:$0xff]
    %v977 = vld [vmem:[%s1 + $0x1da0] sm:$0xff]
    %v978 = vld [vmem:[%s1 + $0x1da8] sm:$0xff]
    %v979 = vld [vmem:[%s1 + $0x1db0] sm:$0xff]
    %v980 = vld [vmem:[%s1 + $0x1db8] sm:$0xff]
    %v981 = vld [vmem:[%s1 + $0x1dc0] sm:$0xff]
    %v982 = vld [vmem:[%s1 + $0x1dc8] sm:$0xff]
    %v983 = vld [vmem:[%s1 + $0x1dd0] sm:$0xff]
    %v984 = vld [vmem:[%s1 + $0x1dd8] sm:$0xff]
    %v985 = vld [vmem:[%s1 + $0x1de0] sm:$0xff]
    %v986 = vld [vmem:[%s1 + $0x1de8] sm:$0xff]
    %v987 = vld [vmem:[%s1 + $0x1df0] sm:$0xff]
    %v988 = vld [vmem:[%s1 + $0x1df8] sm:$0xff]
    %v989 = vld [vmem:[%s1 + $0x1e00] sm:$0xff]
    %v990 = vld [vmem:[%s1 + $0x1e08] sm:$0xff]
    %v991 = vld [vmem:[%s1 + $0x1e10] sm:$0xff]
    %v992 = vld [vmem:[%s1 + $0x1e18] sm:$0xff]
    %v993 = vld [vmem:[%s1 + $0x1e20] sm:$0xff]
    %v994 = vld [vmem:[%s1 + $0x1e28] sm:$0xff]
    %v995 = vld [vmem:[%s1 + $0x1e30] sm:$0xff]
    %v996 = vld [vmem:[%s1 + $0x1e38] sm:$0xff]
    %v997 = vld [vmem:[%s1 + $0x1e40] sm:$0xff]
    %v998 = vld [vmem:[%s1 + $0x1e48] sm:$0xff]
    %v999 = vld [vmem:[%s1 + $0x1e50] sm:$0xff]
    %v1000 = vld [vmem:[%s1 + $0x1e58] sm:$0xff]
    %v1001 = vld [vmem:[%s1 + $0x1e60] sm:$0xff]
    %v1002 = vld [vmem:[%s1 + $0x1e68] sm:$0xff]
    %v1003 = vld [vmem:[%s1 + $0x1e70] sm:$0xff]
    %v1004 = vld [vmem:[%s1 + $0x1e78] sm:$0xff]
    %v1005 = vld [vmem:[%s1 + $0x1e80] sm:$0xff]
    %v1006 = vld [vmem:[%s1 + $0x1e88] sm:$0xff]
    %v1007 = vld [vmem:[%s1 + $0x1e90] sm:$0xff]
    %v1008 = vld [vmem:[%s1 + $0x1e98] sm:$0xff]
    %v1009 = vld [vmem:[%s1 + $0x1ea0] sm:$0xff]
    %v1010 = vld [vmem:[%s1 + $0x1ea8] sm:$0xff]
    %v1011 = vld [vmem:[%s1 + $0x1eb0] sm:$0xff]
    %v1012 = vld [vmem:[%s1 + $0x1eb8] sm:$0xff]
    %v1013 = vld [vmem:[%s1 + $0x1ec0] sm:$0xff]
    %v1014 = vld [vmem:[%s1 + $0x1ec8] sm:$0xff]
    %v1015 = vld [vmem:[%s1 + $0x1ed0] sm:$0xff]
    %v1016 = vld [vmem:[%s1 + $0x1ed8] sm:$0xff]
    %v1017 = vld [vmem:[%s1 + $0x1ee0] sm:$0xff]
    %v1018 = vld [vmem:[%s1 + $0x1ee8] sm:$0xff]
    %v1019 = vld [vmem:[%s1 + $0x1ef0] sm:$0xff]
    %v1020 = vld [vmem:[%s1 + $0x1ef8] sm:$0xff]
    %v1021 = vld [vmem:[%s1 + $0x1f00] sm:$0xff]
    %v1022 = vld [vmem:[%s1 + $0x1f08] sm:$0xff]
    %v1023 = vld [vmem:[%s1 + $0x1f10] sm:$0xff]
    %v1024 = vld [vmem:[%s1 + $0x1f18] sm:$0xff]
    %v1025 = vld [vmem:[%s1 + $0x1f20] sm:$0xff]
    %v1026 = vld [vmem:[%s1 + $0x1f28] sm:$0xff]
    %v1027 = vld [vmem:[%s1 + $0x1f30] sm:$0xff]
    %v1028 = vld [vmem:[%s1 + $0x1f38] sm:$0xff]
    %v1029 = vld [vmem:[%s1 + $0x1f40] sm:$0xff]
    %v1030 = vld [vmem:[%s1 + $0x1f48] sm:$0xff]
    %v1031 = vld [vmem:[%s1 + $0x1f50] sm:$0xff]
    %v1032 = vld [vmem:[%s1 + $0x1f58] sm:$0xff]
    %v1033 = vld [vmem:[%s1 + $0x1f60] sm:$0xff]
    %v1034 = vld [vmem:[%s1 + $0x1f68] sm:$0xff]
    %v1035 = vld [vmem:[%s1 + $0x1f70] sm:$0xff]
    %v1036 = vld [vmem:[%s1 + $0x1f78] sm:$0xff]
    %v1037 = vld [vmem:[%s1 + $0x1f80] sm:$0xff]
    %v1038 = vld [vmem:[%s1 + $0x1f88] sm:$0xff]
    %v1039 = vld [vmem:[%s1 + $0x1f90] sm:$0xff]
    %v1040 = vld [vmem:[%s1 + $0x1f98] sm:$0xff]
    %v1041 = vld [vmem:[%s1 + $0x1fa0] sm:$0xff]
    %v1042 = vld [vmem:[%s1 + $0x1fa8] sm:$0xff]
    %v1043 = vld [vmem:[%s1 + $0x1fb0] sm:$0xff]
    %v1044 = vld [vmem:[%s1 + $0x1fb8] sm:$0xff]
    %v1045 = vld [vmem:[%s1 + $0x1fc0] sm:$0xff]
    %v1046 = vld [vmem:[%s1 + $0x1fc8] sm:$0xff]
    %v1047 = vld [vmem:[%s1 + $0x1fd0] sm:$0xff]
    %v1048 = vld [vmem:[%s1 + $0x1fd8] sm:$0xff]
    %v1049 = vld [vmem:[%s1 + $0x1fe0] sm:$0xff]
    %v1050 = vld [vmem:[%s1 + $0x1fe8] sm:$0xff]
    %v1051 = vld [vmem:[%s1 + $0x1ff0] sm:$0xff]
    %v1052 = vld [vmem:[%s1 + $0x1ff8] sm:$0xff]
    %v1053 = vld [vmem:[%s2] sm:$0x3]
    %v1055 = vlaneseq
    %v1056 = vshrl.u32 %v1055, 7
    %v1057 = vsub.s32 0, %v1056
    %v1058 = vrot.slane %v1053, %v1057
    %v1059 = vlaneseq
    %v1060 = vshrl.u32 %v1059, 7
    %v1061 = vsub.s32 1, %v1060
    %v1062 = vrot.slane %v1053, %v1061
    %v1073 = vcombine.high %v21, %v21
    %v1075 = vunpack.c.l.s4 1983009808
    %v1076 = vunpack.c.0.s8 %v1075
    %v1077 = vlaneseq
    %v1078 = vshrl.u32 %v1077, 7
    %v1079 = vsub.s32 %v1076, %v1078
    %v1080 = vrot.slane %v21, %v1079
    %v1082 = vunpack.c.l.s4 1983009808
    %v1083 = vunpack.c.0.s8 %v1082
    %v1084 = vlaneseq
    %v1085 = vshrl.u32 %v1084, 7
    %v1086 = vsub.s32 %v1083, %v1085
    %v1087 = vrot.slane %v1073, %v1086
    %v1088 = vcombine.high %v1080, %v1080
    %v1089 = vcombine.high %v1087, %v1087
    %v1090 = vcombine.high %v22, %v22
    %v1092 = vunpack.c.l.s4 1983009808
    %v1093 = vunpack.c.0.s8 %v1092
    %v1094 = vlaneseq
    %v1095 = vshrl.u32 %v1094, 7
    %v1096 = vsub.s32 %v1093, %v1095
    %v1097 = vrot.slane %v22, %v1096
    %v1099 = vunpack.c.l.s4 1983009808
    %v1100 = vunpack.c.0.s8 %v1099
    %v1101 = vlaneseq
    %v1102 = vshrl.u32 %v1101, 7
    %v1103 = vsub.s32 %v1100, %v1102
    %v1104 = vrot.slane %v1090, %v1103
    %v1105 = vcombine.high %v1097, %v1097
    %v1106 = vcombine.high %v1104, %v1104
    %v1107 = vcombine.high %v23, %v23
    %v1109 = vunpack.c.l.s4 1983009808
    %v1110 = vunpack.c.0.s8 %v1109
    %v1111 = vlaneseq
    %v1112 = vshrl.u32 %v1111, 7
    %v1113 = vsub.s32 %v1110, %v1112
    %v1114 = vrot.slane %v23, %v1113
    %v1116 = vunpack.c.l.s4 1983009808
    %v1117 = vunpack.c.0.s8 %v1116
    %v1118 = vlaneseq
    %v1119 = vshrl.u32 %v1118, 7
    %v1120 = vsub.s32 %v1117, %v1119
    %v1121 = vrot.slane %v1107, %v1120
    %v1122 = vcombine.high %v1114, %v1114
    %v1123 = vcombine.high %v1121, %v1121
    %v1124 = vcombine.high %v24, %v24
    %v1126 = vunpack.c.l.s4 1983009808
    %v1127 = vunpack.c.0.s8 %v1126
    %v1128 = vlaneseq
    %v1129 = vshrl.u32 %v1128, 7
    %v1130 = vsub.s32 %v1127, %v1129
    %v1131 = vrot.slane %v24, %v1130
    %v1133 = vunpack.c.l.s4 1983009808
    %v1134 = vunpack.c.0.s8 %v1133
    %v1135 = vlaneseq
    %v1136 = vshrl.u32 %v1135, 7
    %v1137 = vsub.s32 %v1134, %v1136
    %v1138 = vrot.slane %v1124, %v1137
    %v1139 = vcombine.high %v1131, %v1131
    %v1140 = vcombine.high %v1138, %v1138
    %v1141 = vcombine.high %v25, %v25
    %v1143 = vunpack.c.l.s4 1983009808
    %v1144 = vunpack.c.0.s8 %v1143
    %v1145 = vlaneseq
    %v1146 = vshrl.u32 %v1145, 7
    %v1147 = vsub.s32 %v1144, %v1146
    %v1148 = vrot.slane %v25, %v1147
    %v1150 = vunpack.c.l.s4 1983009808
    %v1151 = vunpack.c.0.s8 %v1150
    %v1152 = vlaneseq
    %v1153 = vshrl.u32 %v1152, 7
    %v1154 = vsub.s32 %v1151, %v1153
    %v1155 = vrot.slane %v1141, %v1154
    %v1156 = vcombine.high %v1148, %v1148
    %v1157 = vcombine.high %v1155, %v1155
    %v1158 = vcombine.high %v26, %v26
    %v1160 = vunpack.c.l.s4 1983009808
    %v1161 = vunpack.c.0.s8 %v1160
    %v1162 = vlaneseq
    %v1163 = vshrl.u32 %v1162, 7
    %v1164 = vsub.s32 %v1161, %v1163
    %v1165 = vrot.slane %v26, %v1164
    %v1167 = vunpack.c.l.s4 1983009808
    %v1168 = vunpack.c.0.s8 %v1167
    %v1169 = vlaneseq
    %v1170 = vshrl.u32 %v1169, 7
    %v1171 = vsub.s32 %v1168, %v1170
    %v1172 = vrot.slane %v1158, %v1171
    %v1173 = vcombine.high %v1165, %v1165
    %v1174 = vcombine.high %v1172, %v1172
    %v1175 = vcombine.high %v27, %v27
    %v1177 = vunpack.c.l.s4 1983009808
    %v1178 = vunpack.c.0.s8 %v1177
    %v1179 = vlaneseq
    %v1180 = vshrl.u32 %v1179, 7
    %v1181 = vsub.s32 %v1178, %v1180
    %v1182 = vrot.slane %v27, %v1181
    %v1184 = vunpack.c.l.s4 1983009808
    %v1185 = vunpack.c.0.s8 %v1184
    %v1186 = vlaneseq
    %v1187 = vshrl.u32 %v1186, 7
    %v1188 = vsub.s32 %v1185, %v1187
    %v1189 = vrot.slane %v1175, %v1188
    %v1190 = vcombine.high %v1182, %v1182
    %v1191 = vcombine.high %v1189, %v1189
    %v1192 = vcombine.high %v28, %v28
    %v1194 = vunpack.c.l.s4 1983009808
    %v1195 = vunpack.c.0.s8 %v1194
    %v1196 = vlaneseq
    %v1197 = vshrl.u32 %v1196, 7
    %v1198 = vsub.s32 %v1195, %v1197
    %v1199 = vrot.slane %v28, %v1198
    %v1201 = vunpack.c.l.s4 1983009808
    %v1202 = vunpack.c.0.s8 %v1201
    %v1203 = vlaneseq
    %v1204 = vshrl.u32 %v1203, 7
    %v1205 = vsub.s32 %v1202, %v1204
    %v1206 = vrot.slane %v1192, %v1205
    %v1207 = vcombine.high %v1199, %v1199
    %v1208 = vcombine.high %v1206, %v1206
    %1241 = vmatprep.subr.mxu0 %v30
    %1242 = vmatpush1.msra.mxu0 %v29
    %1243 = vmatprep.subr.mxu0 %v32
    %1244 = vmatpush1.msra.mxu0 %v31
    %1245 = vmatprep.subr.mxu0 %v34
    %1246 = vmatpush1.msra.mxu0 %v33
    %1247 = vmatprep.subr.mxu0 %v36
    %1248 = vmatpush1.msra.mxu0 %v35
    %1249 = vmatprep.subr.mxu0 %v38
    %1250 = vmatpush1.msra.mxu0 %v37
    %1251 = vmatprep.subr.mxu0 %v40
    %1252 = vmatpush1.msra.mxu0 %v39
    %1253 = vmatprep.subr.mxu0 %v42
    %1254 = vmatpush1.msra.mxu0 %v41
    %1255 = vmatprep.subr.mxu0 %v44
    %1256 = vmatpush1.msra.mxu0 %v43
    %1257 = vmatprep.subr.mxu0 %v46
    %1258 = vmatpush1.msra.mxu0 %v45
    %1259 = vmatprep.subr.mxu0 %v48
    %1260 = vmatpush1.msra.mxu0 %v47
    %1261 = vmatprep.subr.mxu0 %v50
    %1262 = vmatpush1.msra.mxu0 %v49
    %1263 = vmatprep.subr.mxu0 %v52
    %1264 = vmatpush1.msra.mxu0 %v51
    %1265 = vmatprep.subr.mxu0 %v54
    %1266 = vmatpush1.msra.mxu0 %v53
    %1267 = vmatprep.subr.mxu0 %v56
    %1268 = vmatpush1.msra.mxu0 %v55
    %1269 = vmatprep.subr.mxu0 %v58
    %1270 = vmatpush1.msra.mxu0 %v57
    %1271 = vmatprep.subr.mxu0 %v60
    %1272 = vmatpush1.msra.mxu0 %v59
    %1273 = vmatprep.subr.mxu0 %v62
    %1274 = vmatpush1.msra.mxu0 %v61
    %1275 = vmatprep.subr.mxu0 %v64
    %1276 = vmatpush1.msra.mxu0 %v63
    %1277 = vmatprep.subr.mxu0 %v66
    %1278 = vmatpush1.msra.mxu0 %v65
    %1279 = vmatprep.subr.mxu0 %v68
    %1280 = vmatpush1.msra.mxu0 %v67
    %1281 = vmatprep.subr.mxu0 %v70
    %1282 = vmatpush1.msra.mxu0 %v69
    %1283 = vmatprep.subr.mxu0 %v72
    %1284 = vmatpush1.msra.mxu0 %v71
    %1285 = vmatprep.subr.mxu0 %v74
    %1286 = vmatpush1.msra.mxu0 %v73
    %1287 = vmatprep.subr.mxu0 %v76
    %1288 = vmatpush1.msra.mxu0 %v75
    %1289 = vmatprep.subr.mxu0 %v78
    %1290 = vmatpush1.msra.mxu0 %v77
    %1291 = vmatprep.subr.mxu0 %v80
    %1292 = vmatpush1.msra.mxu0 %v79
    %1293 = vmatprep.subr.mxu0 %v82
    %1294 = vmatpush1.msra.mxu0 %v81
    %1295 = vmatprep.subr.mxu0 %v84
    %1296 = vmatpush1.msra.mxu0 %v83
    %1297 = vmatprep.subr.mxu0 %v86
    %1298 = vmatpush1.msra.mxu0 %v85
    %1299 = vmatprep.subr.mxu0 %v88
    %1300 = vmatpush1.msra.mxu0 %v87
    %1301 = vmatprep.subr.mxu0 %v90
    %1302 = vmatpush1.msra.mxu0 %v89
    %1303 = vmatprep.subr.mxu0 %v92
    %1304 = vmatpush1.msra.mxu0 %v91
    %1305 = vmatprep.mubr.f32.mxu0 %v1088
    %1306 = vmatmul.mubr.f32.gmra.mrb[0].mxu0 %v1080
    %v1307 = vpop.f32.mrb[0].mxu0
    %v1308 = vadd.f32 %v1058, %v1307
    %v1309 = vpop.f32.mrb[0].mxu0
    %v1310 = vadd.f32 %v1062, %v1309
    %1311 = vdwg.mxu0
    %1312 = vmatprep.subr.mxu0 %v94
    %1313 = vmatpush1.msra.mxu0 %v93
    %1314 = vmatprep.subr.mxu0 %v96
    %1315 = vmatpush1.msra.mxu0 %v95
    %1316 = vmatprep.subr.mxu0 %v98
    %1317 = vmatpush1.msra.mxu0 %v97
    %1318 = vmatprep.subr.mxu0 %v100
    %1319 = vmatpush1.msra.mxu0 %v99
    %1320 = vmatprep.subr.mxu0 %v102
    %1321 = vmatpush1.msra.mxu0 %v101
    %1322 = vmatprep.subr.mxu0 %v104
    %1323 = vmatpush1.msra.mxu0 %v103
    %1324 = vmatprep.subr.mxu0 %v106
    %1325 = vmatpush1.msra.mxu0 %v105
    %1326 = vmatprep.subr.mxu0 %v108
    %1327 = vmatpush1.msra.mxu0 %v107
    %1328 = vmatprep.subr.mxu0 %v110
    %1329 = vmatpush1.msra.mxu0 %v109
    %1330 = vmatprep.subr.mxu0 %v112
    %1331 = vmatpush1.msra.mxu0 %v111
    %1332 = vmatprep.subr.mxu0 %v114
    %1333 = vmatpush1.msra.mxu0 %v113
    %1334 = vmatprep.subr.mxu0 %v116
    %1335 = vmatpush1.msra.mxu0 %v115
    %1336 = vmatprep.subr.mxu0 %v118
    %1337 = vmatpush1.msra.mxu0 %v117
    %1338 = vmatprep.subr.mxu0 %v120
    %1339 = vmatpush1.msra.mxu0 %v119
    %1340 = vmatprep.subr.mxu0 %v122
    %1341 = vmatpush1.msra.mxu0 %v121
    %1342 = vmatprep.subr.mxu0 %v124
    %1343 = vmatpush1.msra.mxu0 %v123
    %1344 = vmatprep.subr.mxu0 %v126
    %1345 = vmatpush1.msra.mxu0 %v125
    %1346 = vmatprep.subr.mxu0 %v128
    %1347 = vmatpush1.msra.mxu0 %v127
    %1348 = vmatprep.subr.mxu0 %v130
    %1349 = vmatpush1.msra.mxu0 %v129
    %1350 = vmatprep.subr.mxu0 %v132
    %1351 = vmatpush1.msra.mxu0 %v131
    %1352 = vmatprep.subr.mxu0 %v134
    %1353 = vmatpush1.msra.mxu0 %v133
    %1354 = vmatprep.subr.mxu0 %v136
    %1355 = vmatpush1.msra.mxu0 %v135
    %1356 = vmatprep.subr.mxu0 %v138
    %1357 = vmatpush1.msra.mxu0 %v137
    %1358 = vmatprep.subr.mxu0 %v140
    %1359 = vmatpush1.msra.mxu0 %v139
    %1360 = vmatprep.subr.mxu0 %v142
    %1361 = vmatpush1.msra.mxu0 %v141
    %1362 = vmatprep.subr.mxu0 %v144
    %1363 = vmatpush1.msra.mxu0 %v143
    %1364 = vmatprep.subr.mxu0 %v146
    %1365 = vmatpush1.msra.mxu0 %v145
    %1366 = vmatprep.subr.mxu0 %v148
    %1367 = vmatpush1.msra.mxu0 %v147
    %1368 = vmatprep.subr.mxu0 %v150
    %1369 = vmatpush1.msra.mxu0 %v149
    %1370 = vmatprep.subr.mxu0 %v152
    %1371 = vmatpush1.msra.mxu0 %v151
    %1372 = vmatprep.subr.mxu0 %v154
    %1373 = vmatpush1.msra.mxu0 %v153
    %1374 = vmatprep.subr.mxu0 %v156
    %1375 = vmatpush1.msra.mxu0 %v155
    %1376 = vmatprep.mubr.f32.mxu0 %v1089
    %1377 = vmatmul.mubr.f32.gmra.mrb[0].mxu0 %v1087
    %v1378 = vpop.f32.mrb[0].mxu0
    %v1379 = vadd.f32 %v1308, %v1378
    %v1380 = vpop.f32.mrb[0].mxu0
    %v1381 = vadd.f32 %v1310, %v1380
    %1382 = vdwg.mxu0
    %1383 = vmatprep.subr.mxu0 %v158
    %1384 = vmatpush1.msra.mxu0 %v157
    %1385 = vmatprep.subr.mxu0 %v160
    %1386 = vmatpush1.msra.mxu0 %v159
    %1387 = vmatprep.subr.mxu0 %v162
    %1388 = vmatpush1.msra.mxu0 %v161
    %1389 = vmatprep.subr.mxu0 %v164
    %1390 = vmatpush1.msra.mxu0 %v163
    %1391 = vmatprep.subr.mxu0 %v166
    %1392 = vmatpush1.msra.mxu0 %v165
    %1393 = vmatprep.subr.mxu0 %v168
    %1394 = vmatpush1.msra.mxu0 %v167
    %1395 = vmatprep.subr.mxu0 %v170
    %1396 = vmatpush1.msra.mxu0 %v169
    %1397 = vmatprep.subr.mxu0 %v172
    %1398 = vmatpush1.msra.mxu0 %v171
    %1399 = vmatprep.subr.mxu0 %v174
    %1400 = vmatpush1.msra.mxu0 %v173
    %1401 = vmatprep.subr.mxu0 %v176
    %1402 = vmatpush1.msra.mxu0 %v175
    %1403 = vmatprep.subr.mxu0 %v178
    %1404 = vmatpush1.msra.mxu0 %v177
    %1405 = vmatprep.subr.mxu0 %v180
    %1406 = vmatpush1.msra.mxu0 %v179
    %1407 = vmatprep.subr.mxu0 %v182
    %1408 = vmatpush1.msra.mxu0 %v181
    %1409 = vmatprep.subr.mxu0 %v184
    %1410 = vmatpush1.msra.mxu0 %v183
    %1411 = vmatprep.subr.mxu0 %v186
    %1412 = vmatpush1.msra.mxu0 %v185
    %1413 = vmatprep.subr.mxu0 %v188
    %1414 = vmatpush1.msra.mxu0 %v187
    %1415 = vmatprep.subr.mxu0 %v190
    %1416 = vmatpush1.msra.mxu0 %v189
    %1417 = vmatprep.subr.mxu0 %v192
    %1418 = vmatpush1.msra.mxu0 %v191
    %1419 = vmatprep.subr.mxu0 %v194
    %1420 = vmatpush1.msra.mxu0 %v193
    %1421 = vmatprep.subr.mxu0 %v196
    %1422 = vmatpush1.msra.mxu0 %v195
    %1423 = vmatprep.subr.mxu0 %v198
    %1424 = vmatpush1.msra.mxu0 %v197
    %1425 = vmatprep.subr.mxu0 %v200
    %1426 = vmatpush1.msra.mxu0 %v199
    %1427 = vmatprep.subr.mxu0 %v202
    %1428 = vmatpush1.msra.mxu0 %v201
    %1429 = vmatprep.subr.mxu0 %v204
    %1430 = vmatpush1.msra.mxu0 %v203
    %1431 = vmatprep.subr.mxu0 %v206
    %1432 = vmatpush1.msra.mxu0 %v205
    %1433 = vmatprep.subr.mxu0 %v208
    %1434 = vmatpush1.msra.mxu0 %v207
    %1435 = vmatprep.subr.mxu0 %v210
    %1436 = vmatpush1.msra.mxu0 %v209
    %1437 = vmatprep.subr.mxu0 %v212
    %1438 = vmatpush1.msra.mxu0 %v211
    %1439 = vmatprep.subr.mxu0 %v214
    %1440 = vmatpush1.msra.mxu0 %v213
    %1441 = vmatprep.subr.mxu0 %v216
    %1442 = vmatpush1.msra.mxu0 %v215
    %1443 = vmatprep.subr.mxu0 %v218
    %1444 = vmatpush1.msra.mxu0 %v217
    %1445 = vmatprep.subr.mxu0 %v220
    %1446 = vmatpush1.msra.mxu0 %v219
    %1447 = vmatprep.mubr.f32.mxu0 %v1105
    %1448 = vmatmul.mubr.f32.gmra.mrb[0].mxu0 %v1097
    %v1449 = vpop.f32.mrb[0].mxu0
    %v1450 = vadd.f32 %v1379, %v1449
    %v1451 = vpop.f32.mrb[0].mxu0
    %v1452 = vadd.f32 %v1381, %v1451
    %1453 = vdwg.mxu0
    %1454 = vmatprep.subr.mxu0 %v222
    %1455 = vmatpush1.msra.mxu0 %v221
    %1456 = vmatprep.subr.mxu0 %v224
    %1457 = vmatpush1.msra.mxu0 %v223
    %1458 = vmatprep.subr.mxu0 %v226
    %1459 = vmatpush1.msra.mxu0 %v225
    %1460 = vmatprep.subr.mxu0 %v228
    %1461 = vmatpush1.msra.mxu0 %v227
    %1462 = vmatprep.subr.mxu0 %v230
    %1463 = vmatpush1.msra.mxu0 %v229
    %1464 = vmatprep.subr.mxu0 %v232
    %1465 = vmatpush1.msra.mxu0 %v231
    %1466 = vmatprep.subr.mxu0 %v234
    %1467 = vmatpush1.msra.mxu0 %v233
    %1468 = vmatprep.subr.mxu0 %v236
    %1469 = vmatpush1.msra.mxu0 %v235
    %1470 = vmatprep.subr.mxu0 %v238
    %1471 = vmatpush1.msra.mxu0 %v237
    %1472 = vmatprep.subr.mxu0 %v240
    %1473 = vmatpush1.msra.mxu0 %v239
    %1474 = vmatprep.subr.mxu0 %v242
    %1475 = vmatpush1.msra.mxu0 %v241
    %1476 = vmatprep.subr.mxu0 %v244
    %1477 = vmatpush1.msra.mxu0 %v243
    %1478 = vmatprep.subr.mxu0 %v246
    %1479 = vmatpush1.msra.mxu0 %v245
    %1480 = vmatprep.subr.mxu0 %v248
    %1481 = vmatpush1.msra.mxu0 %v247
    %1482 = vmatprep.subr.mxu0 %v250
    %1483 = vmatpush1.msra.mxu0 %v249
    %1484 = vmatprep.subr.mxu0 %v252
    %1485 = vmatpush1.msra.mxu0 %v251
    %1486 = vmatprep.subr.mxu0 %v254
    %1487 = vmatpush1.msra.mxu0 %v253
    %1488 = vmatprep.subr.mxu0 %v256
    %1489 = vmatpush1.msra.mxu0 %v255
    %1490 = vmatprep.subr.mxu0 %v258
    %1491 = vmatpush1.msra.mxu0 %v257
    %1492 = vmatprep.subr.mxu0 %v260
    %1493 = vmatpush1.msra.mxu0 %v259
    %1494 = vmatprep.subr.mxu0 %v262
    %1495 = vmatpush1.msra.mxu0 %v261
    %1496 = vmatprep.subr.mxu0 %v264
    %1497 = vmatpush1.msra.mxu0 %v263
    %1498 = vmatprep.subr.mxu0 %v266
    %1499 = vmatpush1.msra.mxu0 %v265
    %1500 = vmatprep.subr.mxu0 %v268
    %1501 = vmatpush1.msra.mxu0 %v267
    %1502 = vmatprep.subr.mxu0 %v270
    %1503 = vmatpush1.msra.mxu0 %v269
    %1504 = vmatprep.subr.mxu0 %v272
    %1505 = vmatpush1.msra.mxu0 %v271
    %1506 = vmatprep.subr.mxu0 %v274
    %1507 = vmatpush1.msra.mxu0 %v273
    %1508 = vmatprep.subr.mxu0 %v276
    %1509 = vmatpush1.msra.mxu0 %v275
    %1510 = vmatprep.subr.mxu0 %v278
    %1511 = vmatpush1.msra.mxu0 %v277
    %1512 = vmatprep.subr.mxu0 %v280
    %1513 = vmatpush1.msra.mxu0 %v279
    %1514 = vmatprep.subr.mxu0 %v282
    %1515 = vmatpush1.msra.mxu0 %v281
    %1516 = vmatprep.subr.mxu0 %v284
    %1517 = vmatpush1.msra.mxu0 %v283
    %1518 = vmatprep.mubr.f32.mxu0 %v1106
    %1519 = vmatmul.mubr.f32.gmra.mrb[0].mxu0 %v1104
    %v1520 = vpop.f32.mrb[0].mxu0
    %v1521 = vadd.f32 %v1450, %v1520
    %v1522 = vpop.f32.mrb[0].mxu0
    %v1523 = vadd.f32 %v1452, %v1522
    %1524 = vdwg.mxu0
    %1525 = vmatprep.subr.mxu0 %v286
    %1526 = vmatpush1.msra.mxu0 %v285
    %1527 = vmatprep.subr.mxu0 %v288
    %1528 = vmatpush1.msra.mxu0 %v287
    %1529 = vmatprep.subr.mxu0 %v290
    %1530 = vmatpush1.msra.mxu0 %v289
    %1531 = vmatprep.subr.mxu0 %v292
    %1532 = vmatpush1.msra.mxu0 %v291
    %1533 = vmatprep.subr.mxu0 %v294
    %1534 = vmatpush1.msra.mxu0 %v293
    %1535 = vmatprep.subr.mxu0 %v296
    %1536 = vmatpush1.msra.mxu0 %v295
    %1537 = vmatprep.subr.mxu0 %v298
    %1538 = vmatpush1.msra.mxu0 %v297
    %1539 = vmatprep.subr.mxu0 %v300
    %1540 = vmatpush1.msra.mxu0 %v299
    %1541 = vmatprep.subr.mxu0 %v302
    %1542 = vmatpush1.msra.mxu0 %v301
    %1543 = vmatprep.subr.mxu0 %v304
    %1544 = vmatpush1.msra.mxu0 %v303
    %1545 = vmatprep.subr.mxu0 %v306
    %1546 = vmatpush1.msra.mxu0 %v305
    %1547 = vmatprep.subr.mxu0 %v308
    %1548 = vmatpush1.msra.mxu0 %v307
    %1549 = vmatprep.subr.mxu0 %v310
    %1550 = vmatpush1.msra.mxu0 %v309
    %1551 = vmatprep.subr.mxu0 %v312
    %1552 = vmatpush1.msra.mxu0 %v311
    %1553 = vmatprep.subr.mxu0 %v314
    %1554 = vmatpush1.msra.mxu0 %v313
    %1555 = vmatprep.subr.mxu0 %v316
    %1556 = vmatpush1.msra.mxu0 %v315
    %1557 = vmatprep.subr.mxu0 %v318
    %1558 = vmatpush1.msra.mxu0 %v317
    %1559 = vmatprep.subr.mxu0 %v320
    %1560 = vmatpush1.msra.mxu0 %v319
    %1561 = vmatprep.subr.mxu0 %v322
    %1562 = vmatpush1.msra.mxu0 %v321
    %1563 = vmatprep.subr.mxu0 %v324
    %1564 = vmatpush1.msra.mxu0 %v323
    %1565 = vmatprep.subr.mxu0 %v326
    %1566 = vmatpush1.msra.mxu0 %v325
    %1567 = vmatprep.subr.mxu0 %v328
    %1568 = vmatpush1.msra.mxu0 %v327
    %1569 = vmatprep.subr.mxu0 %v330
    %1570 = vmatpush1.msra.mxu0 %v329
    %1571 = vmatprep.subr.mxu0 %v332
    %1572 = vmatpush1.msra.mxu0 %v331
    %1573 = vmatprep.subr.mxu0 %v334
    %1574 = vmatpush1.msra.mxu0 %v333
    %1575 = vmatprep.subr.mxu0 %v336
    %1576 = vmatpush1.msra.mxu0 %v335
    %1577 = vmatprep.subr.mxu0 %v338
    %1578 = vmatpush1.msra.mxu0 %v337
    %1579 = vmatprep.subr.mxu0 %v340
    %1580 = vmatpush1.msra.mxu0 %v339
    %1581 = vmatprep.subr.mxu0 %v342
    %1582 = vmatpush1.msra.mxu0 %v341
    %1583 = vmatprep.subr.mxu0 %v344
    %1584 = vmatpush1.msra.mxu0 %v343
    %1585 = vmatprep.subr.mxu0 %v346
    %1586 = vmatpush1.msra.mxu0 %v345
    %1587 = vmatprep.subr.mxu0 %v348
    %1588 = vmatpush1.msra.mxu0 %v347
    %1589 = vmatprep.mubr.f32.mxu0 %v1122
    %1590 = vmatmul.mubr.f32.gmra.mrb[0].mxu0 %v1114
    %v1591 = vpop.f32.mrb[0].mxu0
    %v1592 = vadd.f32 %v1521, %v1591
    %v1593 = vpop.f32.mrb[0].mxu0
    %v1594 = vadd.f32 %v1523, %v1593
    %1595 = vdwg.mxu0
    %1596 = vmatprep.subr.mxu0 %v350
    %1597 = vmatpush1.msra.mxu0 %v349
    %1598 = vmatprep.subr.mxu0 %v352
    %1599 = vmatpush1.msra.mxu0 %v351
    %1600 = vmatprep.subr.mxu0 %v354
    %1601 = vmatpush1.msra.mxu0 %v353
    %1602 = vmatprep.subr.mxu0 %v356
    %1603 = vmatpush1.msra.mxu0 %v355
    %1604 = vmatprep.subr.mxu0 %v358
    %1605 = vmatpush1.msra.mxu0 %v357
    %1606 = vmatprep.subr.mxu0 %v360
    %1607 = vmatpush1.msra.mxu0 %v359
    %1608 = vmatprep.subr.mxu0 %v362
    %1609 = vmatpush1.msra.mxu0 %v361
    %1610 = vmatprep.subr.mxu0 %v364
    %1611 = vmatpush1.msra.mxu0 %v363
    %1612 = vmatprep.subr.mxu0 %v366
    %1613 = vmatpush1.msra.mxu0 %v365
    %1614 = vmatprep.subr.mxu0 %v368
    %1615 = vmatpush1.msra.mxu0 %v367
    %1616 = vmatprep.subr.mxu0 %v370
    %1617 = vmatpush1.msra.mxu0 %v369
    %1618 = vmatprep.subr.mxu0 %v372
    %1619 = vmatpush1.msra.mxu0 %v371
    %1620 = vmatprep.subr.mxu0 %v374
    %1621 = vmatpush1.msra.mxu0 %v373
    %1622 = vmatprep.subr.mxu0 %v376
    %1623 = vmatpush1.msra.mxu0 %v375
    %1624 = vmatprep.subr.mxu0 %v378
    %1625 = vmatpush1.msra.mxu0 %v377
    %1626 = vmatprep.subr.mxu0 %v380
    %1627 = vmatpush1.msra.mxu0 %v379
    %1628 = vmatprep.subr.mxu0 %v382
    %1629 = vmatpush1.msra.mxu0 %v381
    %1630 = vmatprep.subr.mxu0 %v384
    %1631 = vmatpush1.msra.mxu0 %v383
    %1632 = vmatprep.subr.mxu0 %v386
    %1633 = vmatpush1.msra.mxu0 %v385
    %1634 = vmatprep.subr.mxu0 %v388
    %1635 = vmatpush1.msra.mxu0 %v387
    %1636 = vmatprep.subr.mxu0 %v390
    %1637 = vmatpush1.msra.mxu0 %v389
    %1638 = vmatprep.subr.mxu0 %v392
    %1639 = vmatpush1.msra.mxu0 %v391
    %1640 = vmatprep.subr.mxu0 %v394
    %1641 = vmatpush1.msra.mxu0 %v393
    %1642 = vmatprep.subr.mxu0 %v396
    %1643 = vmatpush1.msra.mxu0 %v395
    %1644 = vmatprep.subr.mxu0 %v398
    %1645 = vmatpush1.msra.mxu0 %v397
    %1646 = vmatprep.subr.mxu0 %v400
    %1647 = vmatpush1.msra.mxu0 %v399
    %1648 = vmatprep.subr.mxu0 %v402
    %1649 = vmatpush1.msra.mxu0 %v401
    %1650 = vmatprep.subr.mxu0 %v404
    %1651 = vmatpush1.msra.mxu0 %v403
    %1652 = vmatprep.subr.mxu0 %v406
    %1653 = vmatpush1.msra.mxu0 %v405
    %1654 = vmatprep.subr.mxu0 %v408
    %1655 = vmatpush1.msra.mxu0 %v407
    %1656 = vmatprep.subr.mxu0 %v410
    %1657 = vmatpush1.msra.mxu0 %v409
    %1658 = vmatprep.subr.mxu0 %v412
    %1659 = vmatpush1.msra.mxu0 %v411
    %1660 = vmatprep.mubr.f32.mxu0 %v1123
    %1661 = vmatmul.mubr.f32.gmra.mrb[0].mxu0 %v1121
    %v1662 = vpop.f32.mrb[0].mxu0
    %v1663 = vadd.f32 %v1592, %v1662
    %v1664 = vpop.f32.mrb[0].mxu0
    %v1665 = vadd.f32 %v1594, %v1664
    %1666 = vdwg.mxu0
    %1667 = vmatprep.subr.mxu0 %v414
    %1668 = vmatpush1.msra.mxu0 %v413
    %1669 = vmatprep.subr.mxu0 %v416
    %1670 = vmatpush1.msra.mxu0 %v415
    %1671 = vmatprep.subr.mxu0 %v418
    %1672 = vmatpush1.msra.mxu0 %v417
    %1673 = vmatprep.subr.mxu0 %v420
    %1674 = vmatpush1.msra.mxu0 %v419
    %1675 = vmatprep.subr.mxu0 %v422
    %1676 = vmatpush1.msra.mxu0 %v421
    %1677 = vmatprep.subr.mxu0 %v424
    %1678 = vmatpush1.msra.mxu0 %v423
    %1679 = vmatprep.subr.mxu0 %v426
    %1680 = vmatpush1.msra.mxu0 %v425
    %1681 = vmatprep.subr.mxu0 %v428
    %1682 = vmatpush1.msra.mxu0 %v427
    %1683 = vmatprep.subr.mxu0 %v430
    %1684 = vmatpush1.msra.mxu0 %v429
    %1685 = vmatprep.subr.mxu0 %v432
    %1686 = vmatpush1.msra.mxu0 %v431
    %1687 = vmatprep.subr.mxu0 %v434
    %1688 = vmatpush1.msra.mxu0 %v433
    %1689 = vmatprep.subr.mxu0 %v436
    %1690 = vmatpush1.msra.mxu0 %v435
    %1691 = vmatprep.subr.mxu0 %v438
    %1692 = vmatpush1.msra.mxu0 %v437
    %1693 = vmatprep.subr.mxu0 %v440
    %1694 = vmatpush1.msra.mxu0 %v439
    %1695 = vmatprep.subr.mxu0 %v442
    %1696 = vmatpush1.msra.mxu0 %v441
    %1697 = vmatprep.subr.mxu0 %v444
    %1698 = vmatpush1.msra.mxu0 %v443
    %1699 = vmatprep.subr.mxu0 %v446
    %1700 = vmatpush1.msra.mxu0 %v445
    %1701 = vmatprep.subr.mxu0 %v448
    %1702 = vmatpush1.msra.mxu0 %v447
    %1703 = vmatprep.subr.mxu0 %v450
    %1704 = vmatpush1.msra.mxu0 %v449
    %1705 = vmatprep.subr.mxu0 %v452
    %1706 = vmatpush1.msra.mxu0 %v451
    %1707 = vmatprep.subr.mxu0 %v454
    %1708 = vmatpush1.msra.mxu0 %v453
    %1709 = vmatprep.subr.mxu0 %v456
    %1710 = vmatpush1.msra.mxu0 %v455
    %1711 = vmatprep.subr.mxu0 %v458
    %1712 = vmatpush1.msra.mxu0 %v457
    %1713 = vmatprep.subr.mxu0 %v460
    %1714 = vmatpush1.msra.mxu0 %v459
    %1715 = vmatprep.subr.mxu0 %v462
    %1716 = vmatpush1.msra.mxu0 %v461
    %1717 = vmatprep.subr.mxu0 %v464
    %1718 = vmatpush1.msra.mxu0 %v463
    %1719 = vmatprep.subr.mxu0 %v466
    %1720 = vmatpush1.msra.mxu0 %v465
    %1721 = vmatprep.subr.mxu0 %v468
    %1722 = vmatpush1.msra.mxu0 %v467
    %1723 = vmatprep.subr.mxu0 %v470
    %1724 = vmatpush1.msra.mxu0 %v469
    %1725 = vmatprep.subr.mxu0 %v472
    %1726 = vmatpush1.msra.mxu0 %v471
    %1727 = vmatprep.subr.mxu0 %v474
    %1728 = vmatpush1.msra.mxu0 %v473
    %1729 = vmatprep.subr.mxu0 %v476
    %1730 = vmatpush1.msra.mxu0 %v475
    %1731 = vmatprep.mubr.f32.mxu0 %v1139
    %1732 = vmatmul.mubr.f32.gmra.mrb[0].mxu0 %v1131
    %v1733 = vpop.f32.mrb[0].mxu0
    %v1734 = vadd.f32 %v1663, %v1733
    %v1735 = vpop.f32.mrb[0].mxu0
    %v1736 = vadd.f32 %v1665, %v1735
    %1737 = vdwg.mxu0
    %1738 = vmatprep.subr.mxu0 %v478
    %1739 = vmatpush1.msra.mxu0 %v477
    %1740 = vmatprep.subr.mxu0 %v480
    %1741 = vmatpush1.msra.mxu0 %v479
    %1742 = vmatprep.subr.mxu0 %v482
    %1743 = vmatpush1.msra.mxu0 %v481
    %1744 = vmatprep.subr.mxu0 %v484
    %1745 = vmatpush1.msra.mxu0 %v483
    %1746 = vmatprep.subr.mxu0 %v486
    %1747 = vmatpush1.msra.mxu0 %v485
    %1748 = vmatprep.subr.mxu0 %v488
    %1749 = vmatpush1.msra.mxu0 %v487
    %1750 = vmatprep.subr.mxu0 %v490
    %1751 = vmatpush1.msra.mxu0 %v489
    %1752 = vmatprep.subr.mxu0 %v492
    %1753 = vmatpush1.msra.mxu0 %v491
    %1754 = vmatprep.subr.mxu0 %v494
    %1755 = vmatpush1.msra.mxu0 %v493
    %1756 = vmatprep.subr.mxu0 %v496
    %1757 = vmatpush1.msra.mxu0 %v495
    %1758 = vmatprep.subr.mxu0 %v498
    %1759 = vmatpush1.msra.mxu0 %v497
    %1760 = vmatprep.subr.mxu0 %v500
    %1761 = vmatpush1.msra.mxu0 %v499
    %1762 = vmatprep.subr.mxu0 %v502
    %1763 = vmatpush1.msra.mxu0 %v501
    %1764 = vmatprep.subr.mxu0 %v504
    %1765 = vmatpush1.msra.mxu0 %v503
    %1766 = vmatprep.subr.mxu0 %v506
    %1767 = vmatpush1.msra.mxu0 %v505
    %1768 = vmatprep.subr.mxu0 %v508
    %1769 = vmatpush1.msra.mxu0 %v507
    %1770 = vmatprep.subr.mxu0 %v510
    %1771 = vmatpush1.msra.mxu0 %v509
    %1772 = vmatprep.subr.mxu0 %v512
    %1773 = vmatpush1.msra.mxu0 %v511
    %1774 = vmatprep.subr.mxu0 %v514
    %1775 = vmatpush1.msra.mxu0 %v513
    %1776 = vmatprep.subr.mxu0 %v516
    %1777 = vmatpush1.msra.mxu0 %v515
    %1778 = vmatprep.subr.mxu0 %v518
    %1779 = vmatpush1.msra.mxu0 %v517
    %1780 = vmatprep.subr.mxu0 %v520
    %1781 = vmatpush1.msra.mxu0 %v519
    %1782 = vmatprep.subr.mxu0 %v522
    %1783 = vmatpush1.msra.mxu0 %v521
    %1784 = vmatprep.subr.mxu0 %v524
    %1785 = vmatpush1.msra.mxu0 %v523
    %1786 = vmatprep.subr.mxu0 %v526
    %1787 = vmatpush1.msra.mxu0 %v525
    %1788 = vmatprep.subr.mxu0 %v528
    %1789 = vmatpush1.msra.mxu0 %v527
    %1790 = vmatprep.subr.mxu0 %v530
    %1791 = vmatpush1.msra.mxu0 %v529
    %1792 = vmatprep.subr.mxu0 %v532
    %1793 = vmatpush1.msra.mxu0 %v531
    %1794 = vmatprep.subr.mxu0 %v534
    %1795 = vmatpush1.msra.mxu0 %v533
    %1796 = vmatprep.subr.mxu0 %v536
    %1797 = vmatpush1.msra.mxu0 %v535
    %1798 = vmatprep.subr.mxu0 %v538
    %1799 = vmatpush1.msra.mxu0 %v537
    %1800 = vmatprep.subr.mxu0 %v540
    %1801 = vmatpush1.msra.mxu0 %v539
    %1802 = vmatprep.mubr.f32.mxu0 %v1140
    %1803 = vmatmul.mubr.f32.gmra.mrb[0].mxu0 %v1138
    %v1804 = vpop.f32.mrb[0].mxu0
    %v1805 = vadd.f32 %v1734, %v1804
    %v1806 = vpop.f32.mrb[0].mxu0
    %v1807 = vadd.f32 %v1736, %v1806
    %1808 = vdwg.mxu0
    %1809 = vmatprep.subr.mxu0 %v542
    %1810 = vmatpush1.msra.mxu0 %v541
    %1811 = vmatprep.subr.mxu0 %v544
    %1812 = vmatpush1.msra.mxu0 %v543
    %1813 = vmatprep.subr.mxu0 %v546
    %1814 = vmatpush1.msra.mxu0 %v545
    %1815 = vmatprep.subr.mxu0 %v548
    %1816 = vmatpush1.msra.mxu0 %v547
    %1817 = vmatprep.subr.mxu0 %v550
    %1818 = vmatpush1.msra.mxu0 %v549
    %1819 = vmatprep.subr.mxu0 %v552
    %1820 = vmatpush1.msra.mxu0 %v551
    %1821 = vmatprep.subr.mxu0 %v554
    %1822 = vmatpush1.msra.mxu0 %v553
    %1823 = vmatprep.subr.mxu0 %v556
    %1824 = vmatpush1.msra.mxu0 %v555
    %1825 = vmatprep.subr.mxu0 %v558
    %1826 = vmatpush1.msra.mxu0 %v557
    %1827 = vmatprep.subr.mxu0 %v560
    %1828 = vmatpush1.msra.mxu0 %v559
    %1829 = vmatprep.subr.mxu0 %v562
    %1830 = vmatpush1.msra.mxu0 %v561
    %1831 = vmatprep.subr.mxu0 %v564
    %1832 = vmatpush1.msra.mxu0 %v563
    %1833 = vmatprep.subr.mxu0 %v566
    %1834 = vmatpush1.msra.mxu0 %v565
    %1835 = vmatprep.subr.mxu0 %v568
    %1836 = vmatpush1.msra.mxu0 %v567
    %1837 = vmatprep.subr.mxu0 %v570
    %1838 = vmatpush1.msra.mxu0 %v569
    %1839 = vmatprep.subr.mxu0 %v572
    %1840 = vmatpush1.msra.mxu0 %v571
    %1841 = vmatprep.subr.mxu0 %v574
    %1842 = vmatpush1.msra.mxu0 %v573
    %1843 = vmatprep.subr.mxu0 %v576
    %1844 = vmatpush1.msra.mxu0 %v575
    %1845 = vmatprep.subr.mxu0 %v578
    %1846 = vmatpush1.msra.mxu0 %v577
    %1847 = vmatprep.subr.mxu0 %v580
    %1848 = vmatpush1.msra.mxu0 %v579
    %1849 = vmatprep.subr.mxu0 %v582
    %1850 = vmatpush1.msra.mxu0 %v581
    %1851 = vmatprep.subr.mxu0 %v584
    %1852 = vmatpush1.msra.mxu0 %v583
    %1853 = vmatprep.subr.mxu0 %v586
    %1854 = vmatpush1.msra.mxu0 %v585
    %1855 = vmatprep.subr.mxu0 %v588
    %1856 = vmatpush1.msra.mxu0 %v587
    %1857 = vmatprep.subr.mxu0 %v590
    %1858 = vmatpush1.msra.mxu0 %v589
    %1859 = vmatprep.subr.mxu0 %v592
    %1860 = vmatpush1.msra.mxu0 %v591
    %1861 = vmatprep.subr.mxu0 %v594
    %1862 = vmatpush1.msra.mxu0 %v593
    %1863 = vmatprep.subr.mxu0 %v596
    %1864 = vmatpush1.msra.mxu0 %v595
    %1865 = vmatprep.subr.mxu0 %v598
    %1866 = vmatpush1.msra.mxu0 %v597
    %1867 = vmatprep.subr.mxu0 %v600
    %1868 = vmatpush1.msra.mxu0 %v599
    %1869 = vmatprep.subr.mxu0 %v602
    %1870 = vmatpush1.msra.mxu0 %v601
    %1871 = vmatprep.subr.mxu0 %v604
    %1872 = vmatpush1.msra.mxu0 %v603
    %1873 = vmatprep.mubr.f32.mxu0 %v1156
    %1874 = vmatmul.mubr.f32.gmra.mrb[0].mxu0 %v1148
    %v1875 = vpop.f32.mrb[0].mxu0
    %v1876 = vadd.f32 %v1805, %v1875
    %v1877 = vpop.f32.mrb[0].mxu0
    %v1878 = vadd.f32 %v1807, %v1877
    %1879 = vdwg.mxu0
    %1880 = vmatprep.subr.mxu0 %v606
    %1881 = vmatpush1.msra.mxu0 %v605
    %1882 = vmatprep.subr.mxu0 %v608
    %1883 = vmatpush1.msra.mxu0 %v607
    %1884 = vmatprep.subr.mxu0 %v610
    %1885 = vmatpush1.msra.mxu0 %v609
    %1886 = vmatprep.subr.mxu0 %v612
    %1887 = vmatpush1.msra.mxu0 %v611
    %1888 = vmatprep.subr.mxu0 %v614
    %1889 = vmatpush1.msra.mxu0 %v613
    %1890 = vmatprep.subr.mxu0 %v616
    %1891 = vmatpush1.msra.mxu0 %v615
    %1892 = vmatprep.subr.mxu0 %v618
    %1893 = vmatpush1.msra.mxu0 %v617
    %1894 = vmatprep.subr.mxu0 %v620
    %1895 = vmatpush1.msra.mxu0 %v619
    %1896 = vmatprep.subr.mxu0 %v622
    %1897 = vmatpush1.msra.mxu0 %v621
    %1898 = vmatprep.subr.mxu0 %v624
    %1899 = vmatpush1.msra.mxu0 %v623
    %1900 = vmatprep.subr.mxu0 %v626
    %1901 = vmatpush1.msra.mxu0 %v625
    %1902 = vmatprep.subr.mxu0 %v628
    %1903 = vmatpush1.msra.mxu0 %v627
    %1904 = vmatprep.subr.mxu0 %v630
    %1905 = vmatpush1.msra.mxu0 %v629
    %1906 = vmatprep.subr.mxu0 %v632
    %1907 = vmatpush1.msra.mxu0 %v631
    %1908 = vmatprep.subr.mxu0 %v634
    %1909 = vmatpush1.msra.mxu0 %v633
    %1910 = vmatprep.subr.mxu0 %v636
    %1911 = vmatpush1.msra.mxu0 %v635
    %1912 = vmatprep.subr.mxu0 %v638
    %1913 = vmatpush1.msra.mxu0 %v637
    %1914 = vmatprep.subr.mxu0 %v640
    %1915 = vmatpush1.msra.mxu0 %v639
    %1916 = vmatprep.subr.mxu0 %v642
    %1917 = vmatpush1.msra.mxu0 %v641
    %1918 = vmatprep.subr.mxu0 %v644
    %1919 = vmatpush1.msra.mxu0 %v643
    %1920 = vmatprep.subr.mxu0 %v646
    %1921 = vmatpush1.msra.mxu0 %v645
    %1922 = vmatprep.subr.mxu0 %v648
    %1923 = vmatpush1.msra.mxu0 %v647
    %1924 = vmatprep.subr.mxu0 %v650
    %1925 = vmatpush1.msra.mxu0 %v649
    %1926 = vmatprep.subr.mxu0 %v652
    %1927 = vmatpush1.msra.mxu0 %v651
    %1928 = vmatprep.subr.mxu0 %v654
    %1929 = vmatpush1.msra.mxu0 %v653
    %1930 = vmatprep.subr.mxu0 %v656
    %1931 = vmatpush1.msra.mxu0 %v655
    %1932 = vmatprep.subr.mxu0 %v658
    %1933 = vmatpush1.msra.mxu0 %v657
    %1934 = vmatprep.subr.mxu0 %v660
    %1935 = vmatpush1.msra.mxu0 %v659
    %1936 = vmatprep.subr.mxu0 %v662
    %1937 = vmatpush1.msra.mxu0 %v661
    %1938 = vmatprep.subr.mxu0 %v664
    %1939 = vmatpush1.msra.mxu0 %v663
    %1940 = vmatprep.subr.mxu0 %v666
    %1941 = vmatpush1.msra.mxu0 %v665
    %1942 = vmatprep.subr.mxu0 %v668
    %1943 = vmatpush1.msra.mxu0 %v667
    %1944 = vmatprep.mubr.f32.mxu0 %v1157
    %1945 = vmatmul.mubr.f32.gmra.mrb[0].mxu0 %v1155
    %v1946 = vpop.f32.mrb[0].mxu0
    %v1947 = vadd.f32 %v1876, %v1946
    %v1948 = vpop.f32.mrb[0].mxu0
    %v1949 = vadd.f32 %v1878, %v1948
    %1950 = vdwg.mxu0
    %1951 = vmatprep.subr.mxu0 %v670
    %1952 = vmatpush1.msra.mxu0 %v669
    %1953 = vmatprep.subr.mxu0 %v672
    %1954 = vmatpush1.msra.mxu0 %v671
    %1955 = vmatprep.subr.mxu0 %v674
    %1956 = vmatpush1.msra.mxu0 %v673
    %1957 = vmatprep.subr.mxu0 %v676
    %1958 = vmatpush1.msra.mxu0 %v675
    %1959 = vmatprep.subr.mxu0 %v678
    %1960 = vmatpush1.msra.mxu0 %v677
    %1961 = vmatprep.subr.mxu0 %v680
    %1962 = vmatpush1.msra.mxu0 %v679
    %1963 = vmatprep.subr.mxu0 %v682
    %1964 = vmatpush1.msra.mxu0 %v681
    %1965 = vmatprep.subr.mxu0 %v684
    %1966 = vmatpush1.msra.mxu0 %v683
    %1967 = vmatprep.subr.mxu0 %v686
    %1968 = vmatpush1.msra.mxu0 %v685
    %1969 = vmatprep.subr.mxu0 %v688
    %1970 = vmatpush1.msra.mxu0 %v687
    %1971 = vmatprep.subr.mxu0 %v690
    %1972 = vmatpush1.msra.mxu0 %v689
    %1973 = vmatprep.subr.mxu0 %v692
    %1974 = vmatpush1.msra.mxu0 %v691
    %1975 = vmatprep.subr.mxu0 %v694
    %1976 = vmatpush1.msra.mxu0 %v693
    %1977 = vmatprep.subr.mxu0 %v696
    %1978 = vmatpush1.msra.mxu0 %v695
    %1979 = vmatprep.subr.mxu0 %v698
    %1980 = vmatpush1.msra.mxu0 %v697
    %1981 = vmatprep.subr.mxu0 %v700
    %1982 = vmatpush1.msra.mxu0 %v699
    %1983 = vmatprep.subr.mxu0 %v702
    %1984 = vmatpush1.msra.mxu0 %v701
    %1985 = vmatprep.subr.mxu0 %v704
    %1986 = vmatpush1.msra.mxu0 %v703
    %1987 = vmatprep.subr.mxu0 %v706
    %1988 = vmatpush1.msra.mxu0 %v705
    %1989 = vmatprep.subr.mxu0 %v708
    %1990 = vmatpush1.msra.mxu0 %v707
    %1991 = vmatprep.subr.mxu0 %v710
    %1992 = vmatpush1.msra.mxu0 %v709
    %1993 = vmatprep.subr.mxu0 %v712
    %1994 = vmatpush1.msra.mxu0 %v711
    %1995 = vmatprep.subr.mxu0 %v714
    %1996 = vmatpush1.msra.mxu0 %v713
    %1997 = vmatprep.subr.mxu0 %v716
    %1998 = vmatpush1.msra.mxu0 %v715
    %1999 = vmatprep.subr.mxu0 %v718
    %2000 = vmatpush1.msra.mxu0 %v717
    %2001 = vmatprep.subr.mxu0 %v720
    %2002 = vmatpush1.msra.mxu0 %v719
    %2003 = vmatprep.subr.mxu0 %v722
    %2004 = vmatpush1.msra.mxu0 %v721
    %2005 = vmatprep.subr.mxu0 %v724
    %2006 = vmatpush1.msra.mxu0 %v723
    %2007 = vmatprep.subr.mxu0 %v726
    %2008 = vmatpush1.msra.mxu0 %v725
    %2009 = vmatprep.subr.mxu0 %v728
    %2010 = vmatpush1.msra.mxu0 %v727
    %2011 = vmatprep.subr.mxu0 %v730
    %2012 = vmatpush1.msra.mxu0 %v729
    %2013 = vmatprep.subr.mxu0 %v732
    %2014 = vmatpush1.msra.mxu0 %v731
    %2015 = vmatprep.mubr.f32.mxu0 %v1173
    %2016 = vmatmul.mubr.f32.gmra.mrb[0].mxu0 %v1165
    %v2017 = vpop.f32.mrb[0].mxu0
    %v2018 = vadd.f32 %v1947, %v2017
    %v2019 = vpop.f32.mrb[0].mxu0
    %v2020 = vadd.f32 %v1949, %v2019
    %2021 = vdwg.mxu0
    %2022 = vmatprep.subr.mxu0 %v734
    %2023 = vmatpush1.msra.mxu0 %v733
    %2024 = vmatprep.subr.mxu0 %v736
    %2025 = vmatpush1.msra.mxu0 %v735
    %2026 = vmatprep.subr.mxu0 %v738
    %2027 = vmatpush1.msra.mxu0 %v737
    %2028 = vmatprep.subr.mxu0 %v740
    %2029 = vmatpush1.msra.mxu0 %v739
    %2030 = vmatprep.subr.mxu0 %v742
    %2031 = vmatpush1.msra.mxu0 %v741
    %2032 = vmatprep.subr.mxu0 %v744
    %2033 = vmatpush1.msra.mxu0 %v743
    %2034 = vmatprep.subr.mxu0 %v746
    %2035 = vmatpush1.msra.mxu0 %v745
    %2036 = vmatprep.subr.mxu0 %v748
    %2037 = vmatpush1.msra.mxu0 %v747
    %2038 = vmatprep.subr.mxu0 %v750
    %2039 = vmatpush1.msra.mxu0 %v749
    %2040 = vmatprep.subr.mxu0 %v752
    %2041 = vmatpush1.msra.mxu0 %v751
    %2042 = vmatprep.subr.mxu0 %v754
    %2043 = vmatpush1.msra.mxu0 %v753
    %2044 = vmatprep.subr.mxu0 %v756
    %2045 = vmatpush1.msra.mxu0 %v755
    %2046 = vmatprep.subr.mxu0 %v758
    %2047 = vmatpush1.msra.mxu0 %v757
    %2048 = vmatprep.subr.mxu0 %v760
    %2049 = vmatpush1.msra.mxu0 %v759
    %2050 = vmatprep.subr.mxu0 %v762
    %2051 = vmatpush1.msra.mxu0 %v761
    %2052 = vmatprep.subr.mxu0 %v764
    %2053 = vmatpush1.msra.mxu0 %v763
    %2054 = vmatprep.subr.mxu0 %v766
    %2055 = vmatpush1.msra.mxu0 %v765
    %2056 = vmatprep.subr.mxu0 %v768
    %2057 = vmatpush1.msra.mxu0 %v767
    %2058 = vmatprep.subr.mxu0 %v770
    %2059 = vmatpush1.msra.mxu0 %v769
    %2060 = vmatprep.subr.mxu0 %v772
    %2061 = vmatpush1.msra.mxu0 %v771
    %2062 = vmatprep.subr.mxu0 %v774
    %2063 = vmatpush1.msra.mxu0 %v773
    %2064 = vmatprep.subr.mxu0 %v776
    %2065 = vmatpush1.msra.mxu0 %v775
    %2066 = vmatprep.subr.mxu0 %v778
    %2067 = vmatpush1.msra.mxu0 %v777
    %2068 = vmatprep.subr.mxu0 %v780
    %2069 = vmatpush1.msra.mxu0 %v779
    %2070 = vmatprep.subr.mxu0 %v782
    %2071 = vmatpush1.msra.mxu0 %v781
    %2072 = vmatprep.subr.mxu0 %v784
    %2073 = vmatpush1.msra.mxu0 %v783
    %2074 = vmatprep.subr.mxu0 %v786
    %2075 = vmatpush1.msra.mxu0 %v785
    %2076 = vmatprep.subr.mxu0 %v788
    %2077 = vmatpush1.msra.mxu0 %v787
    %2078 = vmatprep.subr.mxu0 %v790
    %2079 = vmatpush1.msra.mxu0 %v789
    %2080 = vmatprep.subr.mxu0 %v792
    %2081 = vmatpush1.msra.mxu0 %v791
    %2082 = vmatprep.subr.mxu0 %v794
    %2083 = vmatpush1.msra.mxu0 %v793
    %2084 = vmatprep.subr.mxu0 %v796
    %2085 = vmatpush1.msra.mxu0 %v795
    %2086 = vmatprep.mubr.f32.mxu0 %v1174
    %2087 = vmatmul.mubr.f32.gmra.mrb[0].mxu0 %v1172
    %v2088 = vpop.f32.mrb[0].mxu0
    %v2089 = vadd.f32 %v2018, %v2088
    %v2090 = vpop.f32.mrb[0].mxu0
    %v2091 = vadd.f32 %v2020, %v2090
    %2092 = vdwg.mxu0
    %2093 = vmatprep.subr.mxu0 %v798
    %2094 = vmatpush1.msra.mxu0 %v797
    %2095 = vmatprep.subr.mxu0 %v800
    %2096 = vmatpush1.msra.mxu0 %v799
    %2097 = vmatprep.subr.mxu0 %v802
    %2098 = vmatpush1.msra.mxu0 %v801
    %2099 = vmatprep.subr.mxu0 %v804
    %2100 = vmatpush1.msra.mxu0 %v803
    %2101 = vmatprep.subr.mxu0 %v806
    %2102 = vmatpush1.msra.mxu0 %v805
    %2103 = vmatprep.subr.mxu0 %v808
    %2104 = vmatpush1.msra.mxu0 %v807
    %2105 = vmatprep.subr.mxu0 %v810
    %2106 = vmatpush1.msra.mxu0 %v809
    %2107 = vmatprep.subr.mxu0 %v812
    %2108 = vmatpush1.msra.mxu0 %v811
    %2109 = vmatprep.subr.mxu0 %v814
    %2110 = vmatpush1.msra.mxu0 %v813
    %2111 = vmatprep.subr.mxu0 %v816
    %2112 = vmatpush1.msra.mxu0 %v815
    %2113 = vmatprep.subr.mxu0 %v818
    %2114 = vmatpush1.msra.mxu0 %v817
    %2115 = vmatprep.subr.mxu0 %v820
    %2116 = vmatpush1.msra.mxu0 %v819
    %2117 = vmatprep.subr.mxu0 %v822
    %2118 = vmatpush1.msra.mxu0 %v821
    %2119 = vmatprep.subr.mxu0 %v824
    %2120 = vmatpush1.msra.mxu0 %v823
    %2121 = vmatprep.subr.mxu0 %v826
    %2122 = vmatpush1.msra.mxu0 %v825
    %2123 = vmatprep.subr.mxu0 %v828
    %2124 = vmatpush1.msra.mxu0 %v827
    %2125 = vmatprep.subr.mxu0 %v830
    %2126 = vmatpush1.msra.mxu0 %v829
    %2127 = vmatprep.subr.mxu0 %v832
    %2128 = vmatpush1.msra.mxu0 %v831
    %2129 = vmatprep.subr.mxu0 %v834
    %2130 = vmatpush1.msra.mxu0 %v833
    %2131 = vmatprep.subr.mxu0 %v836
    %2132 = vmatpush1.msra.mxu0 %v835
    %2133 = vmatprep.subr.mxu0 %v838
    %2134 = vmatpush1.msra.mxu0 %v837
    %2135 = vmatprep.subr.mxu0 %v840
    %2136 = vmatpush1.msra.mxu0 %v839
    %2137 = vmatprep.subr.mxu0 %v842
    %2138 = vmatpush1.msra.mxu0 %v841
    %2139 = vmatprep.subr.mxu0 %v844
    %2140 = vmatpush1.msra.mxu0 %v843
    %2141 = vmatprep.subr.mxu0 %v846
    %2142 = vmatpush1.msra.mxu0 %v845
    %2143 = vmatprep.subr.mxu0 %v848
    %2144 = vmatpush1.msra.mxu0 %v847
    %2145 = vmatprep.subr.mxu0 %v850
    %2146 = vmatpush1.msra.mxu0 %v849
    %2147 = vmatprep.subr.mxu0 %v852
    %2148 = vmatpush1.msra.mxu0 %v851
    %2149 = vmatprep.subr.mxu0 %v854
    %2150 = vmatpush1.msra.mxu0 %v853
    %2151 = vmatprep.subr.mxu0 %v856
    %2152 = vmatpush1.msra.mxu0 %v855
    %2153 = vmatprep.subr.mxu0 %v858
    %2154 = vmatpush1.msra.mxu0 %v857
    %2155 = vmatprep.subr.mxu0 %v860
    %2156 = vmatpush1.msra.mxu0 %v859
    %2157 = vmatprep.mubr.f32.mxu0 %v1190
    %2158 = vmatmul.mubr.f32.gmra.mrb[0].mxu0 %v1182
    %v2159 = vpop.f32.mrb[0].mxu0
    %v2160 = vadd.f32 %v2089, %v2159
    %v2161 = vpop.f32.mrb[0].mxu0
    %v2162 = vadd.f32 %v2091, %v2161
    %2163 = vdwg.mxu0
    %2164 = vmatprep.subr.mxu0 %v862
    %2165 = vmatpush1.msra.mxu0 %v861
    %2166 = vmatprep.subr.mxu0 %v864
    %2167 = vmatpush1.msra.mxu0 %v863
    %2168 = vmatprep.subr.mxu0 %v866
    %2169 = vmatpush1.msra.mxu0 %v865
    %2170 = vmatprep.subr.mxu0 %v868
    %2171 = vmatpush1.msra.mxu0 %v867
    %2172 = vmatprep.subr.mxu0 %v870
    %2173 = vmatpush1.msra.mxu0 %v869
    %2174 = vmatprep.subr.mxu0 %v872
    %2175 = vmatpush1.msra.mxu0 %v871
    %2176 = vmatprep.subr.mxu0 %v874
    %2177 = vmatpush1.msra.mxu0 %v873
    %2178 = vmatprep.subr.mxu0 %v876
    %2179 = vmatpush1.msra.mxu0 %v875
    %2180 = vmatprep.subr.mxu0 %v878
    %2181 = vmatpush1.msra.mxu0 %v877
    %2182 = vmatprep.subr.mxu0 %v880
    %2183 = vmatpush1.msra.mxu0 %v879
    %2184 = vmatprep.subr.mxu0 %v882
    %2185 = vmatpush1.msra.mxu0 %v881
    %2186 = vmatprep.subr.mxu0 %v884
    %2187 = vmatpush1.msra.mxu0 %v883
    %2188 = vmatprep.subr.mxu0 %v886
    %2189 = vmatpush1.msra.mxu0 %v885
    %2190 = vmatprep.subr.mxu0 %v888
    %2191 = vmatpush1.msra.mxu0 %v887
    %2192 = vmatprep.subr.mxu0 %v890
    %2193 = vmatpush1.msra.mxu0 %v889
    %2194 = vmatprep.subr.mxu0 %v892
    %2195 = vmatpush1.msra.mxu0 %v891
    %2196 = vmatprep.subr.mxu0 %v894
    %2197 = vmatpush1.msra.mxu0 %v893
    %2198 = vmatprep.subr.mxu0 %v896
    %2199 = vmatpush1.msra.mxu0 %v895
    %2200 = vmatprep.subr.mxu0 %v898
    %2201 = vmatpush1.msra.mxu0 %v897
    %2202 = vmatprep.subr.mxu0 %v900
    %2203 = vmatpush1.msra.mxu0 %v899
    %2204 = vmatprep.subr.mxu0 %v902
    %2205 = vmatpush1.msra.mxu0 %v901
    %2206 = vmatprep.subr.mxu0 %v904
    %2207 = vmatpush1.msra.mxu0 %v903
    %2208 = vmatprep.subr.mxu0 %v906
    %2209 = vmatpush1.msra.mxu0 %v905
    %2210 = vmatprep.subr.mxu0 %v908
    %2211 = vmatpush1.msra.mxu0 %v907
    %2212 = vmatprep.subr.mxu0 %v910
    %2213 = vmatpush1.msra.mxu0 %v909
    %2214 = vmatprep.subr.mxu0 %v912
    %2215 = vmatpush1.msra.mxu0 %v911
    %2216 = vmatprep.subr.mxu0 %v914
    %2217 = vmatpush1.msra.mxu0 %v913
    %2218 = vmatprep.subr.mxu0 %v916
    %2219 = vmatpush1.msra.mxu0 %v915
    %2220 = vmatprep.subr.mxu0 %v918
    %2221 = vmatpush1.msra.mxu0 %v917
    %2222 = vmatprep.subr.mxu0 %v920
    %2223 = vmatpush1.msra.mxu0 %v919
    %2224 = vmatprep.subr.mxu0 %v922
    %2225 = vmatpush1.msra.mxu0 %v921
    %2226 = vmatprep.subr.mxu0 %v924
    %2227 = vmatpush1.msra.mxu0 %v923
    %2228 = vmatprep.mubr.f32.mxu0 %v1191
    %2229 = vmatmul.mubr.f32.gmra.mrb[0].mxu0 %v1189
    %v2230 = vpop.f32.mrb[0].mxu0
    %v2231 = vadd.f32 %v2160, %v2230
    %v2232 = vpop.f32.mrb[0].mxu0
    %v2233 = vadd.f32 %v2162, %v2232
    %2234 = vdwg.mxu0
    %2235 = vmatprep.subr.mxu0 %v926
    %2236 = vmatpush1.msra.mxu0 %v925
    %2237 = vmatprep.subr.mxu0 %v928
    %2238 = vmatpush1.msra.mxu0 %v927
    %2239 = vmatprep.subr.mxu0 %v930
    %2240 = vmatpush1.msra.mxu0 %v929
    %2241 = vmatprep.subr.mxu0 %v932
    %2242 = vmatpush1.msra.mxu0 %v931
    %2243 = vmatprep.subr.mxu0 %v934
    %2244 = vmatpush1.msra.mxu0 %v933
    %2245 = vmatprep.subr.mxu0 %v936
    %2246 = vmatpush1.msra.mxu0 %v935
    %2247 = vmatprep.subr.mxu0 %v938
    %2248 = vmatpush1.msra.mxu0 %v937
    %2249 = vmatprep.subr.mxu0 %v940
    %2250 = vmatpush1.msra.mxu0 %v939
    %2251 = vmatprep.subr.mxu0 %v942
    %2252 = vmatpush1.msra.mxu0 %v941
    %2253 = vmatprep.subr.mxu0 %v944
    %2254 = vmatpush1.msra.mxu0 %v943
    %2255 = vmatprep.subr.mxu0 %v946
    %2256 = vmatpush1.msra.mxu0 %v945
    %2257 = vmatprep.subr.mxu0 %v948
    %2258 = vmatpush1.msra.mxu0 %v947
    %2259 = vmatprep.subr.mxu0 %v950
    %2260 = vmatpush1.msra.mxu0 %v949
    %2261 = vmatprep.subr.mxu0 %v952
    %2262 = vmatpush1.msra.mxu0 %v951
    %2263 = vmatprep.subr.mxu0 %v954
    %2264 = vmatpush1.msra.mxu0 %v953
    %2265 = vmatprep.subr.mxu0 %v956
    %2266 = vmatpush1.msra.mxu0 %v955
    %2267 = vmatprep.subr.mxu0 %v958
    %2268 = vmatpush1.msra.mxu0 %v957
    %2269 = vmatprep.subr.mxu0 %v960
    %2270 = vmatpush1.msra.mxu0 %v959
    %2271 = vmatprep.subr.mxu0 %v962
    %2272 = vmatpush1.msra.mxu0 %v961
    %2273 = vmatprep.subr.mxu0 %v964
    %2274 = vmatpush1.msra.mxu0 %v963
    %2275 = vmatprep.subr.mxu0 %v966
    %2276 = vmatpush1.msra.mxu0 %v965
    %2277 = vmatprep.subr.mxu0 %v968
    %2278 = vmatpush1.msra.mxu0 %v967
    %2279 = vmatprep.subr.mxu0 %v970
    %2280 = vmatpush1.msra.mxu0 %v969
    %2281 = vmatprep.subr.mxu0 %v972
    %2282 = vmatpush1.msra.mxu0 %v971
    %2283 = vmatprep.subr.mxu0 %v974
    %2284 = vmatpush1.msra.mxu0 %v973
    %2285 = vmatprep.subr.mxu0 %v976
    %2286 = vmatpush1.msra.mxu0 %v975
    %2287 = vmatprep.subr.mxu0 %v978
    %2288 = vmatpush1.msra.mxu0 %v977
    %2289 = vmatprep.subr.mxu0 %v980
    %2290 = vmatpush1.msra.mxu0 %v979
    %2291 = vmatprep.subr.mxu0 %v982
    %2292 = vmatpush1.msra.mxu0 %v981
    %2293 = vmatprep.subr.mxu0 %v984
    %2294 = vmatpush1.msra.mxu0 %v983
    %2295 = vmatprep.subr.mxu0 %v986
    %2296 = vmatpush1.msra.mxu0 %v985
    %2297 = vmatprep.subr.mxu0 %v988
    %2298 = vmatpush1.msra.mxu0 %v987
    %2299 = vmatprep.mubr.f32.mxu0 %v1207
    %2300 = vmatmul.mubr.f32.gmra.mrb[0].mxu0 %v1199
    %v2301 = vpop.f32.mrb[0].mxu0
    %v2302 = vadd.f32 %v2231, %v2301
    %v2303 = vpop.f32.mrb[0].mxu0
    %v2304 = vadd.f32 %v2233, %v2303
    %2305 = vdwg.mxu0
    %2306 = vmatprep.subr.mxu0 %v990
    %2307 = vmatpush1.msra.mxu0 %v989
    %2308 = vmatprep.subr.mxu0 %v992
    %2309 = vmatpush1.msra.mxu0 %v991
    %2310 = vmatprep.subr.mxu0 %v994
    %2311 = vmatpush1.msra.mxu0 %v993
    %2312 = vmatprep.subr.mxu0 %v996
    %2313 = vmatpush1.msra.mxu0 %v995
    %2314 = vmatprep.subr.mxu0 %v998
    %2315 = vmatpush1.msra.mxu0 %v997
    %2316 = vmatprep.subr.mxu0 %v1000
    %2317 = vmatpush1.msra.mxu0 %v999
    %2318 = vmatprep.subr.mxu0 %v1002
    %2319 = vmatpush1.msra.mxu0 %v1001
    %2320 = vmatprep.subr.mxu0 %v1004
    %2321 = vmatpush1.msra.mxu0 %v1003
    %2322 = vmatprep.subr.mxu0 %v1006
    %2323 = vmatpush1.msra.mxu0 %v1005
    %2324 = vmatprep.subr.mxu0 %v1008
    %2325 = vmatpush1.msra.mxu0 %v1007
    %2326 = vmatprep.subr.mxu0 %v1010
    %2327 = vmatpush1.msra.mxu0 %v1009
    %2328 = vmatprep.subr.mxu0 %v1012
    %2329 = vmatpush1.msra.mxu0 %v1011
    %2330 = vmatprep.subr.mxu0 %v1014
    %2331 = vmatpush1.msra.mxu0 %v1013
    %2332 = vmatprep.subr.mxu0 %v1016
    %2333 = vmatpush1.msra.mxu0 %v1015
    %2334 = vmatprep.subr.mxu0 %v1018
    %2335 = vmatpush1.msra.mxu0 %v1017
    %2336 = vmatprep.subr.mxu0 %v1020
    %2337 = vmatpush1.msra.mxu0 %v1019
    %2338 = vmatprep.subr.mxu0 %v1022
    %2339 = vmatpush1.msra.mxu0 %v1021
    %2340 = vmatprep.subr.mxu0 %v1024
    %2341 = vmatpush1.msra.mxu0 %v1023
    %2342 = vmatprep.subr.mxu0 %v1026
    %2343 = vmatpush1.msra.mxu0 %v1025
    %2344 = vmatprep.subr.mxu0 %v1028
    %2345 = vmatpush1.msra.mxu0 %v1027
    %2346 = vmatprep.subr.mxu0 %v1030
    %2347 = vmatpush1.msra.mxu0 %v1029
    %2348 = vmatprep.subr.mxu0 %v1032
    %2349 = vmatpush1.msra.mxu0 %v1031
    %2350 = vmatprep.subr.mxu0 %v1034
    %2351 = vmatpush1.msra.mxu0 %v1033
    %2352 = vmatprep.subr.mxu0 %v1036
    %2353 = vmatpush1.msra.mxu0 %v1035
    %2354 = vmatprep.subr.mxu0 %v1038
    %2355 = vmatpush1.msra.mxu0 %v1037
    %2356 = vmatprep.subr.mxu0 %v1040
    %2357 = vmatpush1.msra.mxu0 %v1039
    %2358 = vmatprep.subr.mxu0 %v1042
    %2359 = vmatpush1.msra.mxu0 %v1041
    %2360 = vmatprep.subr.mxu0 %v1044
    %2361 = vmatpush1.msra.mxu0 %v1043
    %2362 = vmatprep.subr.mxu0 %v1046
    %2363 = vmatpush1.msra.mxu0 %v1045
    %2364 = vmatprep.subr.mxu0 %v1048
    %2365 = vmatpush1.msra.mxu0 %v1047
    %2366 = vmatprep.subr.mxu0 %v1050
    %2367 = vmatpush1.msra.mxu0 %v1049
    %2368 = vmatprep.subr.mxu0 %v1052
    %2369 = vmatpush1.msra.mxu0 %v1051
    %2370 = vmatprep.mubr.f32.mxu0 %v1208
    %2371 = vmatmul.mubr.f32.gmra.mrb[0].mxu0 %v1206
    %v2372 = vpop.f32.mrb[0].mxu0
    %v2373 = vadd.f32 %v2302, %v2372
    %v2374 = vpop.f32.mrb[0].mxu0
    %v2375 = vadd.f32 %v2304, %v2374
    %2376 = vdwg.mxu0
    %v2377 = vmax.f32 %v2373, 0.0
    %v2378 = vmax.f32 %v2375, 0.0
    %v2379 = vld [vmem:[%s3] sm:$0xff]
    %v2380 = vld [vmem:[%s3 + $0x8] sm:$0xff]
    %v2381 = vld [vmem:[%s3 + $0x10] sm:$0xff]
    %v2382 = vld [vmem:[%s3 + $0x18] sm:$0xff]
    %v2383 = vld [vmem:[%s3 + $0x20] sm:$0xff]
    %v2384 = vld [vmem:[%s3 + $0x28] sm:$0xff]
    %v2385 = vld [vmem:[%s3 + $0x30] sm:$0xff]
    %v2386 = vld [vmem:[%s3 + $0x38] sm:$0xff]
    %v2387 = vld [vmem:[%s3 + $0x40] sm:$0xff]
    %v2388 = vld [vmem:[%s3 + $0x48] sm:$0xff]
    %v2389 = vld [vmem:[%s3 + $0x50] sm:$0xff]
    %v2390 = vld [vmem:[%s3 + $0x58] sm:$0xff]
    %v2391 = vld [vmem:[%s3 + $0x60] sm:$0xff]
    %v2392 = vld [vmem:[%s3 + $0x68] sm:$0xff]
    %v2393 = vld [vmem:[%s3 + $0x70] sm:$0xff]
    %v2394 = vld [vmem:[%s3 + $0x78] sm:$0xff]
    %v2395 = vld [vmem:[%s3 + $0x80] sm:$0xff]
    %v2396 = vld [vmem:[%s3 + $0x88] sm:$0xff]
    %v2397 = vld [vmem:[%s3 + $0x90] sm:$0xff]
    %v2398 = vld [vmem:[%s3 + $0x98] sm:$0xff]
    %v2399 = vld [vmem:[%s3 + $0xa0] sm:$0xff]
    %v2400 = vld [vmem:[%s3 + $0xa8] sm:$0xff]
    %v2401 = vld [vmem:[%s3 + $0xb0] sm:$0xff]
    %v2402 = vld [vmem:[%s3 + $0xb8] sm:$0xff]
    %v2403 = vld [vmem:[%s3 + $0xc0] sm:$0xff]
    %v2404 = vld [vmem:[%s3 + $0xc8] sm:$0xff]
    %v2405 = vld [vmem:[%s3 + $0xd0] sm:$0xff]
    %v2406 = vld [vmem:[%s3 + $0xd8] sm:$0xff]
    %v2407 = vld [vmem:[%s3 + $0xe0] sm:$0xff]
    %v2408 = vld [vmem:[%s3 + $0xe8] sm:$0xff]
    %v2409 = vld [vmem:[%s3 + $0xf0] sm:$0xff]
    %v2410 = vld [vmem:[%s3 + $0xf8] sm:$0xff]
    %v2411 = vld [vmem:[%s4] sm:$0x1]
    %v2413 = vlaneseq
    %v2414 = vshrl.u32 %v2413, 7
    %v2415 = vsub.s32 0, %v2414
    %v2416 = vrot.slane %v2411, %v2415
    %2418 = vmatprep.subr.mxu0 0.0
    %2419 = vmatpush1.msra.mxu0 %v2379
    %2420 = vmatprep.subr.mxu0 0.0
    %2421 = vmatpush1.msra.mxu0 %v2380
    %2422 = vmatprep.subr.mxu0 0.0
    %2423 = vmatpush1.msra.mxu0 %v2381
    %2424 = vmatprep.subr.mxu0 0.0
    %2425 = vmatpush1.msra.mxu0 %v2382
    %2426 = vmatprep.subr.mxu0 0.0
    %2427 = vmatpush1.msra.mxu0 %v2383
    %2428 = vmatprep.subr.mxu0 0.0
    %2429 = vmatpush1.msra.mxu0 %v2384
    %2430 = vmatprep.subr.mxu0 0.0
    %2431 = vmatpush1.msra.mxu0 %v2385
    %2432 = vmatprep.subr.mxu0 0.0
    %2433 = vmatpush1.msra.mxu0 %v2386
    %2434 = vmatprep.subr.mxu0 0.0
    %2435 = vmatpush1.msra.mxu0 %v2387
    %2436 = vmatprep.subr.mxu0 0.0
    %2437 = vmatpush1.msra.mxu0 %v2388
    %2438 = vmatprep.subr.mxu0 0.0
    %2439 = vmatpush1.msra.mxu0 %v2389
    %2440 = vmatprep.subr.mxu0 0.0
    %2441 = vmatpush1.msra.mxu0 %v2390
    %2442 = vmatprep.subr.mxu0 0.0
    %2443 = vmatpush1.msra.mxu0 %v2391
    %2444 = vmatprep.subr.mxu0 0.0
    %2445 = vmatpush1.msra.mxu0 %v2392
    %2446 = vmatprep.subr.mxu0 0.0
    %2447 = vmatpush1.msra.mxu0 %v2393
    %2448 = vmatprep.subr.mxu0 0.0
    %2449 = vmatpush1.msra.mxu0 %v2394
    %2450 = vmatprep.subr.mxu0 0.0
    %2451 = vmatpush1.msra.mxu0 %v2395
    %2452 = vmatprep.subr.mxu0 0.0
    %2453 = vmatpush1.msra.mxu0 %v2396
    %2454 = vmatprep.subr.mxu0 0.0
    %2455 = vmatpush1.msra.mxu0 %v2397
    %2456 = vmatprep.subr.mxu0 0.0
    %2457 = vmatpush1.msra.mxu0 %v2398
    %2458 = vmatprep.subr.mxu0 0.0
    %2459 = vmatpush1.msra.mxu0 %v2399
    %2460 = vmatprep.subr.mxu0 0.0
    %2461 = vmatpush1.msra.mxu0 %v2400
    %2462 = vmatprep.subr.mxu0 0.0
    %2463 = vmatpush1.msra.mxu0 %v2401
    %2464 = vmatprep.subr.mxu0 0.0
    %2465 = vmatpush1.msra.mxu0 %v2402
    %2466 = vmatprep.subr.mxu0 0.0
    %2467 = vmatpush1.msra.mxu0 %v2403
    %2468 = vmatprep.subr.mxu0 0.0
    %2469 = vmatpush1.msra.mxu0 %v2404
    %2470 = vmatprep.subr.mxu0 0.0
    %2471 = vmatpush1.msra.mxu0 %v2405
    %2472 = vmatprep.subr.mxu0 0.0
    %2473 = vmatpush1.msra.mxu0 %v2406
    %2474 = vmatprep.subr.mxu0 0.0
    %2475 = vmatpush1.msra.mxu0 %v2407
    %2476 = vmatprep.subr.mxu0 0.0
    %2477 = vmatpush1.msra.mxu0 %v2408
    %2478 = vmatprep.subr.mxu0 0.0
    %2479 = vmatpush1.msra.mxu0 %v2409
    %2480 = vmatprep.subr.mxu0 0.0
    %2481 = vmatpush1.msra.mxu0 %v2410
    %2482 = vmatprep.mubr.f32.mxu0 %v2378
    %2483 = vmatmul.mubr.f32.gmra.mrb[0].mxu0 %v2377
    %v2484 = vpop.f32.mrb[0].mxu0
    %v2485 = vadd.f32 %v2416, %v2484
    %v2486 = vpop.f32.mrb[0].mxu0
    %2487 = vdwg.mxu0
    %2488 = vst [vmem:[#allocation2] sm:$0x3] %v2485
    // Predicated region
    $region22: #{shallow_cnn_forward.5} parent=1 // pred_check
      _
    $region23: #{shallow_cnn_forward.5} parent=1 // pred_check_branch
      %2490 = sbr.rel (0) target = $region25
    $region24: #{shallow_cnn_forward.5} parent=1 // pred_region
      %s2492 = ssub.s32 32, 32
      %2493 = vsyncadd [#allocation3], %s2492
      %s2495 = sshll.u32 [#allocation2], 4
      %s2496 = int_to_ptr.vmem [resolvable:$true] %s2495
      %2498 = dma.vmem_to_hbm [thread:$0]  %s2496, 32, %s5, [#allocation3]
    $region25: #{shallow_cnn_forward.5} parent=1 // pred_fallthru
      _
    // Predicated region
    $region26: #{shallow_cnn_forward.5} parent=1 // pred_check
      _
    $region27: #{shallow_cnn_forward.5} parent=1 // pred_check_branch
      %2500 = sbr.rel (0) target = $region29
    $region28: #{shallow_cnn_forward.5} parent=1 // pred_region
      %2501 = dma.done [#allocation3], 32
    $region29: #{shallow_cnn_forward.5} parent=1 // pred_fallthru
      _
    %2502 = vsyncpa [#allocation3], 1

</llo_original>
